<compile_context>
chip_gen: v6e
topology: v6e:2x2x1
jax: 0.10.0
libtpu: 0.0.40
codegen_flags: <defaults>
</compile_context>

<pallas_src>
import jax
import jax.numpy as jnp
from jax.experimental import pallas as pl
from jax.experimental.pallas import tpu as pltpu

NUM_ROUTING_ITERATIONS = 3


def _latent_caps_kernel(x_ref, w_ref, v_ref, c_ref, uhat_ref):
    """One batch element.

    x_ref:    (1, pv, P)        input primary capsules, transposed (prim_vec on sublanes)
    w_ref:    (pv, L, lv, P)    transformation matrices, transposed (resident across grid)
    v_ref:    (1, L, lv)        output latent capsules
    c_ref:    (1, L, P)         output final coupling coefficients (for T-score)
    uhat_ref: (L, lv, P) f32    VMEM scratch holding u_hat for this batch element
    """
    pv, L, lv, P = w_ref.shape

    # ---- u_hat[l, v, p] = sum_q W[l, p, v, q] * x[p, q]  (VPU multiply-accumulate) ----
    acc = jnp.zeros((L, lv, P), jnp.float32)
    for q in range(pv):                              # pv is small; static unroll
        xq = x_ref[0, q].reshape(1, 1, P)            # (1, 1, P) broadcast over (L, lv)
        acc = acc + w_ref[q] * xq
    uhat_ref[...] = acc

    # ---- dynamic routing ----
    b_ij = jnp.zeros((L, P), jnp.float32)
    c_ij = jnp.zeros((L, P), jnp.float32)
    v_j = jnp.zeros((L, lv), jnp.float32)
    for it in range(NUM_ROUTING_ITERATIONS):
        # softmax over the latent-capsule axis (torch: F.softmax(b_ij, dim=1))
        b_max = jnp.max(b_ij, axis=0, keepdims=True)
        e = jnp.exp(b_ij - b_max)
        c_ij = e / jnp.sum(e, axis=0, keepdims=True)

        u_hat = uhat_ref[...]                        # (L, lv, P)
        # s_j[l, v] = sum_p c_ij[l, p] * u_hat[l, v, p]
        s_j = jnp.sum(c_ij[:, None, :] * u_hat, axis=-1)      # (L, lv)

        # squash
        sq = jnp.sum(s_j * s_j, axis=-1, keepdims=True)        # (L, 1)
        v_j = s_j * sq / ((1.0 + sq) * jnp.sqrt(sq))

        if it != NUM_ROUTING_ITERATIONS - 1:
            # b_ij[l, p] += sum_v v_j[l, v] * u_hat[l, v, p]
            b_ij = b_ij + jnp.sum(v_j[:, :, None] * u_hat, axis=1)   # (L, P)

    v_ref[0] = v_j
    c_ref[0] = c_ij


def _routing_pallas(x, W):
    """x: (B, P, pv), W: (L, P, lv, pv)  ->  v_j (B, L, lv), c_ij (B, L, P)."""
    B, P, pv = x.shape
    L, P2, lv, pv2 = W.shape
    assert P == P2 and pv == pv2

    x_t = jnp.transpose(x, (0, 2, 1))                 # (B, pv, P)   P on lanes
    w_t = jnp.transpose(W, (3, 0, 2, 1))              # (pv, L, lv, P)

    v_j, c_ij = pl.pallas_call(
        _latent_caps_kernel,
        out_shape=(jax.ShapeDtypeStruct((B, L, lv), jnp.float32),
                   jax.ShapeDtypeStruct((B, L, P), jnp.float32)),
        grid=(B,),
        in_specs=[
            pl.BlockSpec((1, pv, P), lambda b: (b, 0, 0)),
            # Constant block index -> W is DMA'd once and stays VMEM-resident.
            pl.BlockSpec((pv, L, lv, P), lambda b: (0, 0, 0, 0)),
        ],
        out_specs=(
            pl.BlockSpec((1, L, lv), lambda b: (b, 0, 0)),
            pl.BlockSpec((1, L, P), lambda b: (b, 0, 0)),
        ),
        scratch_shapes=[pltpu.VMEM((L, lv, P), jnp.float32)],
        compiler_params=pltpu.CompilerParams(
            dimension_semantics=("parallel",)),
    )(x_t, w_t)
    return v_j, c_ij


def _t_score(c_ij):
    """c_ij: (B, L, P) -> scalar. Entropy of coupling over latent caps."""
    L = c_ij.shape[1]
    eps = 1e-12
    entropy = -jnp.sum(c_ij * jnp.log(c_ij + eps), axis=1)       # (B, P)
    return jnp.mean(1.0 - entropy / jnp.log(float(L)))


def _d_score(v_j):
    """v_j: (B, L, lv) -> scalar. Max over caps of batch-std of activation norm."""
    v_norm = jnp.sqrt(jnp.sum(v_j * v_j, axis=-1))               # (B, L)
    return jnp.max(jnp.std(v_norm, axis=0))                      # population std (ddof=0)


def latent_caps_layer_forward(x, W):
    """Full LatentCapsLayer.forward: returns (v_j, T, D)."""
    v_j, c_ij = _routing_pallas(x, W)
    return v_j, _t_score(c_ij), _d_score(v_j)


def _reference(x, W):
    """Pure-JAX reference of the same forward math (for a self-consistency check)."""
    B, P, pv = x.shape
    L = W.shape[0]
    # u_hat[b,l,p,v] = sum_q W[l,p,v,q] * x[b,p,q]
    u_hat = jnp.sum(W[None] * x[:, None, :, None, :], axis=-1)   # (B, L, P, lv)
    b_ij = jnp.zeros((B, L, P), jnp.float32)
    c_ij = None
    v_j = None
    for it in range(NUM_ROUTING_ITERATIONS):
        c_ij = jax.nn.softmax(b_ij, axis=1)
        s_j = jnp.sum(c_ij[..., None] * u_hat, axis=2)           # (B, L, lv)
        sq = jnp.sum(s_j * s_j, axis=-1, keepdims=True)
        v_j = s_j * sq / ((1.0 + sq) * jnp.sqrt(sq))
        if it != NUM_ROUTING_ITERATIONS - 1:
            b_ij = b_ij + jnp.sum(v_j[:, :, None, :] * u_hat, axis=-1)
    return v_j, c_ij


if __name__ == "__main__":
    # Small shapes consistent with the module (defaults are 64 / 1024 / 16 / 64).
    B = 2
    latent_caps_size = 16     # L
    prim_caps_size = 128      # P   (multiple of 128 -> lane-dense)
    prim_vec_size = 8         # pv
    latent_vec_size = 16      # lv

    key = jax.random.PRNGKey(0)
    k_w, k_x = jax.random.split(key)
    W = 0.01 * jax.random.normal(
        k_w, (latent_caps_size, prim_caps_size, latent_vec_size, prim_vec_size),
        jnp.float32)
    x = jax.random.normal(k_x, (B, prim_caps_size, prim_vec_size), jnp.float32)

    v_j, c_ij = _routing_pallas(x, W)
    T = _t_score(c_ij)
    D = _d_score(v_j)
    jax.block_until_ready((v_j, c_ij, T, D))

    assert v_j.shape == (B, latent_caps_size, latent_vec_size), v_j.shape
    assert c_ij.shape == (B, latent_caps_size, prim_caps_size), c_ij.shape
    assert bool(jnp.all(jnp.isfinite(v_j)))
    assert bool(jnp.isfinite(T)) and bool(jnp.isfinite(D))

    # Self-consistency against the pure-JAX reference of the same math.
    v_ref, c_ref = _reference(x, W)
    assert bool(jnp.allclose(v_j, v_ref, atol=1e-5, rtol=1e-3))
    assert bool(jnp.allclose(c_ij, c_ref, atol=1e-5, rtol=1e-3))

    print("KERNEL_OK")
</pallas_src>

<mosaic_0001>
module attributes {stable_mosaic.version = 11 : i64} {
  func.func @_latent_caps_kernel(%arg0: i32, %arg1: memref<1x8x128xf32, #tpu.memory_space<vmem>>, %arg2: memref<8x16x16x128xf32, #tpu.memory_space<vmem>>, %arg3: memref<1x16x16xf32, #tpu.memory_space<vmem>>, %arg4: memref<1x16x128xf32, #tpu.memory_space<vmem>>, %arg5: memref<16x16x128xf32, #tpu.memory_space<vmem>>) attributes {dimension_semantics = [#tpu.dimension_semantics<parallel>], iteration_bounds = array<i64: 2>, scalar_prefetch = 0 : i64, scratch_operands = 1 : i64, tpu.core_type = #tpu.core_type<tc>, window_params = [{transform_indices = @transform_0, window_bounds = array<i64: 1, 8, 128>}, {pipeline_mode = #tpu.pipeline_mode<synchronous>, transform_indices = @transform_1, window_bounds = array<i64: 8, 16, 16, 128>}, {transform_indices = @transform_2, window_bounds = array<i64: 1, 16, 16>}, {transform_indices = @transform_3, window_bounds = array<i64: 1, 16, 128>}]} {
    %cst = arith.constant 0.000000e+00 : f32
    %0 = vector.broadcast %cst : f32 to vector<16x16x128xf32>
    %c0 = arith.constant 0 : index
    %c0_0 = arith.constant 0 : index
    %c0_1 = arith.constant 0 : index
    %1 = vector.load %arg1[%c0, %c0_0, %c0_1] : memref<1x8x128xf32, #tpu.memory_space<vmem>>, vector<1x1x128xf32>
    %2 = vector.shape_cast %1 : vector<1x1x128xf32> to vector<128xf32>
    %3 = vector.shape_cast %2 : vector<128xf32> to vector<1x1x128xf32>
    %c0_2 = arith.constant 0 : index
    %c0_3 = arith.constant 0 : index
    %c0_4 = arith.constant 0 : index
    %c0_5 = arith.constant 0 : index
    %4 = vector.load %arg2[%c0_2, %c0_3, %c0_4, %c0_5] : memref<8x16x16x128xf32, #tpu.memory_space<vmem>>, vector<1x16x16x128xf32>
    %5 = vector.shape_cast %4 : vector<1x16x16x128xf32> to vector<16x16x128xf32>
    %6 = vector.broadcast %3 : vector<1x1x128xf32> to vector<16x16x128xf32>
    %7 = arith.mulf %5, %6 : vector<16x16x128xf32>
    %8 = arith.addf %0, %7 : vector<16x16x128xf32>
    %c0_6 = arith.constant 0 : index
    %c1 = arith.constant 1 : index
    %c0_7 = arith.constant 0 : index
    %9 = vector.load %arg1[%c0_6, %c1, %c0_7] : memref<1x8x128xf32, #tpu.memory_space<vmem>>, vector<1x1x128xf32>
    %10 = vector.shape_cast %9 : vector<1x1x128xf32> to vector<128xf32>
    %11 = vector.shape_cast %10 : vector<128xf32> to vector<1x1x128xf32>
    %c1_8 = arith.constant 1 : index
    %c0_9 = arith.constant 0 : index
    %c0_10 = arith.constant 0 : index
    %c0_11 = arith.constant 0 : index
    %12 = vector.load %arg2[%c1_8, %c0_9, %c0_10, %c0_11] : memref<8x16x16x128xf32, #tpu.memory_space<vmem>>, vector<1x16x16x128xf32>
    %13 = vector.shape_cast %12 : vector<1x16x16x128xf32> to vector<16x16x128xf32>
    %14 = vector.broadcast %11 : vector<1x1x128xf32> to vector<16x16x128xf32>
    %15 = arith.mulf %13, %14 : vector<16x16x128xf32>
    %16 = arith.addf %8, %15 : vector<16x16x128xf32>
    %c0_12 = arith.constant 0 : index
    %c2 = arith.constant 2 : index
    %c0_13 = arith.constant 0 : index
    %17 = vector.load %arg1[%c0_12, %c2, %c0_13] : memref<1x8x128xf32, #tpu.memory_space<vmem>>, vector<1x1x128xf32>
    %18 = vector.shape_cast %17 : vector<1x1x128xf32> to vector<128xf32>
    %19 = vector.shape_cast %18 : vector<128xf32> to vector<1x1x128xf32>
    %c2_14 = arith.constant 2 : index
    %c0_15 = arith.constant 0 : index
    %c0_16 = arith.constant 0 : index
    %c0_17 = arith.constant 0 : index
    %20 = vector.load %arg2[%c2_14, %c0_15, %c0_16, %c0_17] : memref<8x16x16x128xf32, #tpu.memory_space<vmem>>, vector<1x16x16x128xf32>
    %21 = vector.shape_cast %20 : vector<1x16x16x128xf32> to vector<16x16x128xf32>
    %22 = vector.broadcast %19 : vector<1x1x128xf32> to vector<16x16x128xf32>
    %23 = arith.mulf %21, %22 : vector<16x16x128xf32>
    %24 = arith.addf %16, %23 : vector<16x16x128xf32>
    %c0_18 = arith.constant 0 : index
    %c3 = arith.constant 3 : index
    %c0_19 = arith.constant 0 : index
    %25 = vector.load %arg1[%c0_18, %c3, %c0_19] : memref<1x8x128xf32, #tpu.memory_space<vmem>>, vector<1x1x128xf32>
    %26 = vector.shape_cast %25 : vector<1x1x128xf32> to vector<128xf32>
    %27 = vector.shape_cast %26 : vector<128xf32> to vector<1x1x128xf32>
    %c3_20 = arith.constant 3 : index
    %c0_21 = arith.constant 0 : index
    %c0_22 = arith.constant 0 : index
    %c0_23 = arith.constant 0 : index
    %28 = vector.load %arg2[%c3_20, %c0_21, %c0_22, %c0_23] : memref<8x16x16x128xf32, #tpu.memory_space<vmem>>, vector<1x16x16x128xf32>
    %29 = vector.shape_cast %28 : vector<1x16x16x128xf32> to vector<16x16x128xf32>
    %30 = vector.broadcast %27 : vector<1x1x128xf32> to vector<16x16x128xf32>
    %31 = arith.mulf %29, %30 : vector<16x16x128xf32>
    %32 = arith.addf %24, %31 : vector<16x16x128xf32>
    %c0_24 = arith.constant 0 : index
    %c4 = arith.constant 4 : index
    %c0_25 = arith.constant 0 : index
    %33 = vector.load %arg1[%c0_24, %c4, %c0_25] : memref<1x8x128xf32, #tpu.memory_space<vmem>>, vector<1x1x128xf32>
    %34 = vector.shape_cast %33 : vector<1x1x128xf32> to vector<128xf32>
    %35 = vector.shape_cast %34 : vector<128xf32> to vector<1x1x128xf32>
    %c4_26 = arith.constant 4 : index
    %c0_27 = arith.constant 0 : index
    %c0_28 = arith.constant 0 : index
    %c0_29 = arith.constant 0 : index
    %36 = vector.load %arg2[%c4_26, %c0_27, %c0_28, %c0_29] : memref<8x16x16x128xf32, #tpu.memory_space<vmem>>, vector<1x16x16x128xf32>
    %37 = vector.shape_cast %36 : vector<1x16x16x128xf32> to vector<16x16x128xf32>
    %38 = vector.broadcast %35 : vector<1x1x128xf32> to vector<16x16x128xf32>
    %39 = arith.mulf %37, %38 : vector<16x16x128xf32>
    %40 = arith.addf %32, %39 : vector<16x16x128xf32>
    %c0_30 = arith.constant 0 : index
    %c5 = arith.constant 5 : index
    %c0_31 = arith.constant 0 : index
    %41 = vector.load %arg1[%c0_30, %c5, %c0_31] : memref<1x8x128xf32, #tpu.memory_space<vmem>>, vector<1x1x128xf32>
    %42 = vector.shape_cast %41 : vector<1x1x128xf32> to vector<128xf32>
    %43 = vector.shape_cast %42 : vector<128xf32> to vector<1x1x128xf32>
    %c5_32 = arith.constant 5 : index
    %c0_33 = arith.constant 0 : index
    %c0_34 = arith.constant 0 : index
    %c0_35 = arith.constant 0 : index
    %44 = vector.load %arg2[%c5_32, %c0_33, %c0_34, %c0_35] : memref<8x16x16x128xf32, #tpu.memory_space<vmem>>, vector<1x16x16x128xf32>
    %45 = vector.shape_cast %44 : vector<1x16x16x128xf32> to vector<16x16x128xf32>
    %46 = vector.broadcast %43 : vector<1x1x128xf32> to vector<16x16x128xf32>
    %47 = arith.mulf %45, %46 : vector<16x16x128xf32>
    %48 = arith.addf %40, %47 : vector<16x16x128xf32>
    %c0_36 = arith.constant 0 : index
    %c6 = arith.constant 6 : index
    %c0_37 = arith.constant 0 : index
    %49 = vector.load %arg1[%c0_36, %c6, %c0_37] : memref<1x8x128xf32, #tpu.memory_space<vmem>>, vector<1x1x128xf32>
    %50 = vector.shape_cast %49 : vector<1x1x128xf32> to vector<128xf32>
    %51 = vector.shape_cast %50 : vector<128xf32> to vector<1x1x128xf32>
    %c6_38 = arith.constant 6 : index
    %c0_39 = arith.constant 0 : index
    %c0_40 = arith.constant 0 : index
    %c0_41 = arith.constant 0 : index
    %52 = vector.load %arg2[%c6_38, %c0_39, %c0_40, %c0_41] : memref<8x16x16x128xf32, #tpu.memory_space<vmem>>, vector<1x16x16x128xf32>
    %53 = vector.shape_cast %52 : vector<1x16x16x128xf32> to vector<16x16x128xf32>
    %54 = vector.broadcast %51 : vector<1x1x128xf32> to vector<16x16x128xf32>
    %55 = arith.mulf %53, %54 : vector<16x16x128xf32>
    %56 = arith.addf %48, %55 : vector<16x16x128xf32>
    %c0_42 = arith.constant 0 : index
    %c7 = arith.constant 7 : index
    %c0_43 = arith.constant 0 : index
    %57 = vector.load %arg1[%c0_42, %c7, %c0_43] : memref<1x8x128xf32, #tpu.memory_space<vmem>>, vector<1x1x128xf32>
    %58 = vector.shape_cast %57 : vector<1x1x128xf32> to vector<128xf32>
    %59 = vector.shape_cast %58 : vector<128xf32> to vector<1x1x128xf32>
    %c7_44 = arith.constant 7 : index
    %c0_45 = arith.constant 0 : index
    %c0_46 = arith.constant 0 : index
    %c0_47 = arith.constant 0 : index
    %60 = vector.load %arg2[%c7_44, %c0_45, %c0_46, %c0_47] : memref<8x16x16x128xf32, #tpu.memory_space<vmem>>, vector<1x16x16x128xf32>
    %61 = vector.shape_cast %60 : vector<1x16x16x128xf32> to vector<16x16x128xf32>
    %62 = vector.broadcast %59 : vector<1x1x128xf32> to vector<16x16x128xf32>
    %63 = arith.mulf %61, %62 : vector<16x16x128xf32>
    %64 = arith.addf %56, %63 : vector<16x16x128xf32>
    %c0_48 = arith.constant 0 : index
    %c0_49 = arith.constant 0 : index
    %c0_50 = arith.constant 0 : index
    %65 = vector.load %arg5[%c0_48, %c0_49, %c0_50] : memref<16x16x128xf32, #tpu.memory_space<vmem>>, vector<16x16x128xf32>
    tpu.vector_store %arg5[%c0_48, %c0_49, %c0_50], %64 {strides = array<i32>} : memref<16x16x128xf32, #tpu.memory_space<vmem>>, vector<16x16x128xf32>,
    %cst_51 = arith.constant 0.000000e+00 : f32
    %66 = vector.broadcast %cst_51 : f32 to vector<16x128xf32>
    %cst_52 = arith.constant dense<0xFF800000> : vector<128xf32>
    %67 = vector.multi_reduction <maximumf>, %66, %cst_52 [0] : vector<16x128xf32> to vector<128xf32>
    %68 = vector.shape_cast %67 : vector<128xf32> to vector<1x128xf32>
    %69 = vector.broadcast %68 : vector<1x128xf32> to vector<16x128xf32>
    %70 = arith.subf %66, %69 : vector<16x128xf32>
    %71 = math.exp %70 : vector<16x128xf32>
    %cst_53 = arith.constant dense<0.000000e+00> : vector<128xf32>
    %72 = vector.multi_reduction <add>, %71, %cst_53 [0] : vector<16x128xf32> to vector<128xf32>
    %73 = vector.shape_cast %72 : vector<128xf32> to vector<1x128xf32>
    %74 = vector.broadcast %73 : vector<1x128xf32> to vector<16x128xf32>
    %75 = arith.divf %71, %74 : vector<16x128xf32>
    %c0_54 = arith.constant 0 : index
    %c0_55 = arith.constant 0 : index
    %c0_56 = arith.constant 0 : index
    %76 = vector.load %arg5[%c0_54, %c0_55, %c0_56] : memref<16x16x128xf32, #tpu.memory_space<vmem>>, vector<16x16x128xf32>
    %77 = vector.shape_cast %75 : vector<16x128xf32> to vector<16x1x128xf32>
    %78 = vector.broadcast %77 : vector<16x1x128xf32> to vector<16x16x128xf32>
    %79 = arith.mulf %78, %76 : vector<16x16x128xf32>
    %cst_57 = arith.constant dense<0.000000e+00> : vector<16x16xf32>
    %80 = vector.multi_reduction <add>, %79, %cst_57 [2] : vector<16x16x128xf32> to vector<16x16xf32>
    %81 = arith.mulf %80, %80 : vector<16x16xf32>
    %cst_58 = arith.constant dense<0.000000e+00> : vector<16xf32>
    %82 = vector.multi_reduction <add>, %81, %cst_58 [1] : vector<16x16xf32> to vector<16xf32>
    %83 = vector.shape_cast %82 : vector<16xf32> to vector<16x1xf32>
    %84 = vector.broadcast %83 : vector<16x1xf32> to vector<16x16xf32>
    %85 = arith.mulf %80, %84 : vector<16x16xf32>
    %cst_59 = arith.constant 1.000000e+00 : f32
    %86 = vector.broadcast %cst_59 : f32 to vector<16x1xf32>
    %87 = arith.addf %86, %83 : vector<16x1xf32>
    %88 = math.sqrt %83 : vector<16x1xf32>
    %89 = arith.mulf %87, %88 : vector<16x1xf32>
    %90 = vector.broadcast %89 : vector<16x1xf32> to vector<16x16xf32>
    %91 = arith.divf %85, %90 : vector<16x16xf32>
    %92 = vector.shape_cast %91 : vector<16x16xf32> to vector<16x16x1xf32>
    %93 = vector.broadcast %92 : vector<16x16x1xf32> to vector<16x16x128xf32>
    %94 = arith.mulf %93, %76 : vector<16x16x128xf32>
    %cst_60 = arith.constant dense<0.000000e+00> : vector<16x128xf32>
    %95 = vector.multi_reduction <add>, %94, %cst_60 [1] : vector<16x16x128xf32> to vector<16x128xf32>
    %96 = arith.addf %66, %95 : vector<16x128xf32>
    %cst_61 = arith.constant dense<0xFF800000> : vector<128xf32>
    %97 = vector.multi_reduction <maximumf>, %96, %cst_61 [0] : vector<16x128xf32> to vector<128xf32>
    %98 = vector.shape_cast %97 : vector<128xf32> to vector<1x128xf32>
    %99 = vector.broadcast %98 : vector<1x128xf32> to vector<16x128xf32>
    %100 = arith.subf %96, %99 : vector<16x128xf32>
    %101 = math.exp %100 : vector<16x128xf32>
    %cst_62 = arith.constant dense<0.000000e+00> : vector<128xf32>
    %102 = vector.multi_reduction <add>, %101, %cst_62 [0] : vector<16x128xf32> to vector<128xf32>
    %103 = vector.shape_cast %102 : vector<128xf32> to vector<1x128xf32>
    %104 = vector.broadcast %103 : vector<1x128xf32> to vector<16x128xf32>
    %105 = arith.divf %101, %104 : vector<16x128xf32>
    %c0_63 = arith.constant 0 : index
    %c0_64 = arith.constant 0 : index
    %c0_65 = arith.constant 0 : index
    %106 = vector.load %arg5[%c0_63, %c0_64, %c0_65] : memref<16x16x128xf32, #tpu.memory_space<vmem>>, vector<16x16x128xf32>
    %107 = vector.shape_cast %105 : vector<16x128xf32> to vector<16x1x128xf32>
    %108 = vector.broadcast %107 : vector<16x1x128xf32> to vector<16x16x128xf32>
    %109 = arith.mulf %108, %106 : vector<16x16x128xf32>
    %cst_66 = arith.constant dense<0.000000e+00> : vector<16x16xf32>
    %110 = vector.multi_reduction <add>, %109, %cst_66 [2] : vector<16x16x128xf32> to vector<16x16xf32>
    %111 = arith.mulf %110, %110 : vector<16x16xf32>
    %cst_67 = arith.constant dense<0.000000e+00> : vector<16xf32>
    %112 = vector.multi_reduction <add>, %111, %cst_67 [1] : vector<16x16xf32> to vector<16xf32>
    %113 = vector.shape_cast %112 : vector<16xf32> to vector<16x1xf32>
    %114 = vector.broadcast %113 : vector<16x1xf32> to vector<16x16xf32>
    %115 = arith.mulf %110, %114 : vector<16x16xf32>
    %cst_68 = arith.constant 1.000000e+00 : f32
    %116 = vector.broadcast %cst_68 : f32 to vector<16x1xf32>
    %117 = arith.addf %116, %113 : vector<16x1xf32>
    %118 = math.sqrt %113 : vector<16x1xf32>
    %119 = arith.mulf %117, %118 : vector<16x1xf32>
    %120 = vector.broadcast %119 : vector<16x1xf32> to vector<16x16xf32>
    %121 = arith.divf %115, %120 : vector<16x16xf32>
    %122 = vector.shape_cast %121 : vector<16x16xf32> to vector<16x16x1xf32>
    %123 = vector.broadcast %122 : vector<16x16x1xf32> to vector<16x16x128xf32>
    %124 = arith.mulf %123, %106 : vector<16x16x128xf32>
    %cst_69 = arith.constant dense<0.000000e+00> : vector<16x128xf32>
    %125 = vector.multi_reduction <add>, %124, %cst_69 [1] : vector<16x16x128xf32> to vector<16x128xf32>
    %126 = arith.addf %96, %125 : vector<16x128xf32>
    %cst_70 = arith.constant dense<0xFF800000> : vector<128xf32>
    %127 = vector.multi_reduction <maximumf>, %126, %cst_70 [0] : vector<16x128xf32> to vector<128xf32>
    %128 = vector.shape_cast %127 : vector<128xf32> to vector<1x128xf32>
    %129 = vector.broadcast %128 : vector<1x128xf32> to vector<16x128xf32>
    %130 = arith.subf %126, %129 : vector<16x128xf32>
    %131 = math.exp %130 : vector<16x128xf32>
    %cst_71 = arith.constant dense<0.000000e+00> : vector<128xf32>
    %132 = vector.multi_reduction <add>, %131, %cst_71 [0] : vector<16x128xf32> to vector<128xf32>
    %133 = vector.shape_cast %132 : vector<128xf32> to vector<1x128xf32>
    %134 = vector.broadcast %133 : vector<1x128xf32> to vector<16x128xf32>
    %135 = arith.divf %131, %134 : vector<16x128xf32>
    %c0_72 = arith.constant 0 : index
    %c0_73 = arith.constant 0 : index
    %c0_74 = arith.constant 0 : index
    %136 = vector.load %arg5[%c0_72, %c0_73, %c0_74] : memref<16x16x128xf32, #tpu.memory_space<vmem>>, vector<16x16x128xf32>
    %137 = vector.shape_cast %135 : vector<16x128xf32> to vector<16x1x128xf32>
    %138 = vector.broadcast %137 : vector<16x1x128xf32> to vector<16x16x128xf32>
    %139 = arith.mulf %138, %136 : vector<16x16x128xf32>
    %cst_75 = arith.constant dense<0.000000e+00> : vector<16x16xf32>
    %140 = vector.multi_reduction <add>, %139, %cst_75 [2] : vector<16x16x128xf32> to vector<16x16xf32>
    %141 = arith.mulf %140, %140 : vector<16x16xf32>
    %cst_76 = arith.constant dense<0.000000e+00> : vector<16xf32>
    %142 = vector.multi_reduction <add>, %141, %cst_76 [1] : vector<16x16xf32> to vector<16xf32>
    %143 = vector.shape_cast %142 : vector<16xf32> to vector<16x1xf32>
    %144 = vector.broadcast %143 : vector<16x1xf32> to vector<16x16xf32>
    %145 = arith.mulf %140, %144 : vector<16x16xf32>
    %cst_77 = arith.constant 1.000000e+00 : f32
    %146 = vector.broadcast %cst_77 : f32 to vector<16x1xf32>
    %147 = arith.addf %146, %143 : vector<16x1xf32>
    %148 = math.sqrt %143 : vector<16x1xf32>
    %149 = arith.mulf %147, %148 : vector<16x1xf32>
    %150 = vector.broadcast %149 : vector<16x1xf32> to vector<16x16xf32>
    %151 = arith.divf %145, %150 : vector<16x16xf32>
    %c0_78 = arith.constant 0 : index
    %c0_79 = arith.constant 0 : index
    %c0_80 = arith.constant 0 : index
    %152 = vector.load %arg3[%c0_78, %c0_79, %c0_80] : memref<1x16x16xf32, #tpu.memory_space<vmem>>, vector<1x16x16xf32>
    %153 = vector.shape_cast %152 : vector<1x16x16xf32> to vector<16x16xf32>
    %154 = vector.shape_cast %151 : vector<16x16xf32> to vector<1x16x16xf32>
    tpu.vector_store %arg3[%c0_78, %c0_79, %c0_80], %154 {strides = array<i32>} : memref<1x16x16xf32, #tpu.memory_space<vmem>>, vector<1x16x16xf32>,
    %c0_81 = arith.constant 0 : index
    %c0_82 = arith.constant 0 : index
    %c0_83 = arith.constant 0 : index
    %155 = vector.load %arg4[%c0_81, %c0_82, %c0_83] : memref<1x16x128xf32, #tpu.memory_space<vmem>>, vector<1x16x128xf32>
    %156 = vector.shape_cast %155 : vector<1x16x128xf32> to vector<16x128xf32>
    %157 = vector.shape_cast %135 : vector<16x128xf32> to vector<1x16x128xf32>
    tpu.vector_store %arg4[%c0_81, %c0_82, %c0_83], %157 {strides = array<i32>} : memref<1x16x128xf32, #tpu.memory_space<vmem>>, vector<1x16x128xf32>,
    return
  }
  func.func @transform_0(%arg0: i32) -> (i32, i32, i32) {
    %c0_i32 = arith.constant 0 : i32
    %c0_i32_0 = arith.constant 0 : i32
    %c0_i32_1 = arith.constant 0 : i32
    return %arg0, %c0_i32, %c0_i32_0 : i32, i32, i32
  }
  func.func @transform_1(%arg0: i32) -> (i32, i32, i32, i32) {
    %c0_i32 = arith.constant 0 : i32
    %c0_i32_0 = arith.constant 0 : i32
    %c0_i32_1 = arith.constant 0 : i32
    %c0_i32_2 = arith.constant 0 : i32
    %c0_i32_3 = arith.constant 0 : i32
    return %c0_i32, %c0_i32_0, %c0_i32_1, %c0_i32_2 : i32, i32, i32, i32
  }
  func.func @transform_2(%arg0: i32) -> (i32, i32, i32) {
    %c0_i32 = arith.constant 0 : i32
    %c0_i32_0 = arith.constant 0 : i32
    %c0_i32_1 = arith.constant 0 : i32
    return %arg0, %c0_i32, %c0_i32_0 : i32, i32, i32
  }
  func.func @transform_3(%arg0: i32) -> (i32, i32, i32) {
    %c0_i32 = arith.constant 0 : i32
    %c0_i32_0 = arith.constant 0 : i32
    %c0_i32_1 = arith.constant 0 : i32
    return %arg0, %c0_i32, %c0_i32_0 : i32, i32, i32
  }
}

</mosaic_0001>

<llo_original>
// kernel: tpu_custom_call.1
$region0: #{tpu_custom_call.1}
  #allocation0 [shape = 'u32[]', space=smem, size = 0x4, offset = 0x4, fixed_abs, tag = 'smem constant byte address 0x4 - core index']
  #allocation1 [shape = 'u32[144,128]{1,0:T(1,128)}', space=vmem, size = 0x12000, scoped, tag = 'internal scratch']
  #allocation2 [shape = 'f32[16,16,128]{2,1,0:T(8,128)}', space=vmem, size = 0x20000, scoped, tag = 'scratch operand']
  %s0 = inlined_call_operand.hbm [shape: f32[2,8,128], index: 0, kind: input, shape index: {}]
  %s1 = inlined_call_operand.hbm [shape: f32[8,16,16,128], index: 1, kind: input, shape index: {}]
  %s2 = inlined_call_operand.hbm [shape: f32[2,16,16], index: 2, kind: output, shape index: {0}]
  %s3 = inlined_call_operand.hbm [shape: f32[2,16,128], index: 3, kind: output, shape index: {1}]
  %4 = xla_tuple %s2, %s3
  %s5 = sld [smem:[#allocation0]]
  $region57: #{tpu_custom_call.1} parent=0
    _
  %s7 = ssub.s32 1, %s5
  %s8 = scalar_select 0, %s7, %s5
  $region1: #{tpu_custom_call.1} parent=0
    #allocation3 [shape = 'u8[8192]{0}', space=vmem, size = 0x2000, scoped, tag = 'input window, operand 0']
    #allocation4 [shape = 's32[2]{0}', space=sflag, size = 0x8, scoped, tag = 'scoped memory for tpu_custom_call.1']
    #allocation5 [shape = 's32[2]{0}', space=sflag, size = 0x8, scoped, tag = 'scoped memory for tpu_custom_call.1']
    #allocation6 [shape = 'u8[1048576]{0}', space=vmem, size = 0x100000, scoped, tag = 'input window, operand 1, single buffered']
    #allocation7 [shape = 's32[1]{0}', space=sflag, size = 0x4, scoped, tag = 'scoped memory for tpu_custom_call.1']
    #allocation8 [shape = 'u8[16384]{0}', space=vmem, size = 0x4000, scoped, tag = 'output window, operand 0']
    #allocation9 [shape = 'u8[16384]{0}', space=vmem, size = 0x4000, scoped, tag = 'output window, operand 1']
    #allocation10 [shape = 's32[2]{0}', space=sflag, size = 0x8, scoped, tag = 'scoped memory for tpu_custom_call.1']
    %9 = vsyncpa [#allocation4], 0
    %s10 = scalar_lea.sflag [#allocation4], 1
    %11 = vsyncpa %s10, 0
    %12 = vsyncpa [#allocation7], 0
    %13 = vsyncpa [#allocation5], 0
    %s14 = scalar_lea.sflag [#allocation5], 1
    %15 = vsyncpa %s14, 0
    %16 = vsyncpa [#allocation10], 0
    %s17 = scalar_lea.sflag [#allocation10], 1
    %18 = vsyncpa %s17, 0
    loop: start=0, step=1, limit=4
    $region2: #{tpu_custom_call.1} parent=1 // loop_pre_header
      _
    $region3: #{tpu_custom_call.1} parent=1 // loop_header
      %s20 = sphi 0, %s24
      %p21 = scmp.ge.s32.totalorder %s20, 4
      %s30 = sphi 0, %s32
      %s33 = sphi 0, %s30
      %s34 = sphi 0, %s33
      %s50 = sphi 0, %s34
      %s54 = sphi 0, %s54
      %s56 = sphi 0, %s54
      %s57 = sphi 0, %s56
      %s71 = sphi 0, %s57
      %s77 = sphi 0, %s79
      %s80 = sphi 0, %s77
      %s81 = sphi 0, %s80
      %s97 = sphi 0, %s81
      %s103 = sphi 0, %s105
      %s106 = sphi 0, %s103
      %s107 = sphi 0, %s106
      %s123 = sphi 0, %s107
    $region4: #{tpu_custom_call.1} parent=1 // loop_header_branch
      %23 = sbr.rel (%p21) target = $region8
    $region5: #{tpu_custom_call.1} parent=1 // loop_body
      %s25 = ssub.s32 %s20, 1
      %s26 = ssub.s32 %s20, 2
      %s27 = sadd.s32 %s20, 1
      %s28 = ssub.s32 %s20, %s27
      %p29 = scmp.eq.s32.totalorder %s28, 0
      %s31 = sadd.s32 %s30, 1
      %s32 = scalar_select %p29, %s30, %s31
      %p35 = pneg %p29
      %p36 = scmp.eq.s32.totalorder %s20, 1
      %p37 = por %p35, %p36
      %p38 = scmp.ne.s32.totalorder %s30, %s33
      %p39 = scmp.eq.s32.totalorder %s20, 0
      %p40 = por %p38, %p39
      %p41 = scmp.ne.s32.totalorder %s30, %s33
      %p42 = scmp.eq.s32.totalorder %s25, 1
      %p43 = por %p41, %p42
      %p44 = scmp.ne.s32.totalorder %s33, %s34
      %p45 = scmp.eq.s32.totalorder %s25, 0
      %p46 = por %p44, %p45
      %p47 = scmp.ne.s32.totalorder %s33, %s34
      %p48 = scmp.eq.s32.totalorder %s26, 1
      %p49 = por %p47, %p48
      %p51 = scmp.ne.s32.totalorder %s34, %s50
      %p52 = scmp.eq.s32.totalorder %s26, 0
      %p53 = por %p51, %p52
      %s55 = sadd.s32 %s54, 1
      %p58 = scmp.eq.s32.totalorder %s20, 1
      %p59 = scmp.ne.s32.totalorder %s54, %s56
      %p60 = scmp.eq.s32.totalorder %s20, 0
      %p61 = por %p59, %p60
      %p62 = scmp.ne.s32.totalorder %s54, %s56
      %p63 = scmp.eq.s32.totalorder %s25, 1
      %p64 = por %p62, %p63
      %p65 = scmp.ne.s32.totalorder %s56, %s57
      %p66 = scmp.eq.s32.totalorder %s25, 0
      %p67 = por %p65, %p66
      %p68 = scmp.ne.s32.totalorder %s56, %s57
      %p69 = scmp.eq.s32.totalorder %s26, 1
      %p70 = por %p68, %p69
      %p72 = scmp.ne.s32.totalorder %s57, %s71
      %p73 = scmp.eq.s32.totalorder %s26, 0
      %p74 = por %p72, %p73
      %s75 = ssub.s32 %s20, %s27
      %p76 = scmp.eq.s32.totalorder %s75, 0
      %s78 = sadd.s32 %s77, 1
      %s79 = scalar_select %p76, %s77, %s78
      %p82 = pneg %p76
      %p83 = scmp.eq.s32.totalorder %s20, 1
      %p84 = por %p82, %p83
      %p85 = scmp.ne.s32.totalorder %s77, %s80
      %p86 = scmp.eq.s32.totalorder %s20, 0
      %p87 = por %p85, %p86
      %p88 = scmp.ne.s32.totalorder %s77, %s80
      %p89 = scmp.eq.s32.totalorder %s25, 1
      %p90 = por %p88, %p89
      %p91 = scmp.ne.s32.totalorder %s80, %s81
      %p92 = scmp.eq.s32.totalorder %s25, 0
      %p93 = por %p91, %p92
      %p94 = scmp.ne.s32.totalorder %s80, %s81
      %p95 = scmp.eq.s32.totalorder %s26, 1
      %p96 = por %p94, %p95
      %p98 = scmp.ne.s32.totalorder %s81, %s97
      %p99 = scmp.eq.s32.totalorder %s26, 0
      %p100 = por %p98, %p99
      %s101 = ssub.s32 %s20, %s27
      %p102 = scmp.eq.s32.totalorder %s101, 0
      %s104 = sadd.s32 %s103, 1
      %s105 = scalar_select %p102, %s103, %s104
      %p108 = pneg %p102
      %p109 = scmp.eq.s32.totalorder %s20, 1
      %p110 = por %p108, %p109
      %p111 = scmp.ne.s32.totalorder %s103, %s106
      %p112 = scmp.eq.s32.totalorder %s20, 0
      %p113 = por %p111, %p112
      %p114 = scmp.ne.s32.totalorder %s103, %s106
      %p115 = scmp.eq.s32.totalorder %s25, 1
      %p116 = por %p114, %p115
      %p117 = scmp.ne.s32.totalorder %s106, %s107
      %p118 = scmp.eq.s32.totalorder %s25, 0
      %p119 = por %p117, %p118
      %p120 = scmp.ne.s32.totalorder %s106, %s107
      %p121 = scmp.eq.s32.totalorder %s26, 1
      %p122 = por %p120, %p121
      %p124 = scmp.ne.s32.totalorder %s107, %s123
      %p125 = scmp.eq.s32.totalorder %s26, 0
      %p126 = por %p124, %p125
      %p127 = scmp.le.s32.totalorder 1, %s20
      %p128 = scmp.lt.s32.totalorder %s20, 3
      %p129 = pnand %p127, %p128
      %p130 = pneg %p129
      // Predicated region
      $region9: #{tpu_custom_call.1} parent=5 // pred_check
        _
      $region10: #{tpu_custom_call.1} parent=5 // pred_check_branch
        %132 = sbr.rel (%p129) target = $region12
      $region11: #{tpu_custom_call.1} parent=5 // pred_region
        %s133 = ssub.s32 %s20, 1
        // Predicated region
        $region13: #{tpu_custom_call.1} parent=11 // pred_check
          %p134 = pneg %p67
        $region14: #{tpu_custom_call.1} parent=11 // pred_check_branch
          %136 = sbr.rel (%p134) target = $region16
        $region15: #{tpu_custom_call.1} parent=11 // pred_region
          %s138 = ssub.s32 32768, 32768
          %139 = vsyncadd [#allocation7], %s138
          %s140 = sshll.u32 [#allocation6], 4
          %s141 = int_to_ptr.vmem [resolvable:$true] %s140
          %146 = dma.hbm_to_vmem [thread:$0]  %s1, 32768, %s141, [#allocation7], 128, 128, 8
        $region16: #{tpu_custom_call.1} parent=11 // pred_fallthru
          _
      $region12: #{tpu_custom_call.1} parent=5 // pred_fallthru
        _
      %p147 = scmp.lt.s32.totalorder %s20, 2
      // Predicated region
      $region17: #{tpu_custom_call.1} parent=5 // pred_check
        %p148 = pneg %p147
      $region18: #{tpu_custom_call.1} parent=5 // pred_check_branch
        %150 = sbr.rel (%p148) target = $region20
      $region19: #{tpu_custom_call.1} parent=5 // pred_region
        // Predicated region
        $region21: #{tpu_custom_call.1} parent=19 // pred_check
          %p151 = pneg %p40
        $region22: #{tpu_custom_call.1} parent=19 // pred_check_branch
          %153 = sbr.rel (%p151) target = $region24
        $region23: #{tpu_custom_call.1} parent=19 // pred_region
          %s154 = sand.u32 %s30, 1
          %s155 = scalar_lea.sflag [#allocation4], %s154
          %s156 = sand.u32 %s30, 1
          %s157 = smul.addr %s156, 8
          %s158 = scalar_lea.vmem [#allocation3], %s157
          %s160 = ssub.s32 128, 128
          %161 = vsyncadd %s155, %s160
          %s162 = smul.addr %s20, 128
          %s163 = scalar_lea.hbm %s0, %s162
          %s165 = sshll.u32 %s158, 4
          %s166 = int_to_ptr.vmem [resolvable:$true] %s165
          %168 = dma.hbm_to_vmem [thread:$0]  %s163, 128, %s166, %s155
        $region24: #{tpu_custom_call.1} parent=19 // pred_fallthru
          _
      $region20: #{tpu_custom_call.1} parent=5 // pred_fallthru
        _
      %p169 = scmp.le.s32.totalorder 1, %s20
      %p170 = scmp.lt.s32.totalorder %s20, 3
      %p171 = pnand %p169, %p170
      %p172 = pneg %p171
      // Predicated region
      $region25: #{tpu_custom_call.1} parent=5 // pred_check
        _
      $region26: #{tpu_custom_call.1} parent=5 // pred_check_branch
        %174 = sbr.rel (%p171) target = $region28
      $region27: #{tpu_custom_call.1} parent=5 // pred_region
        %s175 = ssub.s32 %s20, 1
        %s176 = sand.u32 %s33, 1
        %s177 = scalar_lea.sflag [#allocation4], %s176
        %s178 = sand.u32 %s33, 1
        %s179 = smul.addr %s178, 8
        %s180 = scalar_lea.vmem [#allocation3], %s179
        // Predicated region
        $region29: #{tpu_custom_call.1} parent=27 // pred_check
          %p181 = pneg %p46
        $region30: #{tpu_custom_call.1} parent=27 // pred_check_branch
          %183 = sbr.rel (%p181) target = $region32
        $region31: #{tpu_custom_call.1} parent=27 // pred_region
          %184 = dma.done %s177, 128
        $region32: #{tpu_custom_call.1} parent=27 // pred_fallthru
          _
        // Predicated region
        $region33: #{tpu_custom_call.1} parent=27 // pred_check
          %p185 = pneg %p67
        $region34: #{tpu_custom_call.1} parent=27 // pred_check_branch
          %187 = sbr.rel (%p185) target = $region36
        $region35: #{tpu_custom_call.1} parent=27 // pred_region
          %188 = dma.done [#allocation7], 32768
        $region36: #{tpu_custom_call.1} parent=27 // pred_fallthru
          _
        %s189 = sand.u32 %s33, 1
        %s190 = scalar_lea.sflag [#allocation4], %s189
        %s191 = sand.u32 %s33, 1
        %s192 = smul.addr %s191, 8
        %s193 = scalar_lea.vmem [#allocation3], %s192
        %p194 = pneg %p46
        %p195 = pneg %p43
        %p196 = pneg %p67
        %p197 = pneg %p64
        %p198 = pneg %p93
        %p199 = pneg %p90
        %s200 = sand.u32 %s80, 1
        %s201 = scalar_lea.sflag [#allocation5], %s200
        %s202 = sand.u32 %s80, 1
        %s203 = smul.addr %s202, 16
        %s204 = scalar_lea.vmem [#allocation8], %s203
        %p205 = pneg %p119
        %p206 = pneg %p116
        %s207 = sand.u32 %s106, 1
        %s208 = scalar_lea.sflag [#allocation10], %s207
        %s209 = sand.u32 %s106, 1
        %s210 = smul.addr %s209, 16
        %s211 = scalar_lea.vmem [#allocation9], %s210
        %v212 = vld [vmem:[%s180] sm:$0x1]
        %v213 = vld [vmem:[#allocation6] sm:$0xff]
        %v214 = vld [vmem:[#allocation6 + $0x8] sm:$0xff]
        %v215 = vld [vmem:[#allocation6 + $0x10] sm:$0xff]
        %v216 = vld [vmem:[#allocation6 + $0x18] sm:$0xff]
        %v217 = vld [vmem:[#allocation6 + $0x20] sm:$0xff]
        %v218 = vld [vmem:[#allocation6 + $0x28] sm:$0xff]
        %v219 = vld [vmem:[#allocation6 + $0x30] sm:$0xff]
        %v220 = vld [vmem:[#allocation6 + $0x38] sm:$0xff]
        %v221 = vld [vmem:[#allocation6 + $0x40] sm:$0xff]
        %v222 = vld [vmem:[#allocation6 + $0x48] sm:$0xff]
        %v223 = vld [vmem:[#allocation6 + $0x50] sm:$0xff]
        %v224 = vld [vmem:[#allocation6 + $0x58] sm:$0xff]
        %v225 = vld [vmem:[#allocation6 + $0x60] sm:$0xff]
        %v226 = vld [vmem:[#allocation6 + $0x68] sm:$0xff]
        %v227 = vld [vmem:[#allocation6 + $0x70] sm:$0xff]
        %v228 = vld [vmem:[#allocation6 + $0x78] sm:$0xff]
        %v229 = vld [vmem:[#allocation6 + $0x80] sm:$0xff]
        %v230 = vld [vmem:[#allocation6 + $0x88] sm:$0xff]
        %v231 = vld [vmem:[#allocation6 + $0x90] sm:$0xff]
        %v232 = vld [vmem:[#allocation6 + $0x98] sm:$0xff]
        %v233 = vld [vmem:[#allocation6 + $0xa0] sm:$0xff]
        %v234 = vld [vmem:[#allocation6 + $0xa8] sm:$0xff]
        %v235 = vld [vmem:[#allocation6 + $0xb0] sm:$0xff]
        %v236 = vld [vmem:[#allocation6 + $0xb8] sm:$0xff]
        %v237 = vld [vmem:[#allocation6 + $0xc0] sm:$0xff]
        %v238 = vld [vmem:[#allocation6 + $0xc8] sm:$0xff]
        %v239 = vld [vmem:[#allocation6 + $0xd0] sm:$0xff]
        %v240 = vld [vmem:[#allocation6 + $0xd8] sm:$0xff]
        %v241 = vld [vmem:[#allocation6 + $0xe0] sm:$0xff]
        %v242 = vld [vmem:[#allocation6 + $0xe8] sm:$0xff]
        %v243 = vld [vmem:[#allocation6 + $0xf0] sm:$0xff]
        %v244 = vld [vmem:[#allocation6 + $0xf8] sm:$0xff]
        %v245 = vlaneseq
        %v246 = vshrl.u32 %v245, 7
        %v247 = vsub.s32 0, %v246
        %v248 = vrot.slane %v212, %v247
        %v249 = vmul.f32 %v213, %v248
        %v250 = vmul.f32 %v214, %v248
        %v251 = vmul.f32 %v215, %v248
        %v252 = vmul.f32 %v216, %v248
        %v253 = vmul.f32 %v217, %v248
        %v254 = vmul.f32 %v218, %v248
        %v255 = vmul.f32 %v219, %v248
        %v256 = vmul.f32 %v220, %v248
        %v257 = vmul.f32 %v221, %v248
        %v258 = vmul.f32 %v222, %v248
        %v259 = vmul.f32 %v223, %v248
        %v260 = vmul.f32 %v224, %v248
        %v261 = vmul.f32 %v225, %v248
        %v262 = vmul.f32 %v226, %v248
        %v263 = vmul.f32 %v227, %v248
        %v264 = vmul.f32 %v228, %v248
        %v265 = vmul.f32 %v229, %v248
        %v266 = vmul.f32 %v230, %v248
        %v267 = vmul.f32 %v231, %v248
        %v268 = vmul.f32 %v232, %v248
        %v269 = vmul.f32 %v233, %v248
        %v270 = vmul.f32 %v234, %v248
        %v271 = vmul.f32 %v235, %v248
        %v272 = vmul.f32 %v236, %v248
        %v273 = vmul.f32 %v237, %v248
        %v274 = vmul.f32 %v238, %v248
        %v275 = vmul.f32 %v239, %v248
        %v276 = vmul.f32 %v240, %v248
        %v277 = vmul.f32 %v241, %v248
        %v278 = vmul.f32 %v242, %v248
        %v279 = vmul.f32 %v243, %v248
        %v280 = vmul.f32 %v244, %v248
        %v281 = vadd.f32 %v249, 0.0
        %v282 = vadd.f32 %v250, 0.0
        %v283 = vadd.f32 %v251, 0.0
        %v284 = vadd.f32 %v252, 0.0
        %v285 = vadd.f32 %v253, 0.0
        %v286 = vadd.f32 %v254, 0.0
        %v287 = vadd.f32 %v255, 0.0
        %v288 = vadd.f32 %v256, 0.0
        %v289 = vadd.f32 %v257, 0.0
        %v290 = vadd.f32 %v258, 0.0
        %v291 = vadd.f32 %v259, 0.0
        %v292 = vadd.f32 %v260, 0.0
        %v293 = vadd.f32 %v261, 0.0
        %v294 = vadd.f32 %v262, 0.0
        %v295 = vadd.f32 %v263, 0.0
        %v296 = vadd.f32 %v264, 0.0
        %v297 = vadd.f32 %v265, 0.0
        %v298 = vadd.f32 %v266, 0.0
        %v299 = vadd.f32 %v267, 0.0
        %v300 = vadd.f32 %v268, 0.0
        %v301 = vadd.f32 %v269, 0.0
        %v302 = vadd.f32 %v270, 0.0
        %v303 = vadd.f32 %v271, 0.0
        %v304 = vadd.f32 %v272, 0.0
        %v305 = vadd.f32 %v273, 0.0
        %v306 = vadd.f32 %v274, 0.0
        %v307 = vadd.f32 %v275, 0.0
        %v308 = vadd.f32 %v276, 0.0
        %v309 = vadd.f32 %v277, 0.0
        %v310 = vadd.f32 %v278, 0.0
        %v311 = vadd.f32 %v279, 0.0
        %v312 = vadd.f32 %v280, 0.0
        %v313 = vld [vmem:[%s180 + $0x1] sm:$0x1]
        %s314 = scalar_lea.vmem [#allocation6], 256
        %v315 = vld [vmem:[%s314] sm:$0xff]
        %v316 = vld [vmem:[%s314 + $0x8] sm:$0xff]
        %v317 = vld [vmem:[%s314 + $0x10] sm:$0xff]
        %v318 = vld [vmem:[%s314 + $0x18] sm:$0xff]
        %v319 = vld [vmem:[%s314 + $0x20] sm:$0xff]
        %v320 = vld [vmem:[%s314 + $0x28] sm:$0xff]
        %v321 = vld [vmem:[%s314 + $0x30] sm:$0xff]
        %v322 = vld [vmem:[%s314 + $0x38] sm:$0xff]
        %v323 = vld [vmem:[%s314 + $0x40] sm:$0xff]
        %v324 = vld [vmem:[%s314 + $0x48] sm:$0xff]
        %v325 = vld [vmem:[%s314 + $0x50] sm:$0xff]
        %v326 = vld [vmem:[%s314 + $0x58] sm:$0xff]
        %v327 = vld [vmem:[%s314 + $0x60] sm:$0xff]
        %v328 = vld [vmem:[%s314 + $0x68] sm:$0xff]
        %v329 = vld [vmem:[%s314 + $0x70] sm:$0xff]
        %v330 = vld [vmem:[%s314 + $0x78] sm:$0xff]
        %v331 = vld [vmem:[%s314 + $0x80] sm:$0xff]
        %v332 = vld [vmem:[%s314 + $0x88] sm:$0xff]
        %v333 = vld [vmem:[%s314 + $0x90] sm:$0xff]
        %v334 = vld [vmem:[%s314 + $0x98] sm:$0xff]
        %v335 = vld [vmem:[%s314 + $0xa0] sm:$0xff]
        %v336 = vld [vmem:[%s314 + $0xa8] sm:$0xff]
        %v337 = vld [vmem:[%s314 + $0xb0] sm:$0xff]
        %v338 = vld [vmem:[%s314 + $0xb8] sm:$0xff]
        %v339 = vld [vmem:[%s314 + $0xc0] sm:$0xff]
        %v340 = vld [vmem:[%s314 + $0xc8] sm:$0xff]
        %v341 = vld [vmem:[%s314 + $0xd0] sm:$0xff]
        %v342 = vld [vmem:[%s314 + $0xd8] sm:$0xff]
        %v343 = vld [vmem:[%s314 + $0xe0] sm:$0xff]
        %v344 = vld [vmem:[%s314 + $0xe8] sm:$0xff]
        %v345 = vld [vmem:[%s314 + $0xf0] sm:$0xff]
        %v346 = vld [vmem:[%s314 + $0xf8] sm:$0xff]
        %v347 = vlaneseq
        %v348 = vshrl.u32 %v347, 7
        %v349 = vsub.s32 0, %v348
        %v350 = vrot.slane %v313, %v349
        %v351 = vmul.f32 %v315, %v350
        %v352 = vmul.f32 %v316, %v350
        %v353 = vmul.f32 %v317, %v350
        %v354 = vmul.f32 %v318, %v350
        %v355 = vmul.f32 %v319, %v350
        %v356 = vmul.f32 %v320, %v350
        %v357 = vmul.f32 %v321, %v350
        %v358 = vmul.f32 %v322, %v350
        %v359 = vmul.f32 %v323, %v350
        %v360 = vmul.f32 %v324, %v350
        %v361 = vmul.f32 %v325, %v350
        %v362 = vmul.f32 %v326, %v350
        %v363 = vmul.f32 %v327, %v350
        %v364 = vmul.f32 %v328, %v350
        %v365 = vmul.f32 %v329, %v350
        %v366 = vmul.f32 %v330, %v350
        %v367 = vmul.f32 %v331, %v350
        %v368 = vmul.f32 %v332, %v350
        %v369 = vmul.f32 %v333, %v350
        %v370 = vmul.f32 %v334, %v350
        %v371 = vmul.f32 %v335, %v350
        %v372 = vmul.f32 %v336, %v350
        %v373 = vmul.f32 %v337, %v350
        %v374 = vmul.f32 %v338, %v350
        %v375 = vmul.f32 %v339, %v350
        %v376 = vmul.f32 %v340, %v350
        %v377 = vmul.f32 %v341, %v350
        %v378 = vmul.f32 %v342, %v350
        %v379 = vmul.f32 %v343, %v350
        %v380 = vmul.f32 %v344, %v350
        %v381 = vmul.f32 %v345, %v350
        %v382 = vmul.f32 %v346, %v350
        %v383 = vadd.f32 %v281, %v351
        %v384 = vadd.f32 %v282, %v352
        %v385 = vadd.f32 %v283, %v353
        %v386 = vadd.f32 %v284, %v354
        %v387 = vadd.f32 %v285, %v355
        %v388 = vadd.f32 %v286, %v356
        %v389 = vadd.f32 %v287, %v357
        %v390 = vadd.f32 %v288, %v358
        %v391 = vadd.f32 %v289, %v359
        %v392 = vadd.f32 %v290, %v360
        %v393 = vadd.f32 %v291, %v361
        %v394 = vadd.f32 %v292, %v362
        %v395 = vadd.f32 %v293, %v363
        %v396 = vadd.f32 %v294, %v364
        %v397 = vadd.f32 %v295, %v365
        %v398 = vadd.f32 %v296, %v366
        %v399 = vadd.f32 %v297, %v367
        %v400 = vadd.f32 %v298, %v368
        %v401 = vadd.f32 %v299, %v369
        %v402 = vadd.f32 %v300, %v370
        %v403 = vadd.f32 %v301, %v371
        %v404 = vadd.f32 %v302, %v372
        %v405 = vadd.f32 %v303, %v373
        %v406 = vadd.f32 %v304, %v374
        %v407 = vadd.f32 %v305, %v375
        %v408 = vadd.f32 %v306, %v376
        %v409 = vadd.f32 %v307, %v377
        %v410 = vadd.f32 %v308, %v378
        %v411 = vadd.f32 %v309, %v379
        %v412 = vadd.f32 %v310, %v380
        %v413 = vadd.f32 %v311, %v381
        %v414 = vadd.f32 %v312, %v382
        %v415 = vld [vmem:[%s180 + $0x2] sm:$0x1]
        %s416 = scalar_lea.vmem [#allocation6], 512
        %v417 = vld [vmem:[%s416] sm:$0xff]
        %v418 = vld [vmem:[%s416 + $0x8] sm:$0xff]
        %v419 = vld [vmem:[%s416 + $0x10] sm:$0xff]
        %v420 = vld [vmem:[%s416 + $0x18] sm:$0xff]
        %v421 = vld [vmem:[%s416 + $0x20] sm:$0xff]
        %v422 = vld [vmem:[%s416 + $0x28] sm:$0xff]
        %v423 = vld [vmem:[%s416 + $0x30] sm:$0xff]
        %v424 = vld [vmem:[%s416 + $0x38] sm:$0xff]
        %v425 = vld [vmem:[%s416 + $0x40] sm:$0xff]
        %v426 = vld [vmem:[%s416 + $0x48] sm:$0xff]
        %v427 = vld [vmem:[%s416 + $0x50] sm:$0xff]
        %v428 = vld [vmem:[%s416 + $0x58] sm:$0xff]
        %v429 = vld [vmem:[%s416 + $0x60] sm:$0xff]
        %v430 = vld [vmem:[%s416 + $0x68] sm:$0xff]
        %v431 = vld [vmem:[%s416 + $0x70] sm:$0xff]
        %v432 = vld [vmem:[%s416 + $0x78] sm:$0xff]
        %v433 = vld [vmem:[%s416 + $0x80] sm:$0xff]
        %v434 = vld [vmem:[%s416 + $0x88] sm:$0xff]
        %v435 = vld [vmem:[%s416 + $0x90] sm:$0xff]
        %v436 = vld [vmem:[%s416 + $0x98] sm:$0xff]
        %v437 = vld [vmem:[%s416 + $0xa0] sm:$0xff]
        %v438 = vld [vmem:[%s416 + $0xa8] sm:$0xff]
        %v439 = vld [vmem:[%s416 + $0xb0] sm:$0xff]
        %v440 = vld [vmem:[%s416 + $0xb8] sm:$0xff]
        %v441 = vld [vmem:[%s416 + $0xc0] sm:$0xff]
        %v442 = vld [vmem:[%s416 + $0xc8] sm:$0xff]
        %v443 = vld [vmem:[%s416 + $0xd0] sm:$0xff]
        %v444 = vld [vmem:[%s416 + $0xd8] sm:$0xff]
        %v445 = vld [vmem:[%s416 + $0xe0] sm:$0xff]
        %v446 = vld [vmem:[%s416 + $0xe8] sm:$0xff]
        %v447 = vld [vmem:[%s416 + $0xf0] sm:$0xff]
        %v448 = vld [vmem:[%s416 + $0xf8] sm:$0xff]
        %v449 = vlaneseq
        %v450 = vshrl.u32 %v449, 7
        %v451 = vsub.s32 0, %v450
        %v452 = vrot.slane %v415, %v451
        %v453 = vmul.f32 %v417, %v452
        %v454 = vmul.f32 %v418, %v452
        %v455 = vmul.f32 %v419, %v452
        %v456 = vmul.f32 %v420, %v452
        %v457 = vmul.f32 %v421, %v452
        %v458 = vmul.f32 %v422, %v452
        %v459 = vmul.f32 %v423, %v452
        %v460 = vmul.f32 %v424, %v452
        %v461 = vmul.f32 %v425, %v452
        %v462 = vmul.f32 %v426, %v452
        %v463 = vmul.f32 %v427, %v452
        %v464 = vmul.f32 %v428, %v452
        %v465 = vmul.f32 %v429, %v452
        %v466 = vmul.f32 %v430, %v452
        %v467 = vmul.f32 %v431, %v452
        %v468 = vmul.f32 %v432, %v452
        %v469 = vmul.f32 %v433, %v452
        %v470 = vmul.f32 %v434, %v452
        %v471 = vmul.f32 %v435, %v452
        %v472 = vmul.f32 %v436, %v452
        %v473 = vmul.f32 %v437, %v452
        %v474 = vmul.f32 %v438, %v452
        %v475 = vmul.f32 %v439, %v452
        %v476 = vmul.f32 %v440, %v452
        %v477 = vmul.f32 %v441, %v452
        %v478 = vmul.f32 %v442, %v452
        %v479 = vmul.f32 %v443, %v452
        %v480 = vmul.f32 %v444, %v452
        %v481 = vmul.f32 %v445, %v452
        %v482 = vmul.f32 %v446, %v452
        %v483 = vmul.f32 %v447, %v452
        %v484 = vmul.f32 %v448, %v452
        %v485 = vadd.f32 %v383, %v453
        %v486 = vadd.f32 %v384, %v454
        %v487 = vadd.f32 %v385, %v455
        %v488 = vadd.f32 %v386, %v456
        %v489 = vadd.f32 %v387, %v457
        %v490 = vadd.f32 %v388, %v458
        %v491 = vadd.f32 %v389, %v459
        %v492 = vadd.f32 %v390, %v460
        %v493 = vadd.f32 %v391, %v461
        %v494 = vadd.f32 %v392, %v462
        %v495 = vadd.f32 %v393, %v463
        %v496 = vadd.f32 %v394, %v464
        %v497 = vadd.f32 %v395, %v465
        %v498 = vadd.f32 %v396, %v466
        %v499 = vadd.f32 %v397, %v467
        %v500 = vadd.f32 %v398, %v468
        %v501 = vadd.f32 %v399, %v469
        %v502 = vadd.f32 %v400, %v470
        %v503 = vadd.f32 %v401, %v471
        %v504 = vadd.f32 %v402, %v472
        %v505 = vadd.f32 %v403, %v473
        %v506 = vadd.f32 %v404, %v474
        %v507 = vadd.f32 %v405, %v475
        %v508 = vadd.f32 %v406, %v476
        %v509 = vadd.f32 %v407, %v477
        %v510 = vadd.f32 %v408, %v478
        %v511 = vadd.f32 %v409, %v479
        %v512 = vadd.f32 %v410, %v480
        %v513 = vadd.f32 %v411, %v481
        %v514 = vadd.f32 %v412, %v482
        %v515 = vadd.f32 %v413, %v483
        %v516 = vadd.f32 %v414, %v484
        %v517 = vld [vmem:[%s180 + $0x3] sm:$0x1]
        %s518 = scalar_lea.vmem [#allocation6], 768
        %v519 = vld [vmem:[%s518] sm:$0xff]
        %v520 = vld [vmem:[%s518 + $0x8] sm:$0xff]
        %v521 = vld [vmem:[%s518 + $0x10] sm:$0xff]
        %v522 = vld [vmem:[%s518 + $0x18] sm:$0xff]
        %v523 = vld [vmem:[%s518 + $0x20] sm:$0xff]
        %v524 = vld [vmem:[%s518 + $0x28] sm:$0xff]
        %v525 = vld [vmem:[%s518 + $0x30] sm:$0xff]
        %v526 = vld [vmem:[%s518 + $0x38] sm:$0xff]
        %v527 = vld [vmem:[%s518 + $0x40] sm:$0xff]
        %v528 = vld [vmem:[%s518 + $0x48] sm:$0xff]
        %v529 = vld [vmem:[%s518 + $0x50] sm:$0xff]
        %v530 = vld [vmem:[%s518 + $0x58] sm:$0xff]
        %v531 = vld [vmem:[%s518 + $0x60] sm:$0xff]
        %v532 = vld [vmem:[%s518 + $0x68] sm:$0xff]
        %v533 = vld [vmem:[%s518 + $0x70] sm:$0xff]
        %v534 = vld [vmem:[%s518 + $0x78] sm:$0xff]
        %v535 = vld [vmem:[%s518 + $0x80] sm:$0xff]
        %v536 = vld [vmem:[%s518 + $0x88] sm:$0xff]
        %v537 = vld [vmem:[%s518 + $0x90] sm:$0xff]
        %v538 = vld [vmem:[%s518 + $0x98] sm:$0xff]
        %v539 = vld [vmem:[%s518 + $0xa0] sm:$0xff]
        %v540 = vld [vmem:[%s518 + $0xa8] sm:$0xff]
        %v541 = vld [vmem:[%s518 + $0xb0] sm:$0xff]
        %v542 = vld [vmem:[%s518 + $0xb8] sm:$0xff]
        %v543 = vld [vmem:[%s518 + $0xc0] sm:$0xff]
        %v544 = vld [vmem:[%s518 + $0xc8] sm:$0xff]
        %v545 = vld [vmem:[%s518 + $0xd0] sm:$0xff]
        %v546 = vld [vmem:[%s518 + $0xd8] sm:$0xff]
        %v547 = vld [vmem:[%s518 + $0xe0] sm:$0xff]
        %v548 = vld [vmem:[%s518 + $0xe8] sm:$0xff]
        %v549 = vld [vmem:[%s518 + $0xf0] sm:$0xff]
        %v550 = vld [vmem:[%s518 + $0xf8] sm:$0xff]
        %v551 = vlaneseq
        %v552 = vshrl.u32 %v551, 7
        %v553 = vsub.s32 0, %v552
        %v554 = vrot.slane %v517, %v553
        %v555 = vmul.f32 %v519, %v554
        %v556 = vmul.f32 %v520, %v554
        %v557 = vmul.f32 %v521, %v554
        %v558 = vmul.f32 %v522, %v554
        %v559 = vmul.f32 %v523, %v554
        %v560 = vmul.f32 %v524, %v554
        %v561 = vmul.f32 %v525, %v554
        %v562 = vmul.f32 %v526, %v554
        %v563 = vmul.f32 %v527, %v554
        %v564 = vmul.f32 %v528, %v554
        %v565 = vmul.f32 %v529, %v554
        %v566 = vmul.f32 %v530, %v554
        %v567 = vmul.f32 %v531, %v554
        %v568 = vmul.f32 %v532, %v554
        %v569 = vmul.f32 %v533, %v554
        %v570 = vmul.f32 %v534, %v554
        %v571 = vmul.f32 %v535, %v554
        %v572 = vmul.f32 %v536, %v554
        %v573 = vmul.f32 %v537, %v554
        %v574 = vmul.f32 %v538, %v554
        %v575 = vmul.f32 %v539, %v554
        %v576 = vmul.f32 %v540, %v554
        %v577 = vmul.f32 %v541, %v554
        %v578 = vmul.f32 %v542, %v554
        %v579 = vmul.f32 %v543, %v554
        %v580 = vmul.f32 %v544, %v554
        %v581 = vmul.f32 %v545, %v554
        %v582 = vmul.f32 %v546, %v554
        %v583 = vmul.f32 %v547, %v554
        %v584 = vmul.f32 %v548, %v554
        %v585 = vmul.f32 %v549, %v554
        %v586 = vmul.f32 %v550, %v554
        %v587 = vadd.f32 %v485, %v555
        %v588 = vadd.f32 %v486, %v556
        %v589 = vadd.f32 %v487, %v557
        %v590 = vadd.f32 %v488, %v558
        %v591 = vadd.f32 %v489, %v559
        %v592 = vadd.f32 %v490, %v560
        %v593 = vadd.f32 %v491, %v561
        %v594 = vadd.f32 %v492, %v562
        %v595 = vadd.f32 %v493, %v563
        %v596 = vadd.f32 %v494, %v564
        %v597 = vadd.f32 %v495, %v565
        %v598 = vadd.f32 %v496, %v566
        %v599 = vadd.f32 %v497, %v567
        %v600 = vadd.f32 %v498, %v568
        %v601 = vadd.f32 %v499, %v569
        %v602 = vadd.f32 %v500, %v570
        %v603 = vadd.f32 %v501, %v571
        %v604 = vadd.f32 %v502, %v572
        %v605 = vadd.f32 %v503, %v573
        %v606 = vadd.f32 %v504, %v574
        %v607 = vadd.f32 %v505, %v575
        %v608 = vadd.f32 %v506, %v576
        %v609 = vadd.f32 %v507, %v577
        %v610 = vadd.f32 %v508, %v578
        %v611 = vadd.f32 %v509, %v579
        %v612 = vadd.f32 %v510, %v580
        %v613 = vadd.f32 %v511, %v581
        %v614 = vadd.f32 %v512, %v582
        %v615 = vadd.f32 %v513, %v583
        %v616 = vadd.f32 %v514, %v584
        %v617 = vadd.f32 %v515, %v585
        %v618 = vadd.f32 %v516, %v586
        %v619 = vld [vmem:[%s180 + $0x4] sm:$0x1]
        %s620 = scalar_lea.vmem [#allocation6], 1024
        %v621 = vld [vmem:[%s620] sm:$0xff]
        %v622 = vld [vmem:[%s620 + $0x8] sm:$0xff]
        %v623 = vld [vmem:[%s620 + $0x10] sm:$0xff]
        %v624 = vld [vmem:[%s620 + $0x18] sm:$0xff]
        %v625 = vld [vmem:[%s620 + $0x20] sm:$0xff]
        %v626 = vld [vmem:[%s620 + $0x28] sm:$0xff]
        %v627 = vld [vmem:[%s620 + $0x30] sm:$0xff]
        %v628 = vld [vmem:[%s620 + $0x38] sm:$0xff]
        %v629 = vld [vmem:[%s620 + $0x40] sm:$0xff]
        %v630 = vld [vmem:[%s620 + $0x48] sm:$0xff]
        %v631 = vld [vmem:[%s620 + $0x50] sm:$0xff]
        %v632 = vld [vmem:[%s620 + $0x58] sm:$0xff]
        %v633 = vld [vmem:[%s620 + $0x60] sm:$0xff]
        %v634 = vld [vmem:[%s620 + $0x68] sm:$0xff]
        %v635 = vld [vmem:[%s620 + $0x70] sm:$0xff]
        %v636 = vld [vmem:[%s620 + $0x78] sm:$0xff]
        %v637 = vld [vmem:[%s620 + $0x80] sm:$0xff]
        %v638 = vld [vmem:[%s620 + $0x88] sm:$0xff]
        %v639 = vld [vmem:[%s620 + $0x90] sm:$0xff]
        %v640 = vld [vmem:[%s620 + $0x98] sm:$0xff]
        %v641 = vld [vmem:[%s620 + $0xa0] sm:$0xff]
        %v642 = vld [vmem:[%s620 + $0xa8] sm:$0xff]
        %v643 = vld [vmem:[%s620 + $0xb0] sm:$0xff]
        %v644 = vld [vmem:[%s620 + $0xb8] sm:$0xff]
        %v645 = vld [vmem:[%s620 + $0xc0] sm:$0xff]
        %v646 = vld [vmem:[%s620 + $0xc8] sm:$0xff]
        %v647 = vld [vmem:[%s620 + $0xd0] sm:$0xff]
        %v648 = vld [vmem:[%s620 + $0xd8] sm:$0xff]
        %v649 = vld [vmem:[%s620 + $0xe0] sm:$0xff]
        %v650 = vld [vmem:[%s620 + $0xe8] sm:$0xff]
        %v651 = vld [vmem:[%s620 + $0xf0] sm:$0xff]
        %v652 = vld [vmem:[%s620 + $0xf8] sm:$0xff]
        %v653 = vlaneseq
        %v654 = vshrl.u32 %v653, 7
        %v655 = vsub.s32 0, %v654
        %v656 = vrot.slane %v619, %v655
        %v657 = vmul.f32 %v621, %v656
        %v658 = vmul.f32 %v622, %v656
        %v659 = vmul.f32 %v623, %v656
        %v660 = vmul.f32 %v624, %v656
        %v661 = vmul.f32 %v625, %v656
        %v662 = vmul.f32 %v626, %v656
        %v663 = vmul.f32 %v627, %v656
        %v664 = vmul.f32 %v628, %v656
        %v665 = vmul.f32 %v629, %v656
        %v666 = vmul.f32 %v630, %v656
        %v667 = vmul.f32 %v631, %v656
        %v668 = vmul.f32 %v632, %v656
        %v669 = vmul.f32 %v633, %v656
        %v670 = vmul.f32 %v634, %v656
        %v671 = vmul.f32 %v635, %v656
        %v672 = vmul.f32 %v636, %v656
        %v673 = vmul.f32 %v637, %v656
        %v674 = vmul.f32 %v638, %v656
        %v675 = vmul.f32 %v639, %v656
        %v676 = vmul.f32 %v640, %v656
        %v677 = vmul.f32 %v641, %v656
        %v678 = vmul.f32 %v642, %v656
        %v679 = vmul.f32 %v643, %v656
        %v680 = vmul.f32 %v644, %v656
        %v681 = vmul.f32 %v645, %v656
        %v682 = vmul.f32 %v646, %v656
        %v683 = vmul.f32 %v647, %v656
        %v684 = vmul.f32 %v648, %v656
        %v685 = vmul.f32 %v649, %v656
        %v686 = vmul.f32 %v650, %v656
        %v687 = vmul.f32 %v651, %v656
        %v688 = vmul.f32 %v652, %v656
        %v689 = vadd.f32 %v587, %v657
        %v690 = vadd.f32 %v588, %v658
        %v691 = vadd.f32 %v589, %v659
        %v692 = vadd.f32 %v590, %v660
        %v693 = vadd.f32 %v591, %v661
        %v694 = vadd.f32 %v592, %v662
        %v695 = vadd.f32 %v593, %v663
        %v696 = vadd.f32 %v594, %v664
        %v697 = vadd.f32 %v595, %v665
        %v698 = vadd.f32 %v596, %v666
        %v699 = vadd.f32 %v597, %v667
        %v700 = vadd.f32 %v598, %v668
        %v701 = vadd.f32 %v599, %v669
        %v702 = vadd.f32 %v600, %v670
        %v703 = vadd.f32 %v601, %v671
        %v704 = vadd.f32 %v602, %v672
        %v705 = vadd.f32 %v603, %v673
        %v706 = vadd.f32 %v604, %v674
        %v707 = vadd.f32 %v605, %v675
        %v708 = vadd.f32 %v606, %v676
        %v709 = vadd.f32 %v607, %v677
        %v710 = vadd.f32 %v608, %v678
        %v711 = vadd.f32 %v609, %v679
        %v712 = vadd.f32 %v610, %v680
        %v713 = vadd.f32 %v611, %v681
        %v714 = vadd.f32 %v612, %v682
        %v715 = vadd.f32 %v613, %v683
        %v716 = vadd.f32 %v614, %v684
        %v717 = vadd.f32 %v615, %v685
        %v718 = vadd.f32 %v616, %v686
        %v719 = vadd.f32 %v617, %v687
        %v720 = vadd.f32 %v618, %v688
        %v721 = vld [vmem:[%s180 + $0x5] sm:$0x1]
        %s722 = scalar_lea.vmem [#allocation6], 1280
        %v723 = vld [vmem:[%s722] sm:$0xff]
        %v724 = vld [vmem:[%s722 + $0x8] sm:$0xff]
        %v725 = vld [vmem:[%s722 + $0x10] sm:$0xff]
        %v726 = vld [vmem:[%s722 + $0x18] sm:$0xff]
        %v727 = vld [vmem:[%s722 + $0x20] sm:$0xff]
        %v728 = vld [vmem:[%s722 + $0x28] sm:$0xff]
        %v729 = vld [vmem:[%s722 + $0x30] sm:$0xff]
        %v730 = vld [vmem:[%s722 + $0x38] sm:$0xff]
        %v731 = vld [vmem:[%s722 + $0x40] sm:$0xff]
        %v732 = vld [vmem:[%s722 + $0x48] sm:$0xff]
        %v733 = vld [vmem:[%s722 + $0x50] sm:$0xff]
        %v734 = vld [vmem:[%s722 + $0x58] sm:$0xff]
        %v735 = vld [vmem:[%s722 + $0x60] sm:$0xff]
        %v736 = vld [vmem:[%s722 + $0x68] sm:$0xff]
        %v737 = vld [vmem:[%s722 + $0x70] sm:$0xff]
        %v738 = vld [vmem:[%s722 + $0x78] sm:$0xff]
        %v739 = vld [vmem:[%s722 + $0x80] sm:$0xff]
        %v740 = vld [vmem:[%s722 + $0x88] sm:$0xff]
        %v741 = vld [vmem:[%s722 + $0x90] sm:$0xff]
        %v742 = vld [vmem:[%s722 + $0x98] sm:$0xff]
        %v743 = vld [vmem:[%s722 + $0xa0] sm:$0xff]
        %v744 = vld [vmem:[%s722 + $0xa8] sm:$0xff]
        %v745 = vld [vmem:[%s722 + $0xb0] sm:$0xff]
        %v746 = vld [vmem:[%s722 + $0xb8] sm:$0xff]
        %v747 = vld [vmem:[%s722 + $0xc0] sm:$0xff]
        %v748 = vld [vmem:[%s722 + $0xc8] sm:$0xff]
        %v749 = vld [vmem:[%s722 + $0xd0] sm:$0xff]
        %v750 = vld [vmem:[%s722 + $0xd8] sm:$0xff]
        %v751 = vld [vmem:[%s722 + $0xe0] sm:$0xff]
        %v752 = vld [vmem:[%s722 + $0xe8] sm:$0xff]
        %v753 = vld [vmem:[%s722 + $0xf0] sm:$0xff]
        %v754 = vld [vmem:[%s722 + $0xf8] sm:$0xff]
        %v755 = vlaneseq
        %v756 = vshrl.u32 %v755, 7
        %v757 = vsub.s32 0, %v756
        %v758 = vrot.slane %v721, %v757
        %v759 = vmul.f32 %v723, %v758
        %v760 = vmul.f32 %v724, %v758
        %v761 = vmul.f32 %v725, %v758
        %v762 = vmul.f32 %v726, %v758
        %v763 = vmul.f32 %v727, %v758
        %v764 = vmul.f32 %v728, %v758
        %v765 = vmul.f32 %v729, %v758
        %v766 = vmul.f32 %v730, %v758
        %v767 = vmul.f32 %v731, %v758
        %v768 = vmul.f32 %v732, %v758
        %v769 = vmul.f32 %v733, %v758
        %v770 = vmul.f32 %v734, %v758
        %v771 = vmul.f32 %v735, %v758
        %v772 = vmul.f32 %v736, %v758
        %v773 = vmul.f32 %v737, %v758
        %v774 = vmul.f32 %v738, %v758
        %v775 = vmul.f32 %v739, %v758
        %v776 = vmul.f32 %v740, %v758
        %v777 = vmul.f32 %v741, %v758
        %v778 = vmul.f32 %v742, %v758
        %v779 = vmul.f32 %v743, %v758
        %v780 = vmul.f32 %v744, %v758
        %v781 = vmul.f32 %v745, %v758
        %v782 = vmul.f32 %v746, %v758
        %v783 = vmul.f32 %v747, %v758
        %v784 = vmul.f32 %v748, %v758
        %v785 = vmul.f32 %v749, %v758
        %v786 = vmul.f32 %v750, %v758
        %v787 = vmul.f32 %v751, %v758
        %v788 = vmul.f32 %v752, %v758
        %v789 = vmul.f32 %v753, %v758
        %v790 = vmul.f32 %v754, %v758
        %v791 = vadd.f32 %v689, %v759
        %v792 = vadd.f32 %v690, %v760
        %v793 = vadd.f32 %v691, %v761
        %v794 = vadd.f32 %v692, %v762
        %v795 = vadd.f32 %v693, %v763
        %v796 = vadd.f32 %v694, %v764
        %v797 = vadd.f32 %v695, %v765
        %v798 = vadd.f32 %v696, %v766
        %v799 = vadd.f32 %v697, %v767
        %v800 = vadd.f32 %v698, %v768
        %v801 = vadd.f32 %v699, %v769
        %v802 = vadd.f32 %v700, %v770
        %v803 = vadd.f32 %v701, %v771
        %v804 = vadd.f32 %v702, %v772
        %v805 = vadd.f32 %v703, %v773
        %v806 = vadd.f32 %v704, %v774
        %v807 = vadd.f32 %v705, %v775
        %v808 = vadd.f32 %v706, %v776
        %v809 = vadd.f32 %v707, %v777
        %v810 = vadd.f32 %v708, %v778
        %v811 = vadd.f32 %v709, %v779
        %v812 = vadd.f32 %v710, %v780
        %v813 = vadd.f32 %v711, %v781
        %v814 = vadd.f32 %v712, %v782
        %v815 = vadd.f32 %v713, %v783
        %v816 = vadd.f32 %v714, %v784
        %v817 = vadd.f32 %v715, %v785
        %v818 = vadd.f32 %v716, %v786
        %v819 = vadd.f32 %v717, %v787
        %v820 = vadd.f32 %v718, %v788
        %v821 = vadd.f32 %v719, %v789
        %v822 = vadd.f32 %v720, %v790
        %v823 = vld [vmem:[%s180 + $0x6] sm:$0x1]
        %s824 = scalar_lea.vmem [#allocation6], 1536
        %v825 = vld [vmem:[%s824] sm:$0xff]
        %v826 = vld [vmem:[%s824 + $0x8] sm:$0xff]
        %v827 = vld [vmem:[%s824 + $0x10] sm:$0xff]
        %v828 = vld [vmem:[%s824 + $0x18] sm:$0xff]
        %v829 = vld [vmem:[%s824 + $0x20] sm:$0xff]
        %v830 = vld [vmem:[%s824 + $0x28] sm:$0xff]
        %v831 = vld [vmem:[%s824 + $0x30] sm:$0xff]
        %v832 = vld [vmem:[%s824 + $0x38] sm:$0xff]
        %v833 = vld [vmem:[%s824 + $0x40] sm:$0xff]
        %v834 = vld [vmem:[%s824 + $0x48] sm:$0xff]
        %v835 = vld [vmem:[%s824 + $0x50] sm:$0xff]
        %v836 = vld [vmem:[%s824 + $0x58] sm:$0xff]
        %v837 = vld [vmem:[%s824 + $0x60] sm:$0xff]
        %v838 = vld [vmem:[%s824 + $0x68] sm:$0xff]
        %v839 = vld [vmem:[%s824 + $0x70] sm:$0xff]
        %v840 = vld [vmem:[%s824 + $0x78] sm:$0xff]
        %v841 = vld [vmem:[%s824 + $0x80] sm:$0xff]
        %v842 = vld [vmem:[%s824 + $0x88] sm:$0xff]
        %v843 = vld [vmem:[%s824 + $0x90] sm:$0xff]
        %v844 = vld [vmem:[%s824 + $0x98] sm:$0xff]
        %v845 = vld [vmem:[%s824 + $0xa0] sm:$0xff]
        %v846 = vld [vmem:[%s824 + $0xa8] sm:$0xff]
        %v847 = vld [vmem:[%s824 + $0xb0] sm:$0xff]
        %v848 = vld [vmem:[%s824 + $0xb8] sm:$0xff]
        %v849 = vld [vmem:[%s824 + $0xc0] sm:$0xff]
        %v850 = vld [vmem:[%s824 + $0xc8] sm:$0xff]
        %v851 = vld [vmem:[%s824 + $0xd0] sm:$0xff]
        %v852 = vld [vmem:[%s824 + $0xd8] sm:$0xff]
        %v853 = vld [vmem:[%s824 + $0xe0] sm:$0xff]
        %v854 = vld [vmem:[%s824 + $0xe8] sm:$0xff]
        %v855 = vld [vmem:[%s824 + $0xf0] sm:$0xff]
        %v856 = vld [vmem:[%s824 + $0xf8] sm:$0xff]
        %v857 = vlaneseq
        %v858 = vshrl.u32 %v857, 7
        %v859 = vsub.s32 0, %v858
        %v860 = vrot.slane %v823, %v859
        %v861 = vmul.f32 %v825, %v860
        %v862 = vmul.f32 %v826, %v860
        %v863 = vmul.f32 %v827, %v860
        %v864 = vmul.f32 %v828, %v860
        %v865 = vmul.f32 %v829, %v860
        %v866 = vmul.f32 %v830, %v860
        %v867 = vmul.f32 %v831, %v860
        %v868 = vmul.f32 %v832, %v860
        %v869 = vmul.f32 %v833, %v860
        %v870 = vmul.f32 %v834, %v860
        %v871 = vmul.f32 %v835, %v860
        %v872 = vmul.f32 %v836, %v860
        %v873 = vmul.f32 %v837, %v860
        %v874 = vmul.f32 %v838, %v860
        %v875 = vmul.f32 %v839, %v860
        %v876 = vmul.f32 %v840, %v860
        %v877 = vmul.f32 %v841, %v860
        %v878 = vmul.f32 %v842, %v860
        %v879 = vmul.f32 %v843, %v860
        %v880 = vmul.f32 %v844, %v860
        %v881 = vmul.f32 %v845, %v860
        %v882 = vmul.f32 %v846, %v860
        %v883 = vmul.f32 %v847, %v860
        %v884 = vmul.f32 %v848, %v860
        %v885 = vmul.f32 %v849, %v860
        %v886 = vmul.f32 %v850, %v860
        %v887 = vmul.f32 %v851, %v860
        %v888 = vmul.f32 %v852, %v860
        %v889 = vmul.f32 %v853, %v860
        %v890 = vmul.f32 %v854, %v860
        %v891 = vmul.f32 %v855, %v860
        %v892 = vmul.f32 %v856, %v860
        %v893 = vadd.f32 %v791, %v861
        %v894 = vadd.f32 %v792, %v862
        %v895 = vadd.f32 %v793, %v863
        %v896 = vadd.f32 %v794, %v864
        %v897 = vadd.f32 %v795, %v865
        %v898 = vadd.f32 %v796, %v866
        %v899 = vadd.f32 %v797, %v867
        %v900 = vadd.f32 %v798, %v868
        %v901 = vadd.f32 %v799, %v869
        %v902 = vadd.f32 %v800, %v870
        %v903 = vadd.f32 %v801, %v871
        %v904 = vadd.f32 %v802, %v872
        %v905 = vadd.f32 %v803, %v873
        %v906 = vadd.f32 %v804, %v874
        %v907 = vadd.f32 %v805, %v875
        %v908 = vadd.f32 %v806, %v876
        %v909 = vadd.f32 %v807, %v877
        %v910 = vadd.f32 %v808, %v878
        %v911 = vadd.f32 %v809, %v879
        %v912 = vadd.f32 %v810, %v880
        %v913 = vadd.f32 %v811, %v881
        %v914 = vadd.f32 %v812, %v882
        %v915 = vadd.f32 %v813, %v883
        %v916 = vadd.f32 %v814, %v884
        %v917 = vadd.f32 %v815, %v885
        %v918 = vadd.f32 %v816, %v886
        %v919 = vadd.f32 %v817, %v887
        %v920 = vadd.f32 %v818, %v888
        %v921 = vadd.f32 %v819, %v889
        %v922 = vadd.f32 %v820, %v890
        %v923 = vadd.f32 %v821, %v891
        %v924 = vadd.f32 %v822, %v892
        %v925 = vld [vmem:[%s180 + $0x7] sm:$0x1]
        %s926 = scalar_lea.vmem [#allocation6], 1792
        %v927 = vld [vmem:[%s926] sm:$0xff]
        %v928 = vld [vmem:[%s926 + $0x8] sm:$0xff]
        %v929 = vld [vmem:[%s926 + $0x10] sm:$0xff]
        %v930 = vld [vmem:[%s926 + $0x18] sm:$0xff]
        %v931 = vld [vmem:[%s926 + $0x20] sm:$0xff]
        %v932 = vld [vmem:[%s926 + $0x28] sm:$0xff]
        %v933 = vld [vmem:[%s926 + $0x30] sm:$0xff]
        %v934 = vld [vmem:[%s926 + $0x38] sm:$0xff]
        %v935 = vld [vmem:[%s926 + $0x40] sm:$0xff]
        %v936 = vld [vmem:[%s926 + $0x48] sm:$0xff]
        %v937 = vld [vmem:[%s926 + $0x50] sm:$0xff]
        %v938 = vld [vmem:[%s926 + $0x58] sm:$0xff]
        %v939 = vld [vmem:[%s926 + $0x60] sm:$0xff]
        %v940 = vld [vmem:[%s926 + $0x68] sm:$0xff]
        %v941 = vld [vmem:[%s926 + $0x70] sm:$0xff]
        %v942 = vld [vmem:[%s926 + $0x78] sm:$0xff]
        %v943 = vld [vmem:[%s926 + $0x80] sm:$0xff]
        %v944 = vld [vmem:[%s926 + $0x88] sm:$0xff]
        %v945 = vld [vmem:[%s926 + $0x90] sm:$0xff]
        %v946 = vld [vmem:[%s926 + $0x98] sm:$0xff]
        %v947 = vld [vmem:[%s926 + $0xa0] sm:$0xff]
        %v948 = vld [vmem:[%s926 + $0xa8] sm:$0xff]
        %v949 = vld [vmem:[%s926 + $0xb0] sm:$0xff]
        %v950 = vld [vmem:[%s926 + $0xb8] sm:$0xff]
        %v951 = vld [vmem:[%s926 + $0xc0] sm:$0xff]
        %v952 = vld [vmem:[%s926 + $0xc8] sm:$0xff]
        %v953 = vld [vmem:[%s926 + $0xd0] sm:$0xff]
        %v954 = vld [vmem:[%s926 + $0xd8] sm:$0xff]
        %v955 = vld [vmem:[%s926 + $0xe0] sm:$0xff]
        %v956 = vld [vmem:[%s926 + $0xe8] sm:$0xff]
        %v957 = vld [vmem:[%s926 + $0xf0] sm:$0xff]
        %v958 = vld [vmem:[%s926 + $0xf8] sm:$0xff]
        %v959 = vlaneseq
        %v960 = vshrl.u32 %v959, 7
        %v961 = vsub.s32 0, %v960
        %v962 = vrot.slane %v925, %v961
        %v963 = vmul.f32 %v927, %v962
        %v964 = vmul.f32 %v928, %v962
        %v965 = vmul.f32 %v929, %v962
        %v966 = vmul.f32 %v930, %v962
        %v967 = vmul.f32 %v931, %v962
        %v968 = vmul.f32 %v932, %v962
        %v969 = vmul.f32 %v933, %v962
        %v970 = vmul.f32 %v934, %v962
        %v971 = vmul.f32 %v935, %v962
        %v972 = vmul.f32 %v936, %v962
        %v973 = vmul.f32 %v937, %v962
        %v974 = vmul.f32 %v938, %v962
        %v975 = vmul.f32 %v939, %v962
        %v976 = vmul.f32 %v940, %v962
        %v977 = vmul.f32 %v941, %v962
        %v978 = vmul.f32 %v942, %v962
        %v979 = vmul.f32 %v943, %v962
        %v980 = vmul.f32 %v944, %v962
        %v981 = vmul.f32 %v945, %v962
        %v982 = vmul.f32 %v946, %v962
        %v983 = vmul.f32 %v947, %v962
        %v984 = vmul.f32 %v948, %v962
        %v985 = vmul.f32 %v949, %v962
        %v986 = vmul.f32 %v950, %v962
        %v987 = vmul.f32 %v951, %v962
        %v988 = vmul.f32 %v952, %v962
        %v989 = vmul.f32 %v953, %v962
        %v990 = vmul.f32 %v954, %v962
        %v991 = vmul.f32 %v955, %v962
        %v992 = vmul.f32 %v956, %v962
        %v993 = vmul.f32 %v957, %v962
        %v994 = vmul.f32 %v958, %v962
        %v995 = vadd.f32 %v893, %v963
        %v996 = vadd.f32 %v894, %v964
        %v997 = vadd.f32 %v895, %v965
        %v998 = vadd.f32 %v896, %v966
        %v999 = vadd.f32 %v897, %v967
        %v1000 = vadd.f32 %v898, %v968
        %v1001 = vadd.f32 %v899, %v969
        %v1002 = vadd.f32 %v900, %v970
        %v1003 = vadd.f32 %v901, %v971
        %v1004 = vadd.f32 %v902, %v972
        %v1005 = vadd.f32 %v903, %v973
        %v1006 = vadd.f32 %v904, %v974
        %v1007 = vadd.f32 %v905, %v975
        %v1008 = vadd.f32 %v906, %v976
        %v1009 = vadd.f32 %v907, %v977
        %v1010 = vadd.f32 %v908, %v978
        %v1011 = vadd.f32 %v909, %v979
        %v1012 = vadd.f32 %v910, %v980
        %v1013 = vadd.f32 %v911, %v981
        %v1014 = vadd.f32 %v912, %v982
        %v1015 = vadd.f32 %v913, %v983
        %v1016 = vadd.f32 %v914, %v984
        %v1017 = vadd.f32 %v915, %v985
        %v1018 = vadd.f32 %v916, %v986
        %v1019 = vadd.f32 %v917, %v987
        %v1020 = vadd.f32 %v918, %v988
        %v1021 = vadd.f32 %v919, %v989
        %v1022 = vadd.f32 %v920, %v990
        %v1023 = vadd.f32 %v921, %v991
        %v1024 = vadd.f32 %v922, %v992
        %v1025 = vadd.f32 %v923, %v993
        %v1026 = vadd.f32 %v924, %v994
        %1027 = vst [vmem:[#allocation2] sm:$0xff] %v995
        %1028 = vst [vmem:[#allocation2 + $0x8] sm:$0xff] %v996
        %1029 = vst [vmem:[#allocation2 + $0x10] sm:$0xff] %v997
        %1030 = vst [vmem:[#allocation2 + $0x18] sm:$0xff] %v998
        %1031 = vst [vmem:[#allocation2 + $0x20] sm:$0xff] %v999
        %1032 = vst [vmem:[#allocation2 + $0x28] sm:$0xff] %v1000
        %1033 = vst [vmem:[#allocation2 + $0x30] sm:$0xff] %v1001
        %1034 = vst [vmem:[#allocation2 + $0x38] sm:$0xff] %v1002
        %1035 = vst [vmem:[#allocation2 + $0x40] sm:$0xff] %v1003
        %1036 = vst [vmem:[#allocation2 + $0x48] sm:$0xff] %v1004
        %1037 = vst [vmem:[#allocation2 + $0x50] sm:$0xff] %v1005
        %1038 = vst [vmem:[#allocation2 + $0x58] sm:$0xff] %v1006
        %1039 = vst [vmem:[#allocation2 + $0x60] sm:$0xff] %v1007
        %1040 = vst [vmem:[#allocation2 + $0x68] sm:$0xff] %v1008
        %1041 = vst [vmem:[#allocation2 + $0x70] sm:$0xff] %v1009
        %1042 = vst [vmem:[#allocation2 + $0x78] sm:$0xff] %v1010
        %1043 = vst [vmem:[#allocation2 + $0x80] sm:$0xff] %v1011
        %1044 = vst [vmem:[#allocation2 + $0x88] sm:$0xff] %v1012
        %1045 = vst [vmem:[#allocation2 + $0x90] sm:$0xff] %v1013
        %1046 = vst [vmem:[#allocation2 + $0x98] sm:$0xff] %v1014
        %1047 = vst [vmem:[#allocation2 + $0xa0] sm:$0xff] %v1015
        %1048 = vst [vmem:[#allocation2 + $0xa8] sm:$0xff] %v1016
        %1049 = vst [vmem:[#allocation2 + $0xb0] sm:$0xff] %v1017
        %1050 = vst [vmem:[#allocation2 + $0xb8] sm:$0xff] %v1018
        %1051 = vst [vmem:[#allocation2 + $0xc0] sm:$0xff] %v1019
        %1052 = vst [vmem:[#allocation2 + $0xc8] sm:$0xff] %v1020
        %1053 = vst [vmem:[#allocation2 + $0xd0] sm:$0xff] %v1021
        %1054 = vst [vmem:[#allocation2 + $0xd8] sm:$0xff] %v1022
        %1055 = vst [vmem:[#allocation2 + $0xe0] sm:$0xff] %v1023
        %1056 = vst [vmem:[#allocation2 + $0xe8] sm:$0xff] %v1024
        %1057 = vst [vmem:[#allocation2 + $0xf0] sm:$0xff] %v1025
        %1058 = vst [vmem:[#allocation2 + $0xf8] sm:$0xff] %v1026
        %v1059 = vrcp.pop 16.0
        %v1060 = vmul.f32 1.0, %v1059
        %v1061 = vld [vmem:[#allocation2] sm:$0xff]
        %v1062 = vld [vmem:[#allocation2 + $0x8] sm:$0xff]
        %v1063 = vld [vmem:[#allocation2 + $0x10] sm:$0xff]
        %v1064 = vld [vmem:[#allocation2 + $0x18] sm:$0xff]
        %v1065 = vld [vmem:[#allocation2 + $0x20] sm:$0xff]
        %v1066 = vld [vmem:[#allocation2 + $0x28] sm:$0xff]
        %v1067 = vld [vmem:[#allocation2 + $0x30] sm:$0xff]
        %v1068 = vld [vmem:[#allocation2 + $0x38] sm:$0xff]
        %v1069 = vld [vmem:[#allocation2 + $0x40] sm:$0xff]
        %v1070 = vld [vmem:[#allocation2 + $0x48] sm:$0xff]
        %v1071 = vld [vmem:[#allocation2 + $0x50] sm:$0xff]
        %v1072 = vld [vmem:[#allocation2 + $0x58] sm:$0xff]
        %v1073 = vld [vmem:[#allocation2 + $0x60] sm:$0xff]
        %v1074 = vld [vmem:[#allocation2 + $0x68] sm:$0xff]
        %v1075 = vld [vmem:[#allocation2 + $0x70] sm:$0xff]
        %v1076 = vld [vmem:[#allocation2 + $0x78] sm:$0xff]
        %v1077 = vld [vmem:[#allocation2 + $0x80] sm:$0xff]
        %v1078 = vld [vmem:[#allocation2 + $0x88] sm:$0xff]
        %v1079 = vld [vmem:[#allocation2 + $0x90] sm:$0xff]
        %v1080 = vld [vmem:[#allocation2 + $0x98] sm:$0xff]
        %v1081 = vld [vmem:[#allocation2 + $0xa0] sm:$0xff]
        %v1082 = vld [vmem:[#allocation2 + $0xa8] sm:$0xff]
        %v1083 = vld [vmem:[#allocation2 + $0xb0] sm:$0xff]
        %v1084 = vld [vmem:[#allocation2 + $0xb8] sm:$0xff]
        %v1085 = vld [vmem:[#allocation2 + $0xc0] sm:$0xff]
        %v1086 = vld [vmem:[#allocation2 + $0xc8] sm:$0xff]
        %v1087 = vld [vmem:[#allocation2 + $0xd0] sm:$0xff]
        %v1088 = vld [vmem:[#allocation2 + $0xd8] sm:$0xff]
        %v1089 = vld [vmem:[#allocation2 + $0xe0] sm:$0xff]
        %v1090 = vld [vmem:[#allocation2 + $0xe8] sm:$0xff]
        %v1091 = vld [vmem:[#allocation2 + $0xf0] sm:$0xff]
        %v1092 = vld [vmem:[#allocation2 + $0xf8] sm:$0xff]
        %v1093 = vmul.f32 %v1060, %v1061
        %v1094 = vmul.f32 %v1060, %v1062
        %v1095 = vmul.f32 %v1060, %v1063
        %v1096 = vmul.f32 %v1060, %v1064
        %v1097 = vmul.f32 %v1060, %v1065
        %v1098 = vmul.f32 %v1060, %v1066
        %v1099 = vmul.f32 %v1060, %v1067
        %v1100 = vmul.f32 %v1060, %v1068
        %v1101 = vmul.f32 %v1060, %v1069
        %v1102 = vmul.f32 %v1060, %v1070
        %v1103 = vmul.f32 %v1060, %v1071
        %v1104 = vmul.f32 %v1060, %v1072
        %v1105 = vmul.f32 %v1060, %v1073
        %v1106 = vmul.f32 %v1060, %v1074
        %v1107 = vmul.f32 %v1060, %v1075
        %v1108 = vmul.f32 %v1060, %v1076
        %v1109 = vmul.f32 %v1060, %v1077
        %v1110 = vmul.f32 %v1060, %v1078
        %v1111 = vmul.f32 %v1060, %v1079
        %v1112 = vmul.f32 %v1060, %v1080
        %v1113 = vmul.f32 %v1060, %v1081
        %v1114 = vmul.f32 %v1060, %v1082
        %v1115 = vmul.f32 %v1060, %v1083
        %v1116 = vmul.f32 %v1060, %v1084
        %v1117 = vmul.f32 %v1060, %v1085
        %v1118 = vmul.f32 %v1060, %v1086
        %v1119 = vmul.f32 %v1060, %v1087
        %v1120 = vmul.f32 %v1060, %v1088
        %v1121 = vmul.f32 %v1060, %v1089
        %v1122 = vmul.f32 %v1060, %v1090
        %v1123 = vmul.f32 %v1060, %v1091
        %v1124 = vmul.f32 %v1060, %v1092
        %1125 = vadd.xlane.f32.xlu0 %v1093
        %v1126 = vpop.xlane.xlu0 %1125
        %1127 = vadd.xlane.f32.xlu0 %v1094
        %v1128 = vpop.xlane.xlu0 %1127
        %1129 = vadd.xlane.f32.xlu0 %v1095
        %v1130 = vpop.xlane.xlu0 %1129
        %1131 = vadd.xlane.f32.xlu0 %v1096
        %v1132 = vpop.xlane.xlu0 %1131
        %1133 = vadd.xlane.f32.xlu0 %v1097
        %v1134 = vpop.xlane.xlu0 %1133
        %1135 = vadd.xlane.f32.xlu0 %v1098
        %v1136 = vpop.xlane.xlu0 %1135
        %1137 = vadd.xlane.f32.xlu0 %v1099
        %v1138 = vpop.xlane.xlu0 %1137
        %1139 = vadd.xlane.f32.xlu0 %v1100
        %v1140 = vpop.xlane.xlu0 %1139
        %1141 = vadd.xlane.f32.xlu0 %v1101
        %v1142 = vpop.xlane.xlu0 %1141
        %1143 = vadd.xlane.f32.xlu0 %v1102
        %v1144 = vpop.xlane.xlu0 %1143
        %1145 = vadd.xlane.f32.xlu0 %v1103
        %v1146 = vpop.xlane.xlu0 %1145
        %1147 = vadd.xlane.f32.xlu0 %v1104
        %v1148 = vpop.xlane.xlu0 %1147
        %1149 = vadd.xlane.f32.xlu0 %v1105
        %v1150 = vpop.xlane.xlu0 %1149
        %1151 = vadd.xlane.f32.xlu0 %v1106
        %v1152 = vpop.xlane.xlu0 %1151
        %1153 = vadd.xlane.f32.xlu0 %v1107
        %v1154 = vpop.xlane.xlu0 %1153
        %1155 = vadd.xlane.f32.xlu0 %v1108
        %v1156 = vpop.xlane.xlu0 %1155
        %1157 = vadd.xlane.f32.xlu0 %v1109
        %v1158 = vpop.xlane.xlu0 %1157
        %1159 = vadd.xlane.f32.xlu0 %v1110
        %v1160 = vpop.xlane.xlu0 %1159
        %1161 = vadd.xlane.f32.xlu0 %v1111
        %v1162 = vpop.xlane.xlu0 %1161
        %1163 = vadd.xlane.f32.xlu0 %v1112
        %v1164 = vpop.xlane.xlu0 %1163
        %1165 = vadd.xlane.f32.xlu0 %v1113
        %v1166 = vpop.xlane.xlu0 %1165
        %1167 = vadd.xlane.f32.xlu0 %v1114
        %v1168 = vpop.xlane.xlu0 %1167
        %1169 = vadd.xlane.f32.xlu0 %v1115
        %v1170 = vpop.xlane.xlu0 %1169
        %1171 = vadd.xlane.f32.xlu0 %v1116
        %v1172 = vpop.xlane.xlu0 %1171
        %1173 = vadd.xlane.f32.xlu0 %v1117
        %v1174 = vpop.xlane.xlu0 %1173
        %1175 = vadd.xlane.f32.xlu0 %v1118
        %v1176 = vpop.xlane.xlu0 %1175
        %1177 = vadd.xlane.f32.xlu0 %v1119
        %v1178 = vpop.xlane.xlu0 %1177
        %1179 = vadd.xlane.f32.xlu0 %v1120
        %v1180 = vpop.xlane.xlu0 %1179
        %1181 = vadd.xlane.f32.xlu0 %v1121
        %v1182 = vpop.xlane.xlu0 %1181
        %1183 = vadd.xlane.f32.xlu0 %v1122
        %v1184 = vpop.xlane.xlu0 %1183
        %1185 = vadd.xlane.f32.xlu0 %v1123
        %v1186 = vpop.xlane.xlu0 %1185
        %1187 = vadd.xlane.f32.xlu0 %v1124
        %v1188 = vpop.xlane.xlu0 %1187
        %v1189 = vmul.f32 %v1126, %v1126
        %v1190 = vmul.f32 %v1128, %v1128
        %v1191 = vmul.f32 %v1130, %v1130
        %v1192 = vmul.f32 %v1132, %v1132
        %v1193 = vmul.f32 %v1134, %v1134
        %v1194 = vmul.f32 %v1136, %v1136
        %v1195 = vmul.f32 %v1138, %v1138
        %v1196 = vmul.f32 %v1140, %v1140
        %v1197 = vmul.f32 %v1142, %v1142
        %v1198 = vmul.f32 %v1144, %v1144
        %v1199 = vmul.f32 %v1146, %v1146
        %v1200 = vmul.f32 %v1148, %v1148
        %v1201 = vmul.f32 %v1150, %v1150
        %v1202 = vmul.f32 %v1152, %v1152
        %v1203 = vmul.f32 %v1154, %v1154
        %v1204 = vmul.f32 %v1156, %v1156
        %v1205 = vmul.f32 %v1158, %v1158
        %v1206 = vmul.f32 %v1160, %v1160
        %v1207 = vmul.f32 %v1162, %v1162
        %v1208 = vmul.f32 %v1164, %v1164
        %v1209 = vmul.f32 %v1166, %v1166
        %v1210 = vmul.f32 %v1168, %v1168
        %v1211 = vmul.f32 %v1170, %v1170
        %v1212 = vmul.f32 %v1172, %v1172
        %v1213 = vmul.f32 %v1174, %v1174
        %v1214 = vmul.f32 %v1176, %v1176
        %v1215 = vmul.f32 %v1178, %v1178
        %v1216 = vmul.f32 %v1180, %v1180
        %v1217 = vmul.f32 %v1182, %v1182
        %v1218 = vmul.f32 %v1184, %v1184
        %v1219 = vmul.f32 %v1186, %v1186
        %v1220 = vmul.f32 %v1188, %v1188
        %v1253 = vlaneseq
        %v1254 = vand.u32 %v1253, 127
        %v1255 = vlaneseq
        %v1256 = vshrl.u32 %v1255, 7
        %v1257 = vsub.s32 %v1254, %v1256
        %v1258 = vrot.slane %v1189, %v1257
        %v1259 = vadd.s32 %v1254, 4294967288
        %v1260 = vlaneseq
        %v1261 = vshrl.u32 %v1260, 7
        %v1262 = vsub.s32 %v1259, %v1261
        %v1263 = vrot.slane %v1190, %v1262
        %vm1264 = vcmask 130112
        %v1265 = vsel %vm1264, %v1263, %v1258
        %v1266 = vlaneseq
        %v1267 = vshrl.u32 %v1266, 7
        %v1268 = vsub.s32 %v1254, %v1267
        %v1269 = vrot.slane %v1191, %v1268
        %v1270 = vlaneseq
        %v1271 = vshrl.u32 %v1270, 7
        %v1272 = vsub.s32 %v1259, %v1271
        %v1273 = vrot.slane %v1192, %v1272
        %v1274 = vsel %vm1264, %v1273, %v1269
        %v1275 = vlaneseq
        %v1276 = vshrl.u32 %v1275, 7
        %v1277 = vsub.s32 %v1254, %v1276
        %v1278 = vrot.slane %v1193, %v1277
        %v1279 = vlaneseq
        %v1280 = vshrl.u32 %v1279, 7
        %v1281 = vsub.s32 %v1259, %v1280
        %v1282 = vrot.slane %v1194, %v1281
        %v1283 = vsel %vm1264, %v1282, %v1278
        %v1284 = vlaneseq
        %v1285 = vshrl.u32 %v1284, 7
        %v1286 = vsub.s32 %v1254, %v1285
        %v1287 = vrot.slane %v1195, %v1286
        %v1288 = vlaneseq
        %v1289 = vshrl.u32 %v1288, 7
        %v1290 = vsub.s32 %v1259, %v1289
        %v1291 = vrot.slane %v1196, %v1290
        %v1292 = vsel %vm1264, %v1291, %v1287
        %v1293 = vlaneseq
        %v1294 = vshrl.u32 %v1293, 7
        %v1295 = vsub.s32 %v1254, %v1294
        %v1296 = vrot.slane %v1197, %v1295
        %v1297 = vlaneseq
        %v1298 = vshrl.u32 %v1297, 7
        %v1299 = vsub.s32 %v1259, %v1298
        %v1300 = vrot.slane %v1198, %v1299
        %v1301 = vsel %vm1264, %v1300, %v1296
        %v1302 = vlaneseq
        %v1303 = vshrl.u32 %v1302, 7
        %v1304 = vsub.s32 %v1254, %v1303
        %v1305 = vrot.slane %v1199, %v1304
        %v1306 = vlaneseq
        %v1307 = vshrl.u32 %v1306, 7
        %v1308 = vsub.s32 %v1259, %v1307
        %v1309 = vrot.slane %v1200, %v1308
        %v1310 = vsel %vm1264, %v1309, %v1305
        %v1311 = vlaneseq
        %v1312 = vshrl.u32 %v1311, 7
        %v1313 = vsub.s32 %v1254, %v1312
        %v1314 = vrot.slane %v1201, %v1313
        %v1315 = vlaneseq
        %v1316 = vshrl.u32 %v1315, 7
        %v1317 = vsub.s32 %v1259, %v1316
        %v1318 = vrot.slane %v1202, %v1317
        %v1319 = vsel %vm1264, %v1318, %v1314
        %v1320 = vlaneseq
        %v1321 = vshrl.u32 %v1320, 7
        %v1322 = vsub.s32 %v1254, %v1321
        %v1323 = vrot.slane %v1203, %v1322
        %v1324 = vlaneseq
        %v1325 = vshrl.u32 %v1324, 7
        %v1326 = vsub.s32 %v1259, %v1325
        %v1327 = vrot.slane %v1204, %v1326
        %v1328 = vsel %vm1264, %v1327, %v1323
        %v1329 = vlaneseq
        %v1330 = vshrl.u32 %v1329, 7
        %v1331 = vsub.s32 %v1254, %v1330
        %v1332 = vrot.slane %v1205, %v1331
        %v1333 = vlaneseq
        %v1334 = vshrl.u32 %v1333, 7
        %v1335 = vsub.s32 %v1259, %v1334
        %v1336 = vrot.slane %v1206, %v1335
        %v1337 = vsel %vm1264, %v1336, %v1332
        %v1338 = vlaneseq
        %v1339 = vshrl.u32 %v1338, 7
        %v1340 = vsub.s32 %v1254, %v1339
        %v1341 = vrot.slane %v1207, %v1340
        %v1342 = vlaneseq
        %v1343 = vshrl.u32 %v1342, 7
        %v1344 = vsub.s32 %v1259, %v1343
        %v1345 = vrot.slane %v1208, %v1344
        %v1346 = vsel %vm1264, %v1345, %v1341
        %v1347 = vlaneseq
        %v1348 = vshrl.u32 %v1347, 7
        %v1349 = vsub.s32 %v1254, %v1348
        %v1350 = vrot.slane %v1209, %v1349
        %v1351 = vlaneseq
        %v1352 = vshrl.u32 %v1351, 7
        %v1353 = vsub.s32 %v1259, %v1352
        %v1354 = vrot.slane %v1210, %v1353
        %v1355 = vsel %vm1264, %v1354, %v1350
        %v1356 = vlaneseq
        %v1357 = vshrl.u32 %v1356, 7
        %v1358 = vsub.s32 %v1254, %v1357
        %v1359 = vrot.slane %v1211, %v1358
        %v1360 = vlaneseq
        %v1361 = vshrl.u32 %v1360, 7
        %v1362 = vsub.s32 %v1259, %v1361
        %v1363 = vrot.slane %v1212, %v1362
        %v1364 = vsel %vm1264, %v1363, %v1359
        %v1365 = vlaneseq
        %v1366 = vshrl.u32 %v1365, 7
        %v1367 = vsub.s32 %v1254, %v1366
        %v1368 = vrot.slane %v1213, %v1367
        %v1369 = vlaneseq
        %v1370 = vshrl.u32 %v1369, 7
        %v1371 = vsub.s32 %v1259, %v1370
        %v1372 = vrot.slane %v1214, %v1371
        %v1373 = vsel %vm1264, %v1372, %v1368
        %v1374 = vlaneseq
        %v1375 = vshrl.u32 %v1374, 7
        %v1376 = vsub.s32 %v1254, %v1375
        %v1377 = vrot.slane %v1215, %v1376
        %v1378 = vlaneseq
        %v1379 = vshrl.u32 %v1378, 7
        %v1380 = vsub.s32 %v1259, %v1379
        %v1381 = vrot.slane %v1216, %v1380
        %v1382 = vsel %vm1264, %v1381, %v1377
        %v1383 = vlaneseq
        %v1384 = vshrl.u32 %v1383, 7
        %v1385 = vsub.s32 %v1254, %v1384
        %v1386 = vrot.slane %v1217, %v1385
        %v1387 = vlaneseq
        %v1388 = vshrl.u32 %v1387, 7
        %v1389 = vsub.s32 %v1259, %v1388
        %v1390 = vrot.slane %v1218, %v1389
        %v1391 = vsel %vm1264, %v1390, %v1386
        %v1392 = vlaneseq
        %v1393 = vshrl.u32 %v1392, 7
        %v1394 = vsub.s32 %v1254, %v1393
        %v1395 = vrot.slane %v1219, %v1394
        %v1396 = vlaneseq
        %v1397 = vshrl.u32 %v1396, 7
        %v1398 = vsub.s32 %v1259, %v1397
        %v1399 = vrot.slane %v1220, %v1398
        %v1400 = vsel %vm1264, %v1399, %v1395
        %vm1401 = vcmask 1041409
        %v1402 = vsel %vm1401, %v1274, %v1265
        %vm1403 = vcmask 1042434
        %v1404 = vsel %vm1403, %v1283, %v1402
        %vm1405 = vcmask 1043459
        %v1406 = vsel %vm1405, %v1292, %v1404
        %vm1407 = vcmask 1044484
        %v1408 = vsel %vm1407, %v1301, %v1406
        %vm1409 = vcmask 1045509
        %v1410 = vsel %vm1409, %v1310, %v1408
        %vm1411 = vcmask 1046534
        %v1412 = vsel %vm1411, %v1319, %v1410
        %vm1413 = vcmask 1047559
        %v1414 = vsel %vm1413, %v1328, %v1412
        %v1415 = vsel %vm1401, %v1346, %v1337
        %v1416 = vsel %vm1403, %v1355, %v1415
        %v1417 = vsel %vm1405, %v1364, %v1416
        %v1418 = vsel %vm1407, %v1373, %v1417
        %v1419 = vsel %vm1409, %v1382, %v1418
        %v1420 = vsel %vm1411, %v1391, %v1419
        %v1421 = vsel %vm1413, %v1400, %v1420
        %vm1424 = vcmask 130048
        %v1425 = vsel %vm1424, %v1414, 0.0
        %1426 = vadd.xlane.f32.xlu0 %v1425
        %v1427 = vpop.xlane.xlu0 %1426
        %v1428 = vsel %vm1424, %v1421, 0.0
        %1429 = vadd.xlane.f32.xlu0 %v1428
        %v1430 = vpop.xlane.xlu0 %1429
        %v1433 = vlaneseq
        %v1434 = vshrl.u32 %v1433, 7
        %v1435 = vsub.s32 0, %v1434
        %v1436 = vrot.slane %v1427, %v1435
        %v1437 = vlaneseq
        %v1438 = vshrl.u32 %v1437, 7
        %v1439 = vsub.s32 1, %v1438
        %v1440 = vrot.slane %v1427, %v1439
        %v1441 = vlaneseq
        %v1442 = vshrl.u32 %v1441, 7
        %v1443 = vsub.s32 2, %v1442
        %v1444 = vrot.slane %v1427, %v1443
        %v1445 = vlaneseq
        %v1446 = vshrl.u32 %v1445, 7
        %v1447 = vsub.s32 3, %v1446
        %v1448 = vrot.slane %v1427, %v1447
        %v1449 = vlaneseq
        %v1450 = vshrl.u32 %v1449, 7
        %v1451 = vsub.s32 4, %v1450
        %v1452 = vrot.slane %v1427, %v1451
        %v1453 = vlaneseq
        %v1454 = vshrl.u32 %v1453, 7
        %v1455 = vsub.s32 5, %v1454
        %v1456 = vrot.slane %v1427, %v1455
        %v1457 = vlaneseq
        %v1458 = vshrl.u32 %v1457, 7
        %v1459 = vsub.s32 6, %v1458
        %v1460 = vrot.slane %v1427, %v1459
        %v1461 = vlaneseq
        %v1462 = vshrl.u32 %v1461, 7
        %v1463 = vsub.s32 7, %v1462
        %v1464 = vrot.slane %v1427, %v1463
        %v1465 = vlaneseq
        %v1466 = vshrl.u32 %v1465, 7
        %v1467 = vsub.s32 0, %v1466
        %v1468 = vrot.slane %v1430, %v1467
        %v1469 = vlaneseq
        %v1470 = vshrl.u32 %v1469, 7
        %v1471 = vsub.s32 1, %v1470
        %v1472 = vrot.slane %v1430, %v1471
        %v1473 = vlaneseq
        %v1474 = vshrl.u32 %v1473, 7
        %v1475 = vsub.s32 2, %v1474
        %v1476 = vrot.slane %v1430, %v1475
        %v1477 = vlaneseq
        %v1478 = vshrl.u32 %v1477, 7
        %v1479 = vsub.s32 3, %v1478
        %v1480 = vrot.slane %v1430, %v1479
        %v1481 = vlaneseq
        %v1482 = vshrl.u32 %v1481, 7
        %v1483 = vsub.s32 4, %v1482
        %v1484 = vrot.slane %v1430, %v1483
        %v1485 = vlaneseq
        %v1486 = vshrl.u32 %v1485, 7
        %v1487 = vsub.s32 5, %v1486
        %v1488 = vrot.slane %v1430, %v1487
        %v1489 = vlaneseq
        %v1490 = vshrl.u32 %v1489, 7
        %v1491 = vsub.s32 6, %v1490
        %v1492 = vrot.slane %v1430, %v1491
        %v1493 = vlaneseq
        %v1494 = vshrl.u32 %v1493, 7
        %v1495 = vsub.s32 7, %v1494
        %v1496 = vrot.slane %v1430, %v1495
        %v1513 = vmul.f32 %v1126, %v1436
        %v1514 = vmul.f32 %v1128, %v1436
        %v1515 = vmul.f32 %v1130, %v1440
        %v1516 = vmul.f32 %v1132, %v1440
        %v1517 = vmul.f32 %v1134, %v1444
        %v1518 = vmul.f32 %v1136, %v1444
        %v1519 = vmul.f32 %v1138, %v1448
        %v1520 = vmul.f32 %v1140, %v1448
        %v1521 = vmul.f32 %v1142, %v1452
        %v1522 = vmul.f32 %v1144, %v1452
        %v1523 = vmul.f32 %v1146, %v1456
        %v1524 = vmul.f32 %v1148, %v1456
        %v1525 = vmul.f32 %v1150, %v1460
        %v1526 = vmul.f32 %v1152, %v1460
        %v1527 = vmul.f32 %v1154, %v1464
        %v1528 = vmul.f32 %v1156, %v1464
        %v1529 = vmul.f32 %v1158, %v1468
        %v1530 = vmul.f32 %v1160, %v1468
        %v1531 = vmul.f32 %v1162, %v1472
        %v1532 = vmul.f32 %v1164, %v1472
        %v1533 = vmul.f32 %v1166, %v1476
        %v1534 = vmul.f32 %v1168, %v1476
        %v1535 = vmul.f32 %v1170, %v1480
        %v1536 = vmul.f32 %v1172, %v1480
        %v1537 = vmul.f32 %v1174, %v1484
        %v1538 = vmul.f32 %v1176, %v1484
        %v1539 = vmul.f32 %v1178, %v1488
        %v1540 = vmul.f32 %v1180, %v1488
        %v1541 = vmul.f32 %v1182, %v1492
        %v1542 = vmul.f32 %v1184, %v1492
        %v1543 = vmul.f32 %v1186, %v1496
        %v1544 = vmul.f32 %v1188, %v1496
        %v1545 = vadd.f32 %v1427, 1.0
        %v1546 = vadd.f32 %v1430, 1.0
        %v1547 = vrsqrt.pop %v1427
        %v1548 = vmul.f32 %v1427, %v1547
        %vm1549 = vcmp.eq.f32.partialorder %v1427, inf
        %v1550 = vsel %vm1549, %v1427, %v1548
        %vm1551 = vcmp.eq.f32.partialorder %v1427, 0.0
        %v1552 = vand.u32 %v1427, 2147483648
        %v1553 = vsel %vm1551, %v1552, %v1550
        %v1554 = vrsqrt.pop %v1430
        %v1555 = vmul.f32 %v1430, %v1554
        %vm1556 = vcmp.eq.f32.partialorder %v1430, inf
        %v1557 = vsel %vm1556, %v1430, %v1555
        %vm1558 = vcmp.eq.f32.partialorder %v1430, 0.0
        %v1559 = vand.u32 %v1430, 2147483648
        %v1560 = vsel %vm1558, %v1559, %v1557
        %v1561 = vmul.f32 %v1545, %v1553
        %v1562 = vmul.f32 %v1546, %v1560
        %v1565 = vlaneseq
        %v1566 = vshrl.u32 %v1565, 7
        %v1567 = vsub.s32 0, %v1566
        %v1568 = vrot.slane %v1561, %v1567
        %v1569 = vlaneseq
        %v1570 = vshrl.u32 %v1569, 7
        %v1571 = vsub.s32 1, %v1570
        %v1572 = vrot.slane %v1561, %v1571
        %v1573 = vlaneseq
        %v1574 = vshrl.u32 %v1573, 7
        %v1575 = vsub.s32 2, %v1574
        %v1576 = vrot.slane %v1561, %v1575
        %v1577 = vlaneseq
        %v1578 = vshrl.u32 %v1577, 7
        %v1579 = vsub.s32 3, %v1578
        %v1580 = vrot.slane %v1561, %v1579
        %v1581 = vlaneseq
        %v1582 = vshrl.u32 %v1581, 7
        %v1583 = vsub.s32 4, %v1582
        %v1584 = vrot.slane %v1561, %v1583
        %v1585 = vlaneseq
        %v1586 = vshrl.u32 %v1585, 7
        %v1587 = vsub.s32 5, %v1586
        %v1588 = vrot.slane %v1561, %v1587
        %v1589 = vlaneseq
        %v1590 = vshrl.u32 %v1589, 7
        %v1591 = vsub.s32 6, %v1590
        %v1592 = vrot.slane %v1561, %v1591
        %v1593 = vlaneseq
        %v1594 = vshrl.u32 %v1593, 7
        %v1595 = vsub.s32 7, %v1594
        %v1596 = vrot.slane %v1561, %v1595
        %v1597 = vlaneseq
        %v1598 = vshrl.u32 %v1597, 7
        %v1599 = vsub.s32 0, %v1598
        %v1600 = vrot.slane %v1562, %v1599
        %v1601 = vlaneseq
        %v1602 = vshrl.u32 %v1601, 7
        %v1603 = vsub.s32 1, %v1602
        %v1604 = vrot.slane %v1562, %v1603
        %v1605 = vlaneseq
        %v1606 = vshrl.u32 %v1605, 7
        %v1607 = vsub.s32 2, %v1606
        %v1608 = vrot.slane %v1562, %v1607
        %v1609 = vlaneseq
        %v1610 = vshrl.u32 %v1609, 7
        %v1611 = vsub.s32 3, %v1610
        %v1612 = vrot.slane %v1562, %v1611
        %v1613 = vlaneseq
        %v1614 = vshrl.u32 %v1613, 7
        %v1615 = vsub.s32 4, %v1614
        %v1616 = vrot.slane %v1562, %v1615
        %v1617 = vlaneseq
        %v1618 = vshrl.u32 %v1617, 7
        %v1619 = vsub.s32 5, %v1618
        %v1620 = vrot.slane %v1562, %v1619
        %v1621 = vlaneseq
        %v1622 = vshrl.u32 %v1621, 7
        %v1623 = vsub.s32 6, %v1622
        %v1624 = vrot.slane %v1562, %v1623
        %v1625 = vlaneseq
        %v1626 = vshrl.u32 %v1625, 7
        %v1627 = vsub.s32 7, %v1626
        %v1628 = vrot.slane %v1562, %v1627
        %v1645 = vrcp.pop %v1568
        %v1646 = vmul.f32 %v1513, %v1645
        %v1647 = vmul.f32 %v1514, %v1645
        %v1648 = vrcp.pop %v1572
        %v1649 = vmul.f32 %v1515, %v1648
        %v1650 = vmul.f32 %v1516, %v1648
        %v1651 = vrcp.pop %v1576
        %v1652 = vmul.f32 %v1517, %v1651
        %v1653 = vmul.f32 %v1518, %v1651
        %v1654 = vrcp.pop %v1580
        %v1655 = vmul.f32 %v1519, %v1654
        %v1656 = vmul.f32 %v1520, %v1654
        %v1657 = vrcp.pop %v1584
        %v1658 = vmul.f32 %v1521, %v1657
        %v1659 = vmul.f32 %v1522, %v1657
        %v1660 = vrcp.pop %v1588
        %v1661 = vmul.f32 %v1523, %v1660
        %v1662 = vmul.f32 %v1524, %v1660
        %v1663 = vrcp.pop %v1592
        %v1664 = vmul.f32 %v1525, %v1663
        %v1665 = vmul.f32 %v1526, %v1663
        %v1666 = vrcp.pop %v1596
        %v1667 = vmul.f32 %v1527, %v1666
        %v1668 = vmul.f32 %v1528, %v1666
        %v1669 = vrcp.pop %v1600
        %v1670 = vmul.f32 %v1529, %v1669
        %v1671 = vmul.f32 %v1530, %v1669
        %v1672 = vrcp.pop %v1604
        %v1673 = vmul.f32 %v1531, %v1672
        %v1674 = vmul.f32 %v1532, %v1672
        %v1675 = vrcp.pop %v1608
        %v1676 = vmul.f32 %v1533, %v1675
        %v1677 = vmul.f32 %v1534, %v1675
        %v1678 = vrcp.pop %v1612
        %v1679 = vmul.f32 %v1535, %v1678
        %v1680 = vmul.f32 %v1536, %v1678
        %v1681 = vrcp.pop %v1616
        %v1682 = vmul.f32 %v1537, %v1681
        %v1683 = vmul.f32 %v1538, %v1681
        %v1684 = vrcp.pop %v1620
        %v1685 = vmul.f32 %v1539, %v1684
        %v1686 = vmul.f32 %v1540, %v1684
        %v1687 = vrcp.pop %v1624
        %v1688 = vmul.f32 %v1541, %v1687
        %v1689 = vmul.f32 %v1542, %v1687
        %v1690 = vrcp.pop %v1628
        %v1691 = vmul.f32 %v1543, %v1690
        %v1692 = vmul.f32 %v1544, %v1690
        %1694 = vset.pattern.permute.xlu0 0
        %1695 = vperm.xlu0 %1694, %v1646
        %v1696 = vpop.permute.xlu0 %1695
        %1699 = vset.pattern.permute.xlu0 0
        %1700 = vperm.xlu0 %1699, %v1647
        %v1701 = vpop.permute.xlu0 %1700
        %1704 = vset.pattern.permute.xlu0 0
        %1705 = vperm.xlu0 %1704, %v1649
        %v1706 = vpop.permute.xlu0 %1705
        %1709 = vset.pattern.permute.xlu0 0
        %1710 = vperm.xlu0 %1709, %v1650
        %v1711 = vpop.permute.xlu0 %1710
        %1714 = vset.pattern.permute.xlu0 0
        %1715 = vperm.xlu0 %1714, %v1652
        %v1716 = vpop.permute.xlu0 %1715
        %1719 = vset.pattern.permute.xlu0 0
        %1720 = vperm.xlu0 %1719, %v1653
        %v1721 = vpop.permute.xlu0 %1720
        %1724 = vset.pattern.permute.xlu0 0
        %1725 = vperm.xlu0 %1724, %v1655
        %v1726 = vpop.permute.xlu0 %1725
        %1729 = vset.pattern.permute.xlu0 0
        %1730 = vperm.xlu0 %1729, %v1656
        %v1731 = vpop.permute.xlu0 %1730
        %1734 = vset.pattern.permute.xlu0 0
        %1735 = vperm.xlu0 %1734, %v1658
        %v1736 = vpop.permute.xlu0 %1735
        %1739 = vset.pattern.permute.xlu0 0
        %1740 = vperm.xlu0 %1739, %v1659
        %v1741 = vpop.permute.xlu0 %1740
        %1744 = vset.pattern.permute.xlu0 0
        %1745 = vperm.xlu0 %1744, %v1661
        %v1746 = vpop.permute.xlu0 %1745
        %1749 = vset.pattern.permute.xlu0 0
        %1750 = vperm.xlu0 %1749, %v1662
        %v1751 = vpop.permute.xlu0 %1750
        %1754 = vset.pattern.permute.xlu0 0
        %1755 = vperm.xlu0 %1754, %v1664
        %v1756 = vpop.permute.xlu0 %1755
        %1759 = vset.pattern.permute.xlu0 0
        %1760 = vperm.xlu0 %1759, %v1665
        %v1761 = vpop.permute.xlu0 %1760
        %1764 = vset.pattern.permute.xlu0 0
        %1765 = vperm.xlu0 %1764, %v1667
        %v1766 = vpop.permute.xlu0 %1765
        %1769 = vset.pattern.permute.xlu0 0
        %1770 = vperm.xlu0 %1769, %v1668
        %v1771 = vpop.permute.xlu0 %1770
        %1774 = vset.pattern.permute.xlu0 0
        %1775 = vperm.xlu0 %1774, %v1670
        %v1776 = vpop.permute.xlu0 %1775
        %1779 = vset.pattern.permute.xlu0 0
        %1780 = vperm.xlu0 %1779, %v1671
        %v1781 = vpop.permute.xlu0 %1780
        %1784 = vset.pattern.permute.xlu0 0
        %1785 = vperm.xlu0 %1784, %v1673
        %v1786 = vpop.permute.xlu0 %1785
        %1789 = vset.pattern.permute.xlu0 0
        %1790 = vperm.xlu0 %1789, %v1674
        %v1791 = vpop.permute.xlu0 %1790
        %1794 = vset.pattern.permute.xlu0 0
        %1795 = vperm.xlu0 %1794, %v1676
        %v1796 = vpop.permute.xlu0 %1795
        %1799 = vset.pattern.permute.xlu0 0
        %1800 = vperm.xlu0 %1799, %v1677
        %v1801 = vpop.permute.xlu0 %1800
        %1804 = vset.pattern.permute.xlu0 0
        %1805 = vperm.xlu0 %1804, %v1679
        %v1806 = vpop.permute.xlu0 %1805
        %1809 = vset.pattern.permute.xlu0 0
        %1810 = vperm.xlu0 %1809, %v1680
        %v1811 = vpop.permute.xlu0 %1810
        %1814 = vset.pattern.permute.xlu0 0
        %1815 = vperm.xlu0 %1814, %v1682
        %v1816 = vpop.permute.xlu0 %1815
        %1819 = vset.pattern.permute.xlu0 0
        %1820 = vperm.xlu0 %1819, %v1683
        %v1821 = vpop.permute.xlu0 %1820
        %1824 = vset.pattern.permute.xlu0 0
        %1825 = vperm.xlu0 %1824, %v1685
        %v1826 = vpop.permute.xlu0 %1825
        %1829 = vset.pattern.permute.xlu0 0
        %1830 = vperm.xlu0 %1829, %v1686
        %v1831 = vpop.permute.xlu0 %1830
        %1834 = vset.pattern.permute.xlu0 0
        %1835 = vperm.xlu0 %1834, %v1688
        %v1836 = vpop.permute.xlu0 %1835
        %1839 = vset.pattern.permute.xlu0 0
        %1840 = vperm.xlu0 %1839, %v1689
        %v1841 = vpop.permute.xlu0 %1840
        %1844 = vset.pattern.permute.xlu0 0
        %1845 = vperm.xlu0 %1844, %v1691
        %v1846 = vpop.permute.xlu0 %1845
        %1849 = vset.pattern.permute.xlu0 0
        %1850 = vperm.xlu0 %1849, %v1692
        %v1851 = vpop.permute.xlu0 %1850
        %v1853 = vmul.f32 %v1696, %v1061
        %v1854 = vmul.f32 %v1701, %v1062
        %v1855 = vmul.f32 %v1706, %v1063
        %v1856 = vmul.f32 %v1711, %v1064
        %v1857 = vmul.f32 %v1716, %v1065
        %v1858 = vmul.f32 %v1721, %v1066
        %v1859 = vmul.f32 %v1726, %v1067
        %v1860 = vmul.f32 %v1731, %v1068
        %v1861 = vmul.f32 %v1736, %v1069
        %v1862 = vmul.f32 %v1741, %v1070
        %v1863 = vmul.f32 %v1746, %v1071
        %v1864 = vmul.f32 %v1751, %v1072
        %v1865 = vmul.f32 %v1756, %v1073
        %v1866 = vmul.f32 %v1761, %v1074
        %v1867 = vmul.f32 %v1766, %v1075
        %v1868 = vmul.f32 %v1771, %v1076
        %v1869 = vmul.f32 %v1776, %v1077
        %v1870 = vmul.f32 %v1781, %v1078
        %v1871 = vmul.f32 %v1786, %v1079
        %v1872 = vmul.f32 %v1791, %v1080
        %v1873 = vmul.f32 %v1796, %v1081
        %v1874 = vmul.f32 %v1801, %v1082
        %v1875 = vmul.f32 %v1806, %v1083
        %v1876 = vmul.f32 %v1811, %v1084
        %v1877 = vmul.f32 %v1816, %v1085
        %v1878 = vmul.f32 %v1821, %v1086
        %v1879 = vmul.f32 %v1826, %v1087
        %v1880 = vmul.f32 %v1831, %v1088
        %v1881 = vmul.f32 %v1836, %v1089
        %v1882 = vmul.f32 %v1841, %v1090
        %v1883 = vmul.f32 %v1846, %v1091
        %v1884 = vmul.f32 %v1851, %v1092
        %v1885 = vadd.f32 %v1853, %v1854
        %v1886 = vrot.slane %v1885, 4
        %v1887 = vadd.f32 %v1885, %v1886
        %v1888 = vrot.slane %v1887, 2
        %v1889 = vadd.f32 %v1887, %v1888
        %v1890 = vrot.slane %v1889, 1
        %v1891 = vadd.f32 %v1889, %v1890
        %v1892 = vadd.f32 %v1855, %v1856
        %v1893 = vrot.slane %v1892, 4
        %v1894 = vadd.f32 %v1892, %v1893
        %v1895 = vrot.slane %v1894, 2
        %v1896 = vadd.f32 %v1894, %v1895
        %v1897 = vrot.slane %v1896, 1
        %v1898 = vadd.f32 %v1896, %v1897
        %v1899 = vadd.f32 %v1857, %v1858
        %v1900 = vrot.slane %v1899, 4
        %v1901 = vadd.f32 %v1899, %v1900
        %v1902 = vrot.slane %v1901, 2
        %v1903 = vadd.f32 %v1901, %v1902
        %v1904 = vrot.slane %v1903, 1
        %v1905 = vadd.f32 %v1903, %v1904
        %v1906 = vadd.f32 %v1859, %v1860
        %v1907 = vrot.slane %v1906, 4
        %v1908 = vadd.f32 %v1906, %v1907
        %v1909 = vrot.slane %v1908, 2
        %v1910 = vadd.f32 %v1908, %v1909
        %v1911 = vrot.slane %v1910, 1
        %v1912 = vadd.f32 %v1910, %v1911
        %v1913 = vadd.f32 %v1861, %v1862
        %v1914 = vrot.slane %v1913, 4
        %v1915 = vadd.f32 %v1913, %v1914
        %v1916 = vrot.slane %v1915, 2
        %v1917 = vadd.f32 %v1915, %v1916
        %v1918 = vrot.slane %v1917, 1
        %v1919 = vadd.f32 %v1917, %v1918
        %v1920 = vadd.f32 %v1863, %v1864
        %v1921 = vrot.slane %v1920, 4
        %v1922 = vadd.f32 %v1920, %v1921
        %v1923 = vrot.slane %v1922, 2
        %v1924 = vadd.f32 %v1922, %v1923
        %v1925 = vrot.slane %v1924, 1
        %v1926 = vadd.f32 %v1924, %v1925
        %v1927 = vadd.f32 %v1865, %v1866
        %v1928 = vrot.slane %v1927, 4
        %v1929 = vadd.f32 %v1927, %v1928
        %v1930 = vrot.slane %v1929, 2
        %v1931 = vadd.f32 %v1929, %v1930
        %v1932 = vrot.slane %v1931, 1
        %v1933 = vadd.f32 %v1931, %v1932
        %v1934 = vadd.f32 %v1867, %v1868
        %v1935 = vrot.slane %v1934, 4
        %v1936 = vadd.f32 %v1934, %v1935
        %v1937 = vrot.slane %v1936, 2
        %v1938 = vadd.f32 %v1936, %v1937
        %v1939 = vrot.slane %v1938, 1
        %v1940 = vadd.f32 %v1938, %v1939
        %v1941 = vadd.f32 %v1869, %v1870
        %v1942 = vrot.slane %v1941, 4
        %v1943 = vadd.f32 %v1941, %v1942
        %v1944 = vrot.slane %v1943, 2
        %v1945 = vadd.f32 %v1943, %v1944
        %v1946 = vrot.slane %v1945, 1
        %v1947 = vadd.f32 %v1945, %v1946
        %v1948 = vadd.f32 %v1871, %v1872
        %v1949 = vrot.slane %v1948, 4
        %v1950 = vadd.f32 %v1948, %v1949
        %v1951 = vrot.slane %v1950, 2
        %v1952 = vadd.f32 %v1950, %v1951
        %v1953 = vrot.slane %v1952, 1
        %v1954 = vadd.f32 %v1952, %v1953
        %v1955 = vadd.f32 %v1873, %v1874
        %v1956 = vrot.slane %v1955, 4
        %v1957 = vadd.f32 %v1955, %v1956
        %v1958 = vrot.slane %v1957, 2
        %v1959 = vadd.f32 %v1957, %v1958
        %v1960 = vrot.slane %v1959, 1
        %v1961 = vadd.f32 %v1959, %v1960
        %v1962 = vadd.f32 %v1875, %v1876
        %v1963 = vrot.slane %v1962, 4
        %v1964 = vadd.f32 %v1962, %v1963
        %v1965 = vrot.slane %v1964, 2
        %v1966 = vadd.f32 %v1964, %v1965
        %v1967 = vrot.slane %v1966, 1
        %v1968 = vadd.f32 %v1966, %v1967
        %v1969 = vadd.f32 %v1877, %v1878
        %v1970 = vrot.slane %v1969, 4
        %v1971 = vadd.f32 %v1969, %v1970
        %v1972 = vrot.slane %v1971, 2
        %v1973 = vadd.f32 %v1971, %v1972
        %v1974 = vrot.slane %v1973, 1
        %v1975 = vadd.f32 %v1973, %v1974
        %v1976 = vadd.f32 %v1879, %v1880
        %v1977 = vrot.slane %v1976, 4
        %v1978 = vadd.f32 %v1976, %v1977
        %v1979 = vrot.slane %v1978, 2
        %v1980 = vadd.f32 %v1978, %v1979
        %v1981 = vrot.slane %v1980, 1
        %v1982 = vadd.f32 %v1980, %v1981
        %v1983 = vadd.f32 %v1881, %v1882
        %v1984 = vrot.slane %v1983, 4
        %v1985 = vadd.f32 %v1983, %v1984
        %v1986 = vrot.slane %v1985, 2
        %v1987 = vadd.f32 %v1985, %v1986
        %v1988 = vrot.slane %v1987, 1
        %v1989 = vadd.f32 %v1987, %v1988
        %v1990 = vadd.f32 %v1883, %v1884
        %v1991 = vrot.slane %v1990, 4
        %v1992 = vadd.f32 %v1990, %v1991
        %v1993 = vrot.slane %v1992, 2
        %v1994 = vadd.f32 %v1992, %v1993
        %v1995 = vrot.slane %v1994, 1
        %v1996 = vadd.f32 %v1994, %v1995
        %v1997 = vadd.f32 %v1891, 0.0
        %v1998 = vadd.f32 %v1898, 0.0
        %v1999 = vadd.f32 %v1905, 0.0
        %v2000 = vadd.f32 %v1912, 0.0
        %v2001 = vadd.f32 %v1919, 0.0
        %v2002 = vadd.f32 %v1926, 0.0
        %v2003 = vadd.f32 %v1933, 0.0
        %v2004 = vadd.f32 %v1940, 0.0
        %v2005 = vadd.f32 %v1947, 0.0
        %v2006 = vadd.f32 %v1954, 0.0
        %v2007 = vadd.f32 %v1961, 0.0
        %v2008 = vadd.f32 %v1968, 0.0
        %v2009 = vadd.f32 %v1975, 0.0
        %v2010 = vadd.f32 %v1982, 0.0
        %v2011 = vadd.f32 %v1989, 0.0
        %v2012 = vadd.f32 %v1996, 0.0
        %v2013 = vmax.f32 %v1997, %v2001
        %v2014 = vmax.f32 %v1998, %v2002
        %v2015 = vmax.f32 %v1999, %v2003
        %v2016 = vmax.f32 %v2000, %v2004
        %v2017 = vmax.f32 %v2013, %v2005
        %v2018 = vmax.f32 %v2014, %v2006
        %v2019 = vmax.f32 %v2015, %v2007
        %v2020 = vmax.f32 %v2016, %v2008
        %v2021 = vmax.f32 %v2017, %v2009
        %v2022 = vmax.f32 %v2018, %v2010
        %v2023 = vmax.f32 %v2019, %v2011
        %v2024 = vmax.f32 %v2020, %v2012
        %v2025 = vmax.f32 %v2021, %v2022
        %v2026 = vmax.f32 %v2023, %v2024
        %v2027 = vmax.f32 %v2025, %v2026
        %v2028 = vsub.f32 %v1997, %v2027
        %v2029 = vsub.f32 %v1998, %v2027
        %v2030 = vsub.f32 %v1999, %v2027
        %v2031 = vsub.f32 %v2000, %v2027
        %v2032 = vsub.f32 %v2001, %v2027
        %v2033 = vsub.f32 %v2002, %v2027
        %v2034 = vsub.f32 %v2003, %v2027
        %v2035 = vsub.f32 %v2004, %v2027
        %v2036 = vsub.f32 %v2005, %v2027
        %v2037 = vsub.f32 %v2006, %v2027
        %v2038 = vsub.f32 %v2007, %v2027
        %v2039 = vsub.f32 %v2008, %v2027
        %v2040 = vsub.f32 %v2009, %v2027
        %v2041 = vsub.f32 %v2010, %v2027
        %v2042 = vsub.f32 %v2011, %v2027
        %v2043 = vsub.f32 %v2012, %v2027
        %v2044 = vmul.f32 %v2028, 1.442695
        %v2045 = vpow.pop %v2044
        %v2046 = vmul.f32 %v2029, 1.442695
        %v2047 = vpow.pop %v2046
        %v2048 = vmul.f32 %v2030, 1.442695
        %v2049 = vpow.pop %v2048
        %v2050 = vmul.f32 %v2031, 1.442695
        %v2051 = vpow.pop %v2050
        %v2052 = vmul.f32 %v2032, 1.442695
        %v2053 = vpow.pop %v2052
        %v2054 = vmul.f32 %v2033, 1.442695
        %v2055 = vpow.pop %v2054
        %v2056 = vmul.f32 %v2034, 1.442695
        %v2057 = vpow.pop %v2056
        %v2058 = vmul.f32 %v2035, 1.442695
        %v2059 = vpow.pop %v2058
        %v2060 = vmul.f32 %v2036, 1.442695
        %v2061 = vpow.pop %v2060
        %v2062 = vmul.f32 %v2037, 1.442695
        %v2063 = vpow.pop %v2062
        %v2064 = vmul.f32 %v2038, 1.442695
        %v2065 = vpow.pop %v2064
        %v2066 = vmul.f32 %v2039, 1.442695
        %v2067 = vpow.pop %v2066
        %v2068 = vmul.f32 %v2040, 1.442695
        %v2069 = vpow.pop %v2068
        %v2070 = vmul.f32 %v2041, 1.442695
        %v2071 = vpow.pop %v2070
        %v2072 = vmul.f32 %v2042, 1.442695
        %v2073 = vpow.pop %v2072
        %v2074 = vmul.f32 %v2043, 1.442695
        %v2075 = vpow.pop %v2074
        %v2092 = vrot.slane %v2047, 7
        %v2093 = vsel %vm1401, %v2092, %v2045
        %v2094 = vrot.slane %v2049, 6
        %v2095 = vsel %vm1403, %v2094, %v2093
        %v2096 = vrot.slane %v2051, 5
        %v2097 = vsel %vm1405, %v2096, %v2095
        %v2098 = vrot.slane %v2053, 4
        %v2099 = vsel %vm1407, %v2098, %v2097
        %v2100 = vrot.slane %v2055, 3
        %v2101 = vsel %vm1409, %v2100, %v2099
        %v2102 = vrot.slane %v2057, 2
        %v2103 = vsel %vm1411, %v2102, %v2101
        %v2104 = vrot.slane %v2059, 1
        %v2105 = vsel %vm1413, %v2104, %v2103
        %v2106 = vrot.slane %v2063, 7
        %v2107 = vsel %vm1401, %v2106, %v2061
        %v2108 = vrot.slane %v2065, 6
        %v2109 = vsel %vm1403, %v2108, %v2107
        %v2110 = vrot.slane %v2067, 5
        %v2111 = vsel %vm1405, %v2110, %v2109
        %v2112 = vrot.slane %v2069, 4
        %v2113 = vsel %vm1407, %v2112, %v2111
        %v2114 = vrot.slane %v2071, 3
        %v2115 = vsel %vm1409, %v2114, %v2113
        %v2116 = vrot.slane %v2073, 2
        %v2117 = vsel %vm1411, %v2116, %v2115
        %v2118 = vrot.slane %v2075, 1
        %v2119 = vsel %vm1413, %v2118, %v2117
        %v2122 = vadd.f32 %v2105, %v2119
        %v2123 = vrot.slane %v2122, 4
        %v2124 = vadd.f32 %v2122, %v2123
        %v2125 = vrot.slane %v2124, 2
        %v2126 = vadd.f32 %v2124, %v2125
        %v2127 = vrot.slane %v2126, 1
        %v2128 = vadd.f32 %v2126, %v2127
        %v2129 = vlaneseq
        %v2130 = vshrl.u32 %v2129, 7
        %v2131 = vsub.s32 0, %v2130
        %v2132 = vrot.slane %v2128, %v2131
        %v2133 = vrcp.pop %v2132
        %v2134 = vmul.f32 %v2045, %v2133
        %v2135 = vmul.f32 %v2047, %v2133
        %v2136 = vmul.f32 %v2049, %v2133
        %v2137 = vmul.f32 %v2051, %v2133
        %v2138 = vmul.f32 %v2053, %v2133
        %v2139 = vmul.f32 %v2055, %v2133
        %v2140 = vmul.f32 %v2057, %v2133
        %v2141 = vmul.f32 %v2059, %v2133
        %v2142 = vmul.f32 %v2061, %v2133
        %v2143 = vmul.f32 %v2063, %v2133
        %v2144 = vmul.f32 %v2065, %v2133
        %v2145 = vmul.f32 %v2067, %v2133
        %v2146 = vmul.f32 %v2069, %v2133
        %v2147 = vmul.f32 %v2071, %v2133
        %v2148 = vmul.f32 %v2073, %v2133
        %v2149 = vmul.f32 %v2075, %v2133
        %v2150 = vlaneseq
        %v2151 = vshrl.u32 %v2150, 7
        %v2152 = vsub.s32 0, %v2151
        %v2153 = vrot.slane %v2134, %v2152
        %v2154 = vlaneseq
        %v2155 = vshrl.u32 %v2154, 7
        %v2156 = vsub.s32 0, %v2155
        %v2157 = vrot.slane %v2135, %v2156
        %v2158 = vlaneseq
        %v2159 = vshrl.u32 %v2158, 7
        %v2160 = vsub.s32 0, %v2159
        %v2161 = vrot.slane %v2136, %v2160
        %v2162 = vlaneseq
        %v2163 = vshrl.u32 %v2162, 7
        %v2164 = vsub.s32 0, %v2163
        %v2165 = vrot.slane %v2137, %v2164
        %v2166 = vlaneseq
        %v2167 = vshrl.u32 %v2166, 7
        %v2168 = vsub.s32 0, %v2167
        %v2169 = vrot.slane %v2138, %v2168
        %v2170 = vlaneseq
        %v2171 = vshrl.u32 %v2170, 7
        %v2172 = vsub.s32 0, %v2171
        %v2173 = vrot.slane %v2139, %v2172
        %v2174 = vlaneseq
        %v2175 = vshrl.u32 %v2174, 7
        %v2176 = vsub.s32 0, %v2175
        %v2177 = vrot.slane %v2140, %v2176
        %v2178 = vlaneseq
        %v2179 = vshrl.u32 %v2178, 7
        %v2180 = vsub.s32 0, %v2179
        %v2181 = vrot.slane %v2141, %v2180
        %v2182 = vlaneseq
        %v2183 = vshrl.u32 %v2182, 7
        %v2184 = vsub.s32 0, %v2183
        %v2185 = vrot.slane %v2142, %v2184
        %v2186 = vlaneseq
        %v2187 = vshrl.u32 %v2186, 7
        %v2188 = vsub.s32 0, %v2187
        %v2189 = vrot.slane %v2143, %v2188
        %v2190 = vlaneseq
        %v2191 = vshrl.u32 %v2190, 7
        %v2192 = vsub.s32 0, %v2191
        %v2193 = vrot.slane %v2144, %v2192
        %v2194 = vlaneseq
        %v2195 = vshrl.u32 %v2194, 7
        %v2196 = vsub.s32 0, %v2195
        %v2197 = vrot.slane %v2145, %v2196
        %v2198 = vlaneseq
        %v2199 = vshrl.u32 %v2198, 7
        %v2200 = vsub.s32 0, %v2199
        %v2201 = vrot.slane %v2146, %v2200
        %v2202 = vlaneseq
        %v2203 = vshrl.u32 %v2202, 7
        %v2204 = vsub.s32 0, %v2203
        %v2205 = vrot.slane %v2147, %v2204
        %v2206 = vlaneseq
        %v2207 = vshrl.u32 %v2206, 7
        %v2208 = vsub.s32 0, %v2207
        %v2209 = vrot.slane %v2148, %v2208
        %v2210 = vlaneseq
        %v2211 = vshrl.u32 %v2210, 7
        %v2212 = vsub.s32 0, %v2211
        %v2213 = vrot.slane %v2149, %v2212
        %v2214 = vmul.f32 %v2153, %v1061
        %v2215 = vmul.f32 %v2153, %v1062
        %v2216 = vmul.f32 %v2157, %v1063
        %v2217 = vmul.f32 %v2157, %v1064
        %v2218 = vmul.f32 %v2161, %v1065
        %v2219 = vmul.f32 %v2161, %v1066
        %v2220 = vmul.f32 %v2165, %v1067
        %v2221 = vmul.f32 %v2165, %v1068
        %v2222 = vmul.f32 %v2169, %v1069
        %v2223 = vmul.f32 %v2169, %v1070
        %v2224 = vmul.f32 %v2173, %v1071
        %v2225 = vmul.f32 %v2173, %v1072
        %v2226 = vmul.f32 %v2177, %v1073
        %v2227 = vmul.f32 %v2177, %v1074
        %v2228 = vmul.f32 %v2181, %v1075
        %v2229 = vmul.f32 %v2181, %v1076
        %v2230 = vmul.f32 %v2185, %v1077
        %v2231 = vmul.f32 %v2185, %v1078
        %v2232 = vmul.f32 %v2189, %v1079
        %v2233 = vmul.f32 %v2189, %v1080
        %v2234 = vmul.f32 %v2193, %v1081
        %v2235 = vmul.f32 %v2193, %v1082
        %v2236 = vmul.f32 %v2197, %v1083
        %v2237 = vmul.f32 %v2197, %v1084
        %v2238 = vmul.f32 %v2201, %v1085
        %v2239 = vmul.f32 %v2201, %v1086
        %v2240 = vmul.f32 %v2205, %v1087
        %v2241 = vmul.f32 %v2205, %v1088
        %v2242 = vmul.f32 %v2209, %v1089
        %v2243 = vmul.f32 %v2209, %v1090
        %v2244 = vmul.f32 %v2213, %v1091
        %v2245 = vmul.f32 %v2213, %v1092
        %2246 = vadd.xlane.f32.xlu0 %v2214
        %v2247 = vpop.xlane.xlu0 %2246
        %2248 = vadd.xlane.f32.xlu0 %v2215
        %v2249 = vpop.xlane.xlu0 %2248
        %2250 = vadd.xlane.f32.xlu0 %v2216
        %v2251 = vpop.xlane.xlu0 %2250
        %2252 = vadd.xlane.f32.xlu0 %v2217
        %v2253 = vpop.xlane.xlu0 %2252
        %2254 = vadd.xlane.f32.xlu0 %v2218
        %v2255 = vpop.xlane.xlu0 %2254
        %2256 = vadd.xlane.f32.xlu0 %v2219
        %v2257 = vpop.xlane.xlu0 %2256
        %2258 = vadd.xlane.f32.xlu0 %v2220
        %v2259 = vpop.xlane.xlu0 %2258
        %2260 = vadd.xlane.f32.xlu0 %v2221
        %v2261 = vpop.xlane.xlu0 %2260
        %2262 = vadd.xlane.f32.xlu0 %v2222
        %v2263 = vpop.xlane.xlu0 %2262
        %2264 = vadd.xlane.f32.xlu0 %v2223
        %v2265 = vpop.xlane.xlu0 %2264
        %2266 = vadd.xlane.f32.xlu0 %v2224
        %v2267 = vpop.xlane.xlu0 %2266
        %2268 = vadd.xlane.f32.xlu0 %v2225
        %v2269 = vpop.xlane.xlu0 %2268
        %2270 = vadd.xlane.f32.xlu0 %v2226
        %v2271 = vpop.xlane.xlu0 %2270
        %2272 = vadd.xlane.f32.xlu0 %v2227
        %v2273 = vpop.xlane.xlu0 %2272
        %2274 = vadd.xlane.f32.xlu0 %v2228
        %v2275 = vpop.xlane.xlu0 %2274
        %2276 = vadd.xlane.f32.xlu0 %v2229
        %v2277 = vpop.xlane.xlu0 %2276
        %2278 = vadd.xlane.f32.xlu0 %v2230
        %v2279 = vpop.xlane.xlu0 %2278
        %2280 = vadd.xlane.f32.xlu0 %v2231
        %v2281 = vpop.xlane.xlu0 %2280
        %2282 = vadd.xlane.f32.xlu0 %v2232
        %v2283 = vpop.xlane.xlu0 %2282
        %2284 = vadd.xlane.f32.xlu0 %v2233
        %v2285 = vpop.xlane.xlu0 %2284
        %2286 = vadd.xlane.f32.xlu0 %v2234
        %v2287 = vpop.xlane.xlu0 %2286
        %2288 = vadd.xlane.f32.xlu0 %v2235
        %v2289 = vpop.xlane.xlu0 %2288
        %2290 = vadd.xlane.f32.xlu0 %v2236
        %v2291 = vpop.xlane.xlu0 %2290
        %2292 = vadd.xlane.f32.xlu0 %v2237
        %v2293 = vpop.xlane.xlu0 %2292
        %2294 = vadd.xlane.f32.xlu0 %v2238
        %v2295 = vpop.xlane.xlu0 %2294
        %2296 = vadd.xlane.f32.xlu0 %v2239
        %v2297 = vpop.xlane.xlu0 %2296
        %2298 = vadd.xlane.f32.xlu0 %v2240
        %v2299 = vpop.xlane.xlu0 %2298
        %2300 = vadd.xlane.f32.xlu0 %v2241
        %v2301 = vpop.xlane.xlu0 %2300
        %2302 = vadd.xlane.f32.xlu0 %v2242
        %v2303 = vpop.xlane.xlu0 %2302
        %2304 = vadd.xlane.f32.xlu0 %v2243
        %v2305 = vpop.xlane.xlu0 %2304
        %2306 = vadd.xlane.f32.xlu0 %v2244
        %v2307 = vpop.xlane.xlu0 %2306
        %2308 = vadd.xlane.f32.xlu0 %v2245
        %v2309 = vpop.xlane.xlu0 %2308
        %v2310 = vmul.f32 %v2247, %v2247
        %v2311 = vmul.f32 %v2249, %v2249
        %v2312 = vmul.f32 %v2251, %v2251
        %v2313 = vmul.f32 %v2253, %v2253
        %v2314 = vmul.f32 %v2255, %v2255
        %v2315 = vmul.f32 %v2257, %v2257
        %v2316 = vmul.f32 %v2259, %v2259
        %v2317 = vmul.f32 %v2261, %v2261
        %v2318 = vmul.f32 %v2263, %v2263
        %v2319 = vmul.f32 %v2265, %v2265
        %v2320 = vmul.f32 %v2267, %v2267
        %v2321 = vmul.f32 %v2269, %v2269
        %v2322 = vmul.f32 %v2271, %v2271
        %v2323 = vmul.f32 %v2273, %v2273
        %v2324 = vmul.f32 %v2275, %v2275
        %v2325 = vmul.f32 %v2277, %v2277
        %v2326 = vmul.f32 %v2279, %v2279
        %v2327 = vmul.f32 %v2281, %v2281
        %v2328 = vmul.f32 %v2283, %v2283
        %v2329 = vmul.f32 %v2285, %v2285
        %v2330 = vmul.f32 %v2287, %v2287
        %v2331 = vmul.f32 %v2289, %v2289
        %v2332 = vmul.f32 %v2291, %v2291
        %v2333 = vmul.f32 %v2293, %v2293
        %v2334 = vmul.f32 %v2295, %v2295
        %v2335 = vmul.f32 %v2297, %v2297
        %v2336 = vmul.f32 %v2299, %v2299
        %v2337 = vmul.f32 %v2301, %v2301
        %v2338 = vmul.f32 %v2303, %v2303
        %v2339 = vmul.f32 %v2305, %v2305
        %v2340 = vmul.f32 %v2307, %v2307
        %v2341 = vmul.f32 %v2309, %v2309
        %v2374 = vlaneseq
        %v2375 = vshrl.u32 %v2374, 7
        %v2376 = vsub.s32 %v1254, %v2375
        %v2377 = vrot.slane %v2310, %v2376
        %v2378 = vlaneseq
        %v2379 = vshrl.u32 %v2378, 7
        %v2380 = vsub.s32 %v1259, %v2379
        %v2381 = vrot.slane %v2311, %v2380
        %v2382 = vsel %vm1264, %v2381, %v2377
        %v2383 = vlaneseq
        %v2384 = vshrl.u32 %v2383, 7
        %v2385 = vsub.s32 %v1254, %v2384
        %v2386 = vrot.slane %v2312, %v2385
        %v2387 = vlaneseq
        %v2388 = vshrl.u32 %v2387, 7
        %v2389 = vsub.s32 %v1259, %v2388
        %v2390 = vrot.slane %v2313, %v2389
        %v2391 = vsel %vm1264, %v2390, %v2386
        %v2392 = vlaneseq
        %v2393 = vshrl.u32 %v2392, 7
        %v2394 = vsub.s32 %v1254, %v2393
        %v2395 = vrot.slane %v2314, %v2394
        %v2396 = vlaneseq
        %v2397 = vshrl.u32 %v2396, 7
        %v2398 = vsub.s32 %v1259, %v2397
        %v2399 = vrot.slane %v2315, %v2398
        %v2400 = vsel %vm1264, %v2399, %v2395
        %v2401 = vlaneseq
        %v2402 = vshrl.u32 %v2401, 7
        %v2403 = vsub.s32 %v1254, %v2402
        %v2404 = vrot.slane %v2316, %v2403
        %v2405 = vlaneseq
        %v2406 = vshrl.u32 %v2405, 7
        %v2407 = vsub.s32 %v1259, %v2406
        %v2408 = vrot.slane %v2317, %v2407
        %v2409 = vsel %vm1264, %v2408, %v2404
        %v2410 = vlaneseq
        %v2411 = vshrl.u32 %v2410, 7
        %v2412 = vsub.s32 %v1254, %v2411
        %v2413 = vrot.slane %v2318, %v2412
        %v2414 = vlaneseq
        %v2415 = vshrl.u32 %v2414, 7
        %v2416 = vsub.s32 %v1259, %v2415
        %v2417 = vrot.slane %v2319, %v2416
        %v2418 = vsel %vm1264, %v2417, %v2413
        %v2419 = vlaneseq
        %v2420 = vshrl.u32 %v2419, 7
        %v2421 = vsub.s32 %v1254, %v2420
        %v2422 = vrot.slane %v2320, %v2421
        %v2423 = vlaneseq
        %v2424 = vshrl.u32 %v2423, 7
        %v2425 = vsub.s32 %v1259, %v2424
        %v2426 = vrot.slane %v2321, %v2425
        %v2427 = vsel %vm1264, %v2426, %v2422
        %v2428 = vlaneseq
        %v2429 = vshrl.u32 %v2428, 7
        %v2430 = vsub.s32 %v1254, %v2429
        %v2431 = vrot.slane %v2322, %v2430
        %v2432 = vlaneseq
        %v2433 = vshrl.u32 %v2432, 7
        %v2434 = vsub.s32 %v1259, %v2433
        %v2435 = vrot.slane %v2323, %v2434
        %v2436 = vsel %vm1264, %v2435, %v2431
        %v2437 = vlaneseq
        %v2438 = vshrl.u32 %v2437, 7
        %v2439 = vsub.s32 %v1254, %v2438
        %v2440 = vrot.slane %v2324, %v2439
        %v2441 = vlaneseq
        %v2442 = vshrl.u32 %v2441, 7
        %v2443 = vsub.s32 %v1259, %v2442
        %v2444 = vrot.slane %v2325, %v2443
        %v2445 = vsel %vm1264, %v2444, %v2440
        %v2446 = vlaneseq
        %v2447 = vshrl.u32 %v2446, 7
        %v2448 = vsub.s32 %v1254, %v2447
        %v2449 = vrot.slane %v2326, %v2448
        %v2450 = vlaneseq
        %v2451 = vshrl.u32 %v2450, 7
        %v2452 = vsub.s32 %v1259, %v2451
        %v2453 = vrot.slane %v2327, %v2452
        %v2454 = vsel %vm1264, %v2453, %v2449
        %v2455 = vlaneseq
        %v2456 = vshrl.u32 %v2455, 7
        %v2457 = vsub.s32 %v1254, %v2456
        %v2458 = vrot.slane %v2328, %v2457
        %v2459 = vlaneseq
        %v2460 = vshrl.u32 %v2459, 7
        %v2461 = vsub.s32 %v1259, %v2460
        %v2462 = vrot.slane %v2329, %v2461
        %v2463 = vsel %vm1264, %v2462, %v2458
        %v2464 = vlaneseq
        %v2465 = vshrl.u32 %v2464, 7
        %v2466 = vsub.s32 %v1254, %v2465
        %v2467 = vrot.slane %v2330, %v2466
        %v2468 = vlaneseq
        %v2469 = vshrl.u32 %v2468, 7
        %v2470 = vsub.s32 %v1259, %v2469
        %v2471 = vrot.slane %v2331, %v2470
        %v2472 = vsel %vm1264, %v2471, %v2467
        %v2473 = vlaneseq
        %v2474 = vshrl.u32 %v2473, 7
        %v2475 = vsub.s32 %v1254, %v2474
        %v2476 = vrot.slane %v2332, %v2475
        %v2477 = vlaneseq
        %v2478 = vshrl.u32 %v2477, 7
        %v2479 = vsub.s32 %v1259, %v2478
        %v2480 = vrot.slane %v2333, %v2479
        %v2481 = vsel %vm1264, %v2480, %v2476
        %v2482 = vlaneseq
        %v2483 = vshrl.u32 %v2482, 7
        %v2484 = vsub.s32 %v1254, %v2483
        %v2485 = vrot.slane %v2334, %v2484
        %v2486 = vlaneseq
        %v2487 = vshrl.u32 %v2486, 7
        %v2488 = vsub.s32 %v1259, %v2487
        %v2489 = vrot.slane %v2335, %v2488
        %v2490 = vsel %vm1264, %v2489, %v2485
        %v2491 = vlaneseq
        %v2492 = vshrl.u32 %v2491, 7
        %v2493 = vsub.s32 %v1254, %v2492
        %v2494 = vrot.slane %v2336, %v2493
        %v2495 = vlaneseq
        %v2496 = vshrl.u32 %v2495, 7
        %v2497 = vsub.s32 %v1259, %v2496
        %v2498 = vrot.slane %v2337, %v2497
        %v2499 = vsel %vm1264, %v2498, %v2494
        %v2500 = vlaneseq
        %v2501 = vshrl.u32 %v2500, 7
        %v2502 = vsub.s32 %v1254, %v2501
        %v2503 = vrot.slane %v2338, %v2502
        %v2504 = vlaneseq
        %v2505 = vshrl.u32 %v2504, 7
        %v2506 = vsub.s32 %v1259, %v2505
        %v2507 = vrot.slane %v2339, %v2506
        %v2508 = vsel %vm1264, %v2507, %v2503
        %v2509 = vlaneseq
        %v2510 = vshrl.u32 %v2509, 7
        %v2511 = vsub.s32 %v1254, %v2510
        %v2512 = vrot.slane %v2340, %v2511
        %v2513 = vlaneseq
        %v2514 = vshrl.u32 %v2513, 7
        %v2515 = vsub.s32 %v1259, %v2514
        %v2516 = vrot.slane %v2341, %v2515
        %v2517 = vsel %vm1264, %v2516, %v2512
        %v2518 = vsel %vm1401, %v2391, %v2382
        %v2519 = vsel %vm1403, %v2400, %v2518
        %v2520 = vsel %vm1405, %v2409, %v2519
        %v2521 = vsel %vm1407, %v2418, %v2520
        %v2522 = vsel %vm1409, %v2427, %v2521
        %v2523 = vsel %vm1411, %v2436, %v2522
        %v2524 = vsel %vm1413, %v2445, %v2523
        %v2525 = vsel %vm1401, %v2463, %v2454
        %v2526 = vsel %vm1403, %v2472, %v2525
        %v2527 = vsel %vm1405, %v2481, %v2526
        %v2528 = vsel %vm1407, %v2490, %v2527
        %v2529 = vsel %vm1409, %v2499, %v2528
        %v2530 = vsel %vm1411, %v2508, %v2529
        %v2531 = vsel %vm1413, %v2517, %v2530
        %v2534 = vsel %vm1424, %v2524, 0.0
        %2535 = vadd.xlane.f32.xlu0 %v2534
        %v2536 = vpop.xlane.xlu0 %2535
        %v2537 = vsel %vm1424, %v2531, 0.0
        %2538 = vadd.xlane.f32.xlu0 %v2537
        %v2539 = vpop.xlane.xlu0 %2538
        %v2542 = vlaneseq
        %v2543 = vshrl.u32 %v2542, 7
        %v2544 = vsub.s32 0, %v2543
        %v2545 = vrot.slane %v2536, %v2544
        %v2546 = vlaneseq
        %v2547 = vshrl.u32 %v2546, 7
        %v2548 = vsub.s32 1, %v2547
        %v2549 = vrot.slane %v2536, %v2548
        %v2550 = vlaneseq
        %v2551 = vshrl.u32 %v2550, 7
        %v2552 = vsub.s32 2, %v2551
        %v2553 = vrot.slane %v2536, %v2552
        %v2554 = vlaneseq
        %v2555 = vshrl.u32 %v2554, 7
        %v2556 = vsub.s32 3, %v2555
        %v2557 = vrot.slane %v2536, %v2556
        %v2558 = vlaneseq
        %v2559 = vshrl.u32 %v2558, 7
        %v2560 = vsub.s32 4, %v2559
        %v2561 = vrot.slane %v2536, %v2560
        %v2562 = vlaneseq
        %v2563 = vshrl.u32 %v2562, 7
        %v2564 = vsub.s32 5, %v2563
        %v2565 = vrot.slane %v2536, %v2564
        %v2566 = vlaneseq
        %v2567 = vshrl.u32 %v2566, 7
        %v2568 = vsub.s32 6, %v2567
        %v2569 = vrot.slane %v2536, %v2568
        %v2570 = vlaneseq
        %v2571 = vshrl.u32 %v2570, 7
        %v2572 = vsub.s32 7, %v2571
        %v2573 = vrot.slane %v2536, %v2572
        %v2574 = vlaneseq
        %v2575 = vshrl.u32 %v2574, 7
        %v2576 = vsub.s32 0, %v2575
        %v2577 = vrot.slane %v2539, %v2576
        %v2578 = vlaneseq
        %v2579 = vshrl.u32 %v2578, 7
        %v2580 = vsub.s32 1, %v2579
        %v2581 = vrot.slane %v2539, %v2580
        %v2582 = vlaneseq
        %v2583 = vshrl.u32 %v2582, 7
        %v2584 = vsub.s32 2, %v2583
        %v2585 = vrot.slane %v2539, %v2584
        %v2586 = vlaneseq
        %v2587 = vshrl.u32 %v2586, 7
        %v2588 = vsub.s32 3, %v2587
        %v2589 = vrot.slane %v2539, %v2588
        %v2590 = vlaneseq
        %v2591 = vshrl.u32 %v2590, 7
        %v2592 = vsub.s32 4, %v2591
        %v2593 = vrot.slane %v2539, %v2592
        %v2594 = vlaneseq
        %v2595 = vshrl.u32 %v2594, 7
        %v2596 = vsub.s32 5, %v2595
        %v2597 = vrot.slane %v2539, %v2596
        %v2598 = vlaneseq
        %v2599 = vshrl.u32 %v2598, 7
        %v2600 = vsub.s32 6, %v2599
        %v2601 = vrot.slane %v2539, %v2600
        %v2602 = vlaneseq
        %v2603 = vshrl.u32 %v2602, 7
        %v2604 = vsub.s32 7, %v2603
        %v2605 = vrot.slane %v2539, %v2604
        %v2622 = vmul.f32 %v2247, %v2545
        %v2623 = vmul.f32 %v2249, %v2545
        %v2624 = vmul.f32 %v2251, %v2549
        %v2625 = vmul.f32 %v2253, %v2549
        %v2626 = vmul.f32 %v2255, %v2553
        %v2627 = vmul.f32 %v2257, %v2553
        %v2628 = vmul.f32 %v2259, %v2557
        %v2629 = vmul.f32 %v2261, %v2557
        %v2630 = vmul.f32 %v2263, %v2561
        %v2631 = vmul.f32 %v2265, %v2561
        %v2632 = vmul.f32 %v2267, %v2565
        %v2633 = vmul.f32 %v2269, %v2565
        %v2634 = vmul.f32 %v2271, %v2569
        %v2635 = vmul.f32 %v2273, %v2569
        %v2636 = vmul.f32 %v2275, %v2573
        %v2637 = vmul.f32 %v2277, %v2573
        %v2638 = vmul.f32 %v2279, %v2577
        %v2639 = vmul.f32 %v2281, %v2577
        %v2640 = vmul.f32 %v2283, %v2581
        %v2641 = vmul.f32 %v2285, %v2581
        %v2642 = vmul.f32 %v2287, %v2585
        %v2643 = vmul.f32 %v2289, %v2585
        %v2644 = vmul.f32 %v2291, %v2589
        %v2645 = vmul.f32 %v2293, %v2589
        %v2646 = vmul.f32 %v2295, %v2593
        %v2647 = vmul.f32 %v2297, %v2593
        %v2648 = vmul.f32 %v2299, %v2597
        %v2649 = vmul.f32 %v2301, %v2597
        %v2650 = vmul.f32 %v2303, %v2601
        %v2651 = vmul.f32 %v2305, %v2601
        %v2652 = vmul.f32 %v2307, %v2605
        %v2653 = vmul.f32 %v2309, %v2605
        %v2654 = vadd.f32 %v2536, 1.0
        %v2655 = vadd.f32 %v2539, 1.0
        %v2656 = vrsqrt.pop %v2536
        %v2657 = vmul.f32 %v2536, %v2656
        %vm2658 = vcmp.eq.f32.partialorder %v2536, inf
        %v2659 = vsel %vm2658, %v2536, %v2657
        %vm2660 = vcmp.eq.f32.partialorder %v2536, 0.0
        %v2661 = vand.u32 %v2536, 2147483648
        %v2662 = vsel %vm2660, %v2661, %v2659
        %v2663 = vrsqrt.pop %v2539
        %v2664 = vmul.f32 %v2539, %v2663
        %vm2665 = vcmp.eq.f32.partialorder %v2539, inf
        %v2666 = vsel %vm2665, %v2539, %v2664
        %vm2667 = vcmp.eq.f32.partialorder %v2539, 0.0
        %v2668 = vand.u32 %v2539, 2147483648
        %v2669 = vsel %vm2667, %v2668, %v2666
        %v2670 = vmul.f32 %v2654, %v2662
        %v2671 = vmul.f32 %v2655, %v2669
        %v2674 = vlaneseq
        %v2675 = vshrl.u32 %v2674, 7
        %v2676 = vsub.s32 0, %v2675
        %v2677 = vrot.slane %v2670, %v2676
        %v2678 = vlaneseq
        %v2679 = vshrl.u32 %v2678, 7
        %v2680 = vsub.s32 1, %v2679
        %v2681 = vrot.slane %v2670, %v2680
        %v2682 = vlaneseq
        %v2683 = vshrl.u32 %v2682, 7
        %v2684 = vsub.s32 2, %v2683
        %v2685 = vrot.slane %v2670, %v2684
        %v2686 = vlaneseq
        %v2687 = vshrl.u32 %v2686, 7
        %v2688 = vsub.s32 3, %v2687
        %v2689 = vrot.slane %v2670, %v2688
        %v2690 = vlaneseq
        %v2691 = vshrl.u32 %v2690, 7
        %v2692 = vsub.s32 4, %v2691
        %v2693 = vrot.slane %v2670, %v2692
        %v2694 = vlaneseq
        %v2695 = vshrl.u32 %v2694, 7
        %v2696 = vsub.s32 5, %v2695
        %v2697 = vrot.slane %v2670, %v2696
        %v2698 = vlaneseq
        %v2699 = vshrl.u32 %v2698, 7
        %v2700 = vsub.s32 6, %v2699
        %v2701 = vrot.slane %v2670, %v2700
        %v2702 = vlaneseq
        %v2703 = vshrl.u32 %v2702, 7
        %v2704 = vsub.s32 7, %v2703
        %v2705 = vrot.slane %v2670, %v2704
        %v2706 = vlaneseq
        %v2707 = vshrl.u32 %v2706, 7
        %v2708 = vsub.s32 0, %v2707
        %v2709 = vrot.slane %v2671, %v2708
        %v2710 = vlaneseq
        %v2711 = vshrl.u32 %v2710, 7
        %v2712 = vsub.s32 1, %v2711
        %v2713 = vrot.slane %v2671, %v2712
        %v2714 = vlaneseq
        %v2715 = vshrl.u32 %v2714, 7
        %v2716 = vsub.s32 2, %v2715
        %v2717 = vrot.slane %v2671, %v2716
        %v2718 = vlaneseq
        %v2719 = vshrl.u32 %v2718, 7
        %v2720 = vsub.s32 3, %v2719
        %v2721 = vrot.slane %v2671, %v2720
        %v2722 = vlaneseq
        %v2723 = vshrl.u32 %v2722, 7
        %v2724 = vsub.s32 4, %v2723
        %v2725 = vrot.slane %v2671, %v2724
        %v2726 = vlaneseq
        %v2727 = vshrl.u32 %v2726, 7
        %v2728 = vsub.s32 5, %v2727
        %v2729 = vrot.slane %v2671, %v2728
        %v2730 = vlaneseq
        %v2731 = vshrl.u32 %v2730, 7
        %v2732 = vsub.s32 6, %v2731
        %v2733 = vrot.slane %v2671, %v2732
        %v2734 = vlaneseq
        %v2735 = vshrl.u32 %v2734, 7
        %v2736 = vsub.s32 7, %v2735
        %v2737 = vrot.slane %v2671, %v2736
        %v2754 = vrcp.pop %v2677
        %v2755 = vmul.f32 %v2622, %v2754
        %v2756 = vmul.f32 %v2623, %v2754
        %v2757 = vrcp.pop %v2681
        %v2758 = vmul.f32 %v2624, %v2757
        %v2759 = vmul.f32 %v2625, %v2757
        %v2760 = vrcp.pop %v2685
        %v2761 = vmul.f32 %v2626, %v2760
        %v2762 = vmul.f32 %v2627, %v2760
        %v2763 = vrcp.pop %v2689
        %v2764 = vmul.f32 %v2628, %v2763
        %v2765 = vmul.f32 %v2629, %v2763
        %v2766 = vrcp.pop %v2693
        %v2767 = vmul.f32 %v2630, %v2766
        %v2768 = vmul.f32 %v2631, %v2766
        %v2769 = vrcp.pop %v2697
        %v2770 = vmul.f32 %v2632, %v2769
        %v2771 = vmul.f32 %v2633, %v2769
        %v2772 = vrcp.pop %v2701
        %v2773 = vmul.f32 %v2634, %v2772
        %v2774 = vmul.f32 %v2635, %v2772
        %v2775 = vrcp.pop %v2705
        %v2776 = vmul.f32 %v2636, %v2775
        %v2777 = vmul.f32 %v2637, %v2775
        %v2778 = vrcp.pop %v2709
        %v2779 = vmul.f32 %v2638, %v2778
        %v2780 = vmul.f32 %v2639, %v2778
        %v2781 = vrcp.pop %v2713
        %v2782 = vmul.f32 %v2640, %v2781
        %v2783 = vmul.f32 %v2641, %v2781
        %v2784 = vrcp.pop %v2717
        %v2785 = vmul.f32 %v2642, %v2784
        %v2786 = vmul.f32 %v2643, %v2784
        %v2787 = vrcp.pop %v2721
        %v2788 = vmul.f32 %v2644, %v2787
        %v2789 = vmul.f32 %v2645, %v2787
        %v2790 = vrcp.pop %v2725
        %v2791 = vmul.f32 %v2646, %v2790
        %v2792 = vmul.f32 %v2647, %v2790
        %v2793 = vrcp.pop %v2729
        %v2794 = vmul.f32 %v2648, %v2793
        %v2795 = vmul.f32 %v2649, %v2793
        %v2796 = vrcp.pop %v2733
        %v2797 = vmul.f32 %v2650, %v2796
        %v2798 = vmul.f32 %v2651, %v2796
        %v2799 = vrcp.pop %v2737
        %v2800 = vmul.f32 %v2652, %v2799
        %v2801 = vmul.f32 %v2653, %v2799
        %2803 = vset.pattern.permute.xlu0 0
        %2804 = vperm.xlu0 %2803, %v2755
        %v2805 = vpop.permute.xlu0 %2804
        %2808 = vset.pattern.permute.xlu0 0
        %2809 = vperm.xlu0 %2808, %v2756
        %v2810 = vpop.permute.xlu0 %2809
        %2813 = vset.pattern.permute.xlu0 0
        %2814 = vperm.xlu0 %2813, %v2758
        %v2815 = vpop.permute.xlu0 %2814
        %2818 = vset.pattern.permute.xlu0 0
        %2819 = vperm.xlu0 %2818, %v2759
        %v2820 = vpop.permute.xlu0 %2819
        %2823 = vset.pattern.permute.xlu0 0
        %2824 = vperm.xlu0 %2823, %v2761
        %v2825 = vpop.permute.xlu0 %2824
        %2828 = vset.pattern.permute.xlu0 0
        %2829 = vperm.xlu0 %2828, %v2762
        %v2830 = vpop.permute.xlu0 %2829
        %2833 = vset.pattern.permute.xlu0 0
        %2834 = vperm.xlu0 %2833, %v2764
        %v2835 = vpop.permute.xlu0 %2834
        %2838 = vset.pattern.permute.xlu0 0
        %2839 = vperm.xlu0 %2838, %v2765
        %v2840 = vpop.permute.xlu0 %2839
        %2843 = vset.pattern.permute.xlu0 0
        %2844 = vperm.xlu0 %2843, %v2767
        %v2845 = vpop.permute.xlu0 %2844
        %2848 = vset.pattern.permute.xlu0 0
        %2849 = vperm.xlu0 %2848, %v2768
        %v2850 = vpop.permute.xlu0 %2849
        %2853 = vset.pattern.permute.xlu0 0
        %2854 = vperm.xlu0 %2853, %v2770
        %v2855 = vpop.permute.xlu0 %2854
        %2858 = vset.pattern.permute.xlu0 0
        %2859 = vperm.xlu0 %2858, %v2771
        %v2860 = vpop.permute.xlu0 %2859
        %2863 = vset.pattern.permute.xlu0 0
        %2864 = vperm.xlu0 %2863, %v2773
        %v2865 = vpop.permute.xlu0 %2864
        %2868 = vset.pattern.permute.xlu0 0
        %2869 = vperm.xlu0 %2868, %v2774
        %v2870 = vpop.permute.xlu0 %2869
        %2873 = vset.pattern.permute.xlu0 0
        %2874 = vperm.xlu0 %2873, %v2776
        %v2875 = vpop.permute.xlu0 %2874
        %2878 = vset.pattern.permute.xlu0 0
        %2879 = vperm.xlu0 %2878, %v2777
        %v2880 = vpop.permute.xlu0 %2879
        %2883 = vset.pattern.permute.xlu0 0
        %2884 = vperm.xlu0 %2883, %v2779
        %v2885 = vpop.permute.xlu0 %2884
        %2888 = vset.pattern.permute.xlu0 0
        %2889 = vperm.xlu0 %2888, %v2780
        %v2890 = vpop.permute.xlu0 %2889
        %2893 = vset.pattern.permute.xlu0 0
        %2894 = vperm.xlu0 %2893, %v2782
        %v2895 = vpop.permute.xlu0 %2894
        %2898 = vset.pattern.permute.xlu0 0
        %2899 = vperm.xlu0 %2898, %v2783
        %v2900 = vpop.permute.xlu0 %2899
        %2903 = vset.pattern.permute.xlu0 0
        %2904 = vperm.xlu0 %2903, %v2785
        %v2905 = vpop.permute.xlu0 %2904
        %2908 = vset.pattern.permute.xlu0 0
        %2909 = vperm.xlu0 %2908, %v2786
        %v2910 = vpop.permute.xlu0 %2909
        %2913 = vset.pattern.permute.xlu0 0
        %2914 = vperm.xlu0 %2913, %v2788
        %v2915 = vpop.permute.xlu0 %2914
        %2918 = vset.pattern.permute.xlu0 0
        %2919 = vperm.xlu0 %2918, %v2789
        %v2920 = vpop.permute.xlu0 %2919
        %2923 = vset.pattern.permute.xlu0 0
        %2924 = vperm.xlu0 %2923, %v2791
        %v2925 = vpop.permute.xlu0 %2924
        %2928 = vset.pattern.permute.xlu0 0
        %2929 = vperm.xlu0 %2928, %v2792
        %v2930 = vpop.permute.xlu0 %2929
        %2933 = vset.pattern.permute.xlu0 0
        %2934 = vperm.xlu0 %2933, %v2794
        %v2935 = vpop.permute.xlu0 %2934
        %2938 = vset.pattern.permute.xlu0 0
        %2939 = vperm.xlu0 %2938, %v2795
        %v2940 = vpop.permute.xlu0 %2939
        %2943 = vset.pattern.permute.xlu0 0
        %2944 = vperm.xlu0 %2943, %v2797
        %v2945 = vpop.permute.xlu0 %2944
        %2948 = vset.pattern.permute.xlu0 0
        %2949 = vperm.xlu0 %2948, %v2798
        %v2950 = vpop.permute.xlu0 %2949
        %2953 = vset.pattern.permute.xlu0 0
        %2954 = vperm.xlu0 %2953, %v2800
        %v2955 = vpop.permute.xlu0 %2954
        %2958 = vset.pattern.permute.xlu0 0
        %2959 = vperm.xlu0 %2958, %v2801
        %v2960 = vpop.permute.xlu0 %2959
        %v2962 = vmul.f32 %v2805, %v1061
        %v2963 = vmul.f32 %v2810, %v1062
        %v2964 = vmul.f32 %v2815, %v1063
        %v2965 = vmul.f32 %v2820, %v1064
        %v2966 = vmul.f32 %v2825, %v1065
        %v2967 = vmul.f32 %v2830, %v1066
        %v2968 = vmul.f32 %v2835, %v1067
        %v2969 = vmul.f32 %v2840, %v1068
        %v2970 = vmul.f32 %v2845, %v1069
        %v2971 = vmul.f32 %v2850, %v1070
        %v2972 = vmul.f32 %v2855, %v1071
        %v2973 = vmul.f32 %v2860, %v1072
        %v2974 = vmul.f32 %v2865, %v1073
        %v2975 = vmul.f32 %v2870, %v1074
        %v2976 = vmul.f32 %v2875, %v1075
        %v2977 = vmul.f32 %v2880, %v1076
        %v2978 = vmul.f32 %v2885, %v1077
        %v2979 = vmul.f32 %v2890, %v1078
        %v2980 = vmul.f32 %v2895, %v1079
        %v2981 = vmul.f32 %v2900, %v1080
        %v2982 = vmul.f32 %v2905, %v1081
        %v2983 = vmul.f32 %v2910, %v1082
        %v2984 = vmul.f32 %v2915, %v1083
        %v2985 = vmul.f32 %v2920, %v1084
        %v2986 = vmul.f32 %v2925, %v1085
        %v2987 = vmul.f32 %v2930, %v1086
        %v2988 = vmul.f32 %v2935, %v1087
        %v2989 = vmul.f32 %v2940, %v1088
        %v2990 = vmul.f32 %v2945, %v1089
        %v2991 = vmul.f32 %v2950, %v1090
        %v2992 = vmul.f32 %v2955, %v1091
        %v2993 = vmul.f32 %v2960, %v1092
        %v2994 = vadd.f32 %v2962, %v2963
        %v2995 = vrot.slane %v2994, 4
        %v2996 = vadd.f32 %v2994, %v2995
        %v2997 = vrot.slane %v2996, 2
        %v2998 = vadd.f32 %v2996, %v2997
        %v2999 = vrot.slane %v2998, 1
        %v3000 = vadd.f32 %v2998, %v2999
        %v3001 = vadd.f32 %v2964, %v2965
        %v3002 = vrot.slane %v3001, 4
        %v3003 = vadd.f32 %v3001, %v3002
        %v3004 = vrot.slane %v3003, 2
        %v3005 = vadd.f32 %v3003, %v3004
        %v3006 = vrot.slane %v3005, 1
        %v3007 = vadd.f32 %v3005, %v3006
        %v3008 = vadd.f32 %v2966, %v2967
        %v3009 = vrot.slane %v3008, 4
        %v3010 = vadd.f32 %v3008, %v3009
        %v3011 = vrot.slane %v3010, 2
        %v3012 = vadd.f32 %v3010, %v3011
        %v3013 = vrot.slane %v3012, 1
        %v3014 = vadd.f32 %v3012, %v3013
        %v3015 = vadd.f32 %v2968, %v2969
        %v3016 = vrot.slane %v3015, 4
        %v3017 = vadd.f32 %v3015, %v3016
        %v3018 = vrot.slane %v3017, 2
        %v3019 = vadd.f32 %v3017, %v3018
        %v3020 = vrot.slane %v3019, 1
        %v3021 = vadd.f32 %v3019, %v3020
        %v3022 = vadd.f32 %v2970, %v2971
        %v3023 = vrot.slane %v3022, 4
        %v3024 = vadd.f32 %v3022, %v3023
        %v3025 = vrot.slane %v3024, 2
        %v3026 = vadd.f32 %v3024, %v3025
        %v3027 = vrot.slane %v3026, 1
        %v3028 = vadd.f32 %v3026, %v3027
        %v3029 = vadd.f32 %v2972, %v2973
        %v3030 = vrot.slane %v3029, 4
        %v3031 = vadd.f32 %v3029, %v3030
        %v3032 = vrot.slane %v3031, 2
        %v3033 = vadd.f32 %v3031, %v3032
        %v3034 = vrot.slane %v3033, 1
        %v3035 = vadd.f32 %v3033, %v3034
        %v3036 = vadd.f32 %v2974, %v2975
        %v3037 = vrot.slane %v3036, 4
        %v3038 = vadd.f32 %v3036, %v3037
        %v3039 = vrot.slane %v3038, 2
        %v3040 = vadd.f32 %v3038, %v3039
        %v3041 = vrot.slane %v3040, 1
        %v3042 = vadd.f32 %v3040, %v3041
        %v3043 = vadd.f32 %v2976, %v2977
        %v3044 = vrot.slane %v3043, 4
        %v3045 = vadd.f32 %v3043, %v3044
        %v3046 = vrot.slane %v3045, 2
        %v3047 = vadd.f32 %v3045, %v3046
        %v3048 = vrot.slane %v3047, 1
        %v3049 = vadd.f32 %v3047, %v3048
        %v3050 = vadd.f32 %v2978, %v2979
        %v3051 = vrot.slane %v3050, 4
        %v3052 = vadd.f32 %v3050, %v3051
        %v3053 = vrot.slane %v3052, 2
        %v3054 = vadd.f32 %v3052, %v3053
        %v3055 = vrot.slane %v3054, 1
        %v3056 = vadd.f32 %v3054, %v3055
        %v3057 = vadd.f32 %v2980, %v2981
        %v3058 = vrot.slane %v3057, 4
        %v3059 = vadd.f32 %v3057, %v3058
        %v3060 = vrot.slane %v3059, 2
        %v3061 = vadd.f32 %v3059, %v3060
        %v3062 = vrot.slane %v3061, 1
        %v3063 = vadd.f32 %v3061, %v3062
        %v3064 = vadd.f32 %v2982, %v2983
        %v3065 = vrot.slane %v3064, 4
        %v3066 = vadd.f32 %v3064, %v3065
        %v3067 = vrot.slane %v3066, 2
        %v3068 = vadd.f32 %v3066, %v3067
        %v3069 = vrot.slane %v3068, 1
        %v3070 = vadd.f32 %v3068, %v3069
        %v3071 = vadd.f32 %v2984, %v2985
        %v3072 = vrot.slane %v3071, 4
        %v3073 = vadd.f32 %v3071, %v3072
        %v3074 = vrot.slane %v3073, 2
        %v3075 = vadd.f32 %v3073, %v3074
        %v3076 = vrot.slane %v3075, 1
        %v3077 = vadd.f32 %v3075, %v3076
        %v3078 = vadd.f32 %v2986, %v2987
        %v3079 = vrot.slane %v3078, 4
        %v3080 = vadd.f32 %v3078, %v3079
        %v3081 = vrot.slane %v3080, 2
        %v3082 = vadd.f32 %v3080, %v3081
        %v3083 = vrot.slane %v3082, 1
        %v3084 = vadd.f32 %v3082, %v3083
        %v3085 = vadd.f32 %v2988, %v2989
        %v3086 = vrot.slane %v3085, 4
        %v3087 = vadd.f32 %v3085, %v3086
        %v3088 = vrot.slane %v3087, 2
        %v3089 = vadd.f32 %v3087, %v3088
        %v3090 = vrot.slane %v3089, 1
        %v3091 = vadd.f32 %v3089, %v3090
        %v3092 = vadd.f32 %v2990, %v2991
        %v3093 = vrot.slane %v3092, 4
        %v3094 = vadd.f32 %v3092, %v3093
        %v3095 = vrot.slane %v3094, 2
        %v3096 = vadd.f32 %v3094, %v3095
        %v3097 = vrot.slane %v3096, 1
        %v3098 = vadd.f32 %v3096, %v3097
        %v3099 = vadd.f32 %v2992, %v2993
        %v3100 = vrot.slane %v3099, 4
        %v3101 = vadd.f32 %v3099, %v3100
        %v3102 = vrot.slane %v3101, 2
        %v3103 = vadd.f32 %v3101, %v3102
        %v3104 = vrot.slane %v3103, 1
        %v3105 = vadd.f32 %v3103, %v3104
        %v3106 = vadd.f32 %v1997, %v3000
        %v3107 = vadd.f32 %v1998, %v3007
        %v3108 = vadd.f32 %v1999, %v3014
        %v3109 = vadd.f32 %v2000, %v3021
        %v3110 = vadd.f32 %v2001, %v3028
        %v3111 = vadd.f32 %v2002, %v3035
        %v3112 = vadd.f32 %v2003, %v3042
        %v3113 = vadd.f32 %v2004, %v3049
        %v3114 = vadd.f32 %v2005, %v3056
        %v3115 = vadd.f32 %v2006, %v3063
        %v3116 = vadd.f32 %v2007, %v3070
        %v3117 = vadd.f32 %v2008, %v3077
        %v3118 = vadd.f32 %v2009, %v3084
        %v3119 = vadd.f32 %v2010, %v3091
        %v3120 = vadd.f32 %v2011, %v3098
        %v3121 = vadd.f32 %v2012, %v3105
        %v3122 = vmax.f32 %v3106, %v3110
        %v3123 = vmax.f32 %v3107, %v3111
        %v3124 = vmax.f32 %v3108, %v3112
        %v3125 = vmax.f32 %v3109, %v3113
        %v3126 = vmax.f32 %v3122, %v3114
        %v3127 = vmax.f32 %v3123, %v3115
        %v3128 = vmax.f32 %v3124, %v3116
        %v3129 = vmax.f32 %v3125, %v3117
        %v3130 = vmax.f32 %v3126, %v3118
        %v3131 = vmax.f32 %v3127, %v3119
        %v3132 = vmax.f32 %v3128, %v3120
        %v3133 = vmax.f32 %v3129, %v3121
        %v3134 = vmax.f32 %v3130, %v3131
        %v3135 = vmax.f32 %v3132, %v3133
        %v3136 = vmax.f32 %v3134, %v3135
        %v3137 = vsub.f32 %v3106, %v3136
        %v3138 = vsub.f32 %v3107, %v3136
        %v3139 = vsub.f32 %v3108, %v3136
        %v3140 = vsub.f32 %v3109, %v3136
        %v3141 = vsub.f32 %v3110, %v3136
        %v3142 = vsub.f32 %v3111, %v3136
        %v3143 = vsub.f32 %v3112, %v3136
        %v3144 = vsub.f32 %v3113, %v3136
        %v3145 = vsub.f32 %v3114, %v3136
        %v3146 = vsub.f32 %v3115, %v3136
        %v3147 = vsub.f32 %v3116, %v3136
        %v3148 = vsub.f32 %v3117, %v3136
        %v3149 = vsub.f32 %v3118, %v3136
        %v3150 = vsub.f32 %v3119, %v3136
        %v3151 = vsub.f32 %v3120, %v3136
        %v3152 = vsub.f32 %v3121, %v3136
        %v3153 = vmul.f32 %v3137, 1.442695
        %v3154 = vpow.pop %v3153
        %v3155 = vmul.f32 %v3138, 1.442695
        %v3156 = vpow.pop %v3155
        %v3157 = vmul.f32 %v3139, 1.442695
        %v3158 = vpow.pop %v3157
        %v3159 = vmul.f32 %v3140, 1.442695
        %v3160 = vpow.pop %v3159
        %v3161 = vmul.f32 %v3141, 1.442695
        %v3162 = vpow.pop %v3161
        %v3163 = vmul.f32 %v3142, 1.442695
        %v3164 = vpow.pop %v3163
        %v3165 = vmul.f32 %v3143, 1.442695
        %v3166 = vpow.pop %v3165
        %v3167 = vmul.f32 %v3144, 1.442695
        %v3168 = vpow.pop %v3167
        %v3169 = vmul.f32 %v3145, 1.442695
        %v3170 = vpow.pop %v3169
        %v3171 = vmul.f32 %v3146, 1.442695
        %v3172 = vpow.pop %v3171
        %v3173 = vmul.f32 %v3147, 1.442695
        %v3174 = vpow.pop %v3173
        %v3175 = vmul.f32 %v3148, 1.442695
        %v3176 = vpow.pop %v3175
        %v3177 = vmul.f32 %v3149, 1.442695
        %v3178 = vpow.pop %v3177
        %v3179 = vmul.f32 %v3150, 1.442695
        %v3180 = vpow.pop %v3179
        %v3181 = vmul.f32 %v3151, 1.442695
        %v3182 = vpow.pop %v3181
        %v3183 = vmul.f32 %v3152, 1.442695
        %v3184 = vpow.pop %v3183
        %v3201 = vrot.slane %v3156, 7
        %v3202 = vsel %vm1401, %v3201, %v3154
        %v3203 = vrot.slane %v3158, 6
        %v3204 = vsel %vm1403, %v3203, %v3202
        %v3205 = vrot.slane %v3160, 5
        %v3206 = vsel %vm1405, %v3205, %v3204
        %v3207 = vrot.slane %v3162, 4
        %v3208 = vsel %vm1407, %v3207, %v3206
        %v3209 = vrot.slane %v3164, 3
        %v3210 = vsel %vm1409, %v3209, %v3208
        %v3211 = vrot.slane %v3166, 2
        %v3212 = vsel %vm1411, %v3211, %v3210
        %v3213 = vrot.slane %v3168, 1
        %v3214 = vsel %vm1413, %v3213, %v3212
        %v3215 = vrot.slane %v3172, 7
        %v3216 = vsel %vm1401, %v3215, %v3170
        %v3217 = vrot.slane %v3174, 6
        %v3218 = vsel %vm1403, %v3217, %v3216
        %v3219 = vrot.slane %v3176, 5
        %v3220 = vsel %vm1405, %v3219, %v3218
        %v3221 = vrot.slane %v3178, 4
        %v3222 = vsel %vm1407, %v3221, %v3220
        %v3223 = vrot.slane %v3180, 3
        %v3224 = vsel %vm1409, %v3223, %v3222
        %v3225 = vrot.slane %v3182, 2
        %v3226 = vsel %vm1411, %v3225, %v3224
        %v3227 = vrot.slane %v3184, 1
        %v3228 = vsel %vm1413, %v3227, %v3226
        %v3231 = vadd.f32 %v3214, %v3228
        %v3232 = vrot.slane %v3231, 4
        %v3233 = vadd.f32 %v3231, %v3232
        %v3234 = vrot.slane %v3233, 2
        %v3235 = vadd.f32 %v3233, %v3234
        %v3236 = vrot.slane %v3235, 1
        %v3237 = vadd.f32 %v3235, %v3236
        %v3238 = vlaneseq
        %v3239 = vshrl.u32 %v3238, 7
        %v3240 = vsub.s32 0, %v3239
        %v3241 = vrot.slane %v3237, %v3240
        %v3242 = vrcp.pop %v3241
        %v3243 = vmul.f32 %v3154, %v3242
        %v3244 = vmul.f32 %v3156, %v3242
        %v3245 = vmul.f32 %v3158, %v3242
        %v3246 = vmul.f32 %v3160, %v3242
        %v3247 = vmul.f32 %v3162, %v3242
        %v3248 = vmul.f32 %v3164, %v3242
        %v3249 = vmul.f32 %v3166, %v3242
        %v3250 = vmul.f32 %v3168, %v3242
        %v3251 = vmul.f32 %v3170, %v3242
        %v3252 = vmul.f32 %v3172, %v3242
        %v3253 = vmul.f32 %v3174, %v3242
        %v3254 = vmul.f32 %v3176, %v3242
        %v3255 = vmul.f32 %v3178, %v3242
        %v3256 = vmul.f32 %v3180, %v3242
        %v3257 = vmul.f32 %v3182, %v3242
        %v3258 = vmul.f32 %v3184, %v3242
        %v3259 = vlaneseq
        %v3260 = vshrl.u32 %v3259, 7
        %v3261 = vsub.s32 0, %v3260
        %v3262 = vrot.slane %v3243, %v3261
        %v3263 = vlaneseq
        %v3264 = vshrl.u32 %v3263, 7
        %v3265 = vsub.s32 0, %v3264
        %v3266 = vrot.slane %v3244, %v3265
        %v3267 = vlaneseq
        %v3268 = vshrl.u32 %v3267, 7
        %v3269 = vsub.s32 0, %v3268
        %v3270 = vrot.slane %v3245, %v3269
        %v3271 = vlaneseq
        %v3272 = vshrl.u32 %v3271, 7
        %v3273 = vsub.s32 0, %v3272
        %v3274 = vrot.slane %v3246, %v3273
        %v3275 = vlaneseq
        %v3276 = vshrl.u32 %v3275, 7
        %v3277 = vsub.s32 0, %v3276
        %v3278 = vrot.slane %v3247, %v3277
        %v3279 = vlaneseq
        %v3280 = vshrl.u32 %v3279, 7
        %v3281 = vsub.s32 0, %v3280
        %v3282 = vrot.slane %v3248, %v3281
        %v3283 = vlaneseq
        %v3284 = vshrl.u32 %v3283, 7
        %v3285 = vsub.s32 0, %v3284
        %v3286 = vrot.slane %v3249, %v3285
        %v3287 = vlaneseq
        %v3288 = vshrl.u32 %v3287, 7
        %v3289 = vsub.s32 0, %v3288
        %v3290 = vrot.slane %v3250, %v3289
        %v3291 = vlaneseq
        %v3292 = vshrl.u32 %v3291, 7
        %v3293 = vsub.s32 0, %v3292
        %v3294 = vrot.slane %v3251, %v3293
        %v3295 = vlaneseq
        %v3296 = vshrl.u32 %v3295, 7
        %v3297 = vsub.s32 0, %v3296
        %v3298 = vrot.slane %v3252, %v3297
        %v3299 = vlaneseq
        %v3300 = vshrl.u32 %v3299, 7
        %v3301 = vsub.s32 0, %v3300
        %v3302 = vrot.slane %v3253, %v3301
        %v3303 = vlaneseq
        %v3304 = vshrl.u32 %v3303, 7
        %v3305 = vsub.s32 0, %v3304
        %v3306 = vrot.slane %v3254, %v3305
        %v3307 = vlaneseq
        %v3308 = vshrl.u32 %v3307, 7
        %v3309 = vsub.s32 0, %v3308
        %v3310 = vrot.slane %v3255, %v3309
        %v3311 = vlaneseq
        %v3312 = vshrl.u32 %v3311, 7
        %v3313 = vsub.s32 0, %v3312
        %v3314 = vrot.slane %v3256, %v3313
        %v3315 = vlaneseq
        %v3316 = vshrl.u32 %v3315, 7
        %v3317 = vsub.s32 0, %v3316
        %v3318 = vrot.slane %v3257, %v3317
        %v3319 = vlaneseq
        %v3320 = vshrl.u32 %v3319, 7
        %v3321 = vsub.s32 0, %v3320
        %v3322 = vrot.slane %v3258, %v3321
        %v3323 = vmul.f32 %v3262, %v1061
        %v3324 = vmul.f32 %v3262, %v1062
        %v3325 = vmul.f32 %v3266, %v1063
        %v3326 = vmul.f32 %v3266, %v1064
        %v3327 = vmul.f32 %v3270, %v1065
        %v3328 = vmul.f32 %v3270, %v1066
        %v3329 = vmul.f32 %v3274, %v1067
        %v3330 = vmul.f32 %v3274, %v1068
        %v3331 = vmul.f32 %v3278, %v1069
        %v3332 = vmul.f32 %v3278, %v1070
        %v3333 = vmul.f32 %v3282, %v1071
        %v3334 = vmul.f32 %v3282, %v1072
        %v3335 = vmul.f32 %v3286, %v1073
        %v3336 = vmul.f32 %v3286, %v1074
        %v3337 = vmul.f32 %v3290, %v1075
        %v3338 = vmul.f32 %v3290, %v1076
        %v3339 = vmul.f32 %v3294, %v1077
        %v3340 = vmul.f32 %v3294, %v1078
        %v3341 = vmul.f32 %v3298, %v1079
        %v3342 = vmul.f32 %v3298, %v1080
        %v3343 = vmul.f32 %v3302, %v1081
        %v3344 = vmul.f32 %v3302, %v1082
        %v3345 = vmul.f32 %v3306, %v1083
        %v3346 = vmul.f32 %v3306, %v1084
        %v3347 = vmul.f32 %v3310, %v1085
        %v3348 = vmul.f32 %v3310, %v1086
        %v3349 = vmul.f32 %v3314, %v1087
        %v3350 = vmul.f32 %v3314, %v1088
        %v3351 = vmul.f32 %v3318, %v1089
        %v3352 = vmul.f32 %v3318, %v1090
        %v3353 = vmul.f32 %v3322, %v1091
        %v3354 = vmul.f32 %v3322, %v1092
        %3355 = vadd.xlane.f32.xlu0 %v3323
        %v3356 = vpop.xlane.xlu0 %3355
        %3357 = vadd.xlane.f32.xlu0 %v3324
        %v3358 = vpop.xlane.xlu0 %3357
        %3359 = vadd.xlane.f32.xlu0 %v3325
        %v3360 = vpop.xlane.xlu0 %3359
        %3361 = vadd.xlane.f32.xlu0 %v3326
        %v3362 = vpop.xlane.xlu0 %3361
        %3363 = vadd.xlane.f32.xlu0 %v3327
        %v3364 = vpop.xlane.xlu0 %3363
        %3365 = vadd.xlane.f32.xlu0 %v3328
        %v3366 = vpop.xlane.xlu0 %3365
        %3367 = vadd.xlane.f32.xlu0 %v3329
        %v3368 = vpop.xlane.xlu0 %3367
        %3369 = vadd.xlane.f32.xlu0 %v3330
        %v3370 = vpop.xlane.xlu0 %3369
        %3371 = vadd.xlane.f32.xlu0 %v3331
        %v3372 = vpop.xlane.xlu0 %3371
        %3373 = vadd.xlane.f32.xlu0 %v3332
        %v3374 = vpop.xlane.xlu0 %3373
        %3375 = vadd.xlane.f32.xlu0 %v3333
        %v3376 = vpop.xlane.xlu0 %3375
        %3377 = vadd.xlane.f32.xlu0 %v3334
        %v3378 = vpop.xlane.xlu0 %3377
        %3379 = vadd.xlane.f32.xlu0 %v3335
        %v3380 = vpop.xlane.xlu0 %3379
        %3381 = vadd.xlane.f32.xlu0 %v3336
        %v3382 = vpop.xlane.xlu0 %3381
        %3383 = vadd.xlane.f32.xlu0 %v3337
        %v3384 = vpop.xlane.xlu0 %3383
        %3385 = vadd.xlane.f32.xlu0 %v3338
        %v3386 = vpop.xlane.xlu0 %3385
        %3387 = vadd.xlane.f32.xlu0 %v3339
        %v3388 = vpop.xlane.xlu0 %3387
        %3389 = vadd.xlane.f32.xlu0 %v3340
        %v3390 = vpop.xlane.xlu0 %3389
        %3391 = vadd.xlane.f32.xlu0 %v3341
        %v3392 = vpop.xlane.xlu0 %3391
        %3393 = vadd.xlane.f32.xlu0 %v3342
        %v3394 = vpop.xlane.xlu0 %3393
        %3395 = vadd.xlane.f32.xlu0 %v3343
        %v3396 = vpop.xlane.xlu0 %3395
        %3397 = vadd.xlane.f32.xlu0 %v3344
        %v3398 = vpop.xlane.xlu0 %3397
        %3399 = vadd.xlane.f32.xlu0 %v3345
        %v3400 = vpop.xlane.xlu0 %3399
        %3401 = vadd.xlane.f32.xlu0 %v3346
        %v3402 = vpop.xlane.xlu0 %3401
        %3403 = vadd.xlane.f32.xlu0 %v3347
        %v3404 = vpop.xlane.xlu0 %3403
        %3405 = vadd.xlane.f32.xlu0 %v3348
        %v3406 = vpop.xlane.xlu0 %3405
        %3407 = vadd.xlane.f32.xlu0 %v3349
        %v3408 = vpop.xlane.xlu0 %3407
        %3409 = vadd.xlane.f32.xlu0 %v3350
        %v3410 = vpop.xlane.xlu0 %3409
        %3411 = vadd.xlane.f32.xlu0 %v3351
        %v3412 = vpop.xlane.xlu0 %3411
        %3413 = vadd.xlane.f32.xlu0 %v3352
        %v3414 = vpop.xlane.xlu0 %3413
        %3415 = vadd.xlane.f32.xlu0 %v3353
        %v3416 = vpop.xlane.xlu0 %3415
        %3417 = vadd.xlane.f32.xlu0 %v3354
        %v3418 = vpop.xlane.xlu0 %3417
        %v3419 = vmul.f32 %v3356, %v3356
        %v3420 = vmul.f32 %v3358, %v3358
        %v3421 = vmul.f32 %v3360, %v3360
        %v3422 = vmul.f32 %v3362, %v3362
        %v3423 = vmul.f32 %v3364, %v3364
        %v3424 = vmul.f32 %v3366, %v3366
        %v3425 = vmul.f32 %v3368, %v3368
        %v3426 = vmul.f32 %v3370, %v3370
        %v3427 = vmul.f32 %v3372, %v3372
        %v3428 = vmul.f32 %v3374, %v3374
        %v3429 = vmul.f32 %v3376, %v3376
        %v3430 = vmul.f32 %v3378, %v3378
        %v3431 = vmul.f32 %v3380, %v3380
        %v3432 = vmul.f32 %v3382, %v3382
        %v3433 = vmul.f32 %v3384, %v3384
        %v3434 = vmul.f32 %v3386, %v3386
        %v3435 = vmul.f32 %v3388, %v3388
        %v3436 = vmul.f32 %v3390, %v3390
        %v3437 = vmul.f32 %v3392, %v3392
        %v3438 = vmul.f32 %v3394, %v3394
        %v3439 = vmul.f32 %v3396, %v3396
        %v3440 = vmul.f32 %v3398, %v3398
        %v3441 = vmul.f32 %v3400, %v3400
        %v3442 = vmul.f32 %v3402, %v3402
        %v3443 = vmul.f32 %v3404, %v3404
        %v3444 = vmul.f32 %v3406, %v3406
        %v3445 = vmul.f32 %v3408, %v3408
        %v3446 = vmul.f32 %v3410, %v3410
        %v3447 = vmul.f32 %v3412, %v3412
        %v3448 = vmul.f32 %v3414, %v3414
        %v3449 = vmul.f32 %v3416, %v3416
        %v3450 = vmul.f32 %v3418, %v3418
        %v3483 = vlaneseq
        %v3484 = vshrl.u32 %v3483, 7
        %v3485 = vsub.s32 %v1254, %v3484
        %v3486 = vrot.slane %v3419, %v3485
        %v3487 = vlaneseq
        %v3488 = vshrl.u32 %v3487, 7
        %v3489 = vsub.s32 %v1259, %v3488
        %v3490 = vrot.slane %v3420, %v3489
        %v3491 = vsel %vm1264, %v3490, %v3486
        %v3492 = vlaneseq
        %v3493 = vshrl.u32 %v3492, 7
        %v3494 = vsub.s32 %v1254, %v3493
        %v3495 = vrot.slane %v3421, %v3494
        %v3496 = vlaneseq
        %v3497 = vshrl.u32 %v3496, 7
        %v3498 = vsub.s32 %v1259, %v3497
        %v3499 = vrot.slane %v3422, %v3498
        %v3500 = vsel %vm1264, %v3499, %v3495
        %v3501 = vlaneseq
        %v3502 = vshrl.u32 %v3501, 7
        %v3503 = vsub.s32 %v1254, %v3502
        %v3504 = vrot.slane %v3423, %v3503
        %v3505 = vlaneseq
        %v3506 = vshrl.u32 %v3505, 7
        %v3507 = vsub.s32 %v1259, %v3506
        %v3508 = vrot.slane %v3424, %v3507
        %v3509 = vsel %vm1264, %v3508, %v3504
        %v3510 = vlaneseq
        %v3511 = vshrl.u32 %v3510, 7
        %v3512 = vsub.s32 %v1254, %v3511
        %v3513 = vrot.slane %v3425, %v3512
        %v3514 = vlaneseq
        %v3515 = vshrl.u32 %v3514, 7
        %v3516 = vsub.s32 %v1259, %v3515
        %v3517 = vrot.slane %v3426, %v3516
        %v3518 = vsel %vm1264, %v3517, %v3513
        %v3519 = vlaneseq
        %v3520 = vshrl.u32 %v3519, 7
        %v3521 = vsub.s32 %v1254, %v3520
        %v3522 = vrot.slane %v3427, %v3521
        %v3523 = vlaneseq
        %v3524 = vshrl.u32 %v3523, 7
        %v3525 = vsub.s32 %v1259, %v3524
        %v3526 = vrot.slane %v3428, %v3525
        %v3527 = vsel %vm1264, %v3526, %v3522
        %v3528 = vlaneseq
        %v3529 = vshrl.u32 %v3528, 7
        %v3530 = vsub.s32 %v1254, %v3529
        %v3531 = vrot.slane %v3429, %v3530
        %v3532 = vlaneseq
        %v3533 = vshrl.u32 %v3532, 7
        %v3534 = vsub.s32 %v1259, %v3533
        %v3535 = vrot.slane %v3430, %v3534
        %v3536 = vsel %vm1264, %v3535, %v3531
        %v3537 = vlaneseq
        %v3538 = vshrl.u32 %v3537, 7
        %v3539 = vsub.s32 %v1254, %v3538
        %v3540 = vrot.slane %v3431, %v3539
        %v3541 = vlaneseq
        %v3542 = vshrl.u32 %v3541, 7
        %v3543 = vsub.s32 %v1259, %v3542
        %v3544 = vrot.slane %v3432, %v3543
        %v3545 = vsel %vm1264, %v3544, %v3540
        %v3546 = vlaneseq
        %v3547 = vshrl.u32 %v3546, 7
        %v3548 = vsub.s32 %v1254, %v3547
        %v3549 = vrot.slane %v3433, %v3548
        %v3550 = vlaneseq
        %v3551 = vshrl.u32 %v3550, 7
        %v3552 = vsub.s32 %v1259, %v3551
        %v3553 = vrot.slane %v3434, %v3552
        %v3554 = vsel %vm1264, %v3553, %v3549
        %v3555 = vlaneseq
        %v3556 = vshrl.u32 %v3555, 7
        %v3557 = vsub.s32 %v1254, %v3556
        %v3558 = vrot.slane %v3435, %v3557
        %v3559 = vlaneseq
        %v3560 = vshrl.u32 %v3559, 7
        %v3561 = vsub.s32 %v1259, %v3560
        %v3562 = vrot.slane %v3436, %v3561
        %v3563 = vsel %vm1264, %v3562, %v3558
        %v3564 = vlaneseq
        %v3565 = vshrl.u32 %v3564, 7
        %v3566 = vsub.s32 %v1254, %v3565
        %v3567 = vrot.slane %v3437, %v3566
        %v3568 = vlaneseq
        %v3569 = vshrl.u32 %v3568, 7
        %v3570 = vsub.s32 %v1259, %v3569
        %v3571 = vrot.slane %v3438, %v3570
        %v3572 = vsel %vm1264, %v3571, %v3567
        %v3573 = vlaneseq
        %v3574 = vshrl.u32 %v3573, 7
        %v3575 = vsub.s32 %v1254, %v3574
        %v3576 = vrot.slane %v3439, %v3575
        %v3577 = vlaneseq
        %v3578 = vshrl.u32 %v3577, 7
        %v3579 = vsub.s32 %v1259, %v3578
        %v3580 = vrot.slane %v3440, %v3579
        %v3581 = vsel %vm1264, %v3580, %v3576
        %v3582 = vlaneseq
        %v3583 = vshrl.u32 %v3582, 7
        %v3584 = vsub.s32 %v1254, %v3583
        %v3585 = vrot.slane %v3441, %v3584
        %v3586 = vlaneseq
        %v3587 = vshrl.u32 %v3586, 7
        %v3588 = vsub.s32 %v1259, %v3587
        %v3589 = vrot.slane %v3442, %v3588
        %v3590 = vsel %vm1264, %v3589, %v3585
        %v3591 = vlaneseq
        %v3592 = vshrl.u32 %v3591, 7
        %v3593 = vsub.s32 %v1254, %v3592
        %v3594 = vrot.slane %v3443, %v3593
        %v3595 = vlaneseq
        %v3596 = vshrl.u32 %v3595, 7
        %v3597 = vsub.s32 %v1259, %v3596
        %v3598 = vrot.slane %v3444, %v3597
        %v3599 = vsel %vm1264, %v3598, %v3594
        %v3600 = vlaneseq
        %v3601 = vshrl.u32 %v3600, 7
        %v3602 = vsub.s32 %v1254, %v3601
        %v3603 = vrot.slane %v3445, %v3602
        %v3604 = vlaneseq
        %v3605 = vshrl.u32 %v3604, 7
        %v3606 = vsub.s32 %v1259, %v3605
        %v3607 = vrot.slane %v3446, %v3606
        %v3608 = vsel %vm1264, %v3607, %v3603
        %v3609 = vlaneseq
        %v3610 = vshrl.u32 %v3609, 7
        %v3611 = vsub.s32 %v1254, %v3610
        %v3612 = vrot.slane %v3447, %v3611
        %v3613 = vlaneseq
        %v3614 = vshrl.u32 %v3613, 7
        %v3615 = vsub.s32 %v1259, %v3614
        %v3616 = vrot.slane %v3448, %v3615
        %v3617 = vsel %vm1264, %v3616, %v3612
        %v3618 = vlaneseq
        %v3619 = vshrl.u32 %v3618, 7
        %v3620 = vsub.s32 %v1254, %v3619
        %v3621 = vrot.slane %v3449, %v3620
        %v3622 = vlaneseq
        %v3623 = vshrl.u32 %v3622, 7
        %v3624 = vsub.s32 %v1259, %v3623
        %v3625 = vrot.slane %v3450, %v3624
        %v3626 = vsel %vm1264, %v3625, %v3621
        %v3627 = vsel %vm1401, %v3500, %v3491
        %v3628 = vsel %vm1403, %v3509, %v3627
        %v3629 = vsel %vm1405, %v3518, %v3628
        %v3630 = vsel %vm1407, %v3527, %v3629
        %v3631 = vsel %vm1409, %v3536, %v3630
        %v3632 = vsel %vm1411, %v3545, %v3631
        %v3633 = vsel %vm1413, %v3554, %v3632
        %v3634 = vsel %vm1401, %v3572, %v3563
        %v3635 = vsel %vm1403, %v3581, %v3634
        %v3636 = vsel %vm1405, %v3590, %v3635
        %v3637 = vsel %vm1407, %v3599, %v3636
        %v3638 = vsel %vm1409, %v3608, %v3637
        %v3639 = vsel %vm1411, %v3617, %v3638
        %v3640 = vsel %vm1413, %v3626, %v3639
        %v3643 = vsel %vm1424, %v3633, 0.0
        %3644 = vadd.xlane.f32.xlu0 %v3643
        %v3645 = vpop.xlane.xlu0 %3644
        %v3646 = vsel %vm1424, %v3640, 0.0
        %3647 = vadd.xlane.f32.xlu0 %v3646
        %v3648 = vpop.xlane.xlu0 %3647
        %v3651 = vlaneseq
        %v3652 = vshrl.u32 %v3651, 7
        %v3653 = vsub.s32 0, %v3652
        %v3654 = vrot.slane %v3645, %v3653
        %v3655 = vlaneseq
        %v3656 = vshrl.u32 %v3655, 7
        %v3657 = vsub.s32 1, %v3656
        %v3658 = vrot.slane %v3645, %v3657
        %v3659 = vlaneseq
        %v3660 = vshrl.u32 %v3659, 7
        %v3661 = vsub.s32 2, %v3660
        %v3662 = vrot.slane %v3645, %v3661
        %v3663 = vlaneseq
        %v3664 = vshrl.u32 %v3663, 7
        %v3665 = vsub.s32 3, %v3664
        %v3666 = vrot.slane %v3645, %v3665
        %v3667 = vlaneseq
        %v3668 = vshrl.u32 %v3667, 7
        %v3669 = vsub.s32 4, %v3668
        %v3670 = vrot.slane %v3645, %v3669
        %v3671 = vlaneseq
        %v3672 = vshrl.u32 %v3671, 7
        %v3673 = vsub.s32 5, %v3672
        %v3674 = vrot.slane %v3645, %v3673
        %v3675 = vlaneseq
        %v3676 = vshrl.u32 %v3675, 7
        %v3677 = vsub.s32 6, %v3676
        %v3678 = vrot.slane %v3645, %v3677
        %v3679 = vlaneseq
        %v3680 = vshrl.u32 %v3679, 7
        %v3681 = vsub.s32 7, %v3680
        %v3682 = vrot.slane %v3645, %v3681
        %v3683 = vlaneseq
        %v3684 = vshrl.u32 %v3683, 7
        %v3685 = vsub.s32 0, %v3684
        %v3686 = vrot.slane %v3648, %v3685
        %v3687 = vlaneseq
        %v3688 = vshrl.u32 %v3687, 7
        %v3689 = vsub.s32 1, %v3688
        %v3690 = vrot.slane %v3648, %v3689
        %v3691 = vlaneseq
        %v3692 = vshrl.u32 %v3691, 7
        %v3693 = vsub.s32 2, %v3692
        %v3694 = vrot.slane %v3648, %v3693
        %v3695 = vlaneseq
        %v3696 = vshrl.u32 %v3695, 7
        %v3697 = vsub.s32 3, %v3696
        %v3698 = vrot.slane %v3648, %v3697
        %v3699 = vlaneseq
        %v3700 = vshrl.u32 %v3699, 7
        %v3701 = vsub.s32 4, %v3700
        %v3702 = vrot.slane %v3648, %v3701
        %v3703 = vlaneseq
        %v3704 = vshrl.u32 %v3703, 7
        %v3705 = vsub.s32 5, %v3704
        %v3706 = vrot.slane %v3648, %v3705
        %v3707 = vlaneseq
        %v3708 = vshrl.u32 %v3707, 7
        %v3709 = vsub.s32 6, %v3708
        %v3710 = vrot.slane %v3648, %v3709
        %v3711 = vlaneseq
        %v3712 = vshrl.u32 %v3711, 7
        %v3713 = vsub.s32 7, %v3712
        %v3714 = vrot.slane %v3648, %v3713
        %v3731 = vmul.f32 %v3356, %v3654
        %v3732 = vmul.f32 %v3358, %v3654
        %v3733 = vmul.f32 %v3360, %v3658
        %v3734 = vmul.f32 %v3362, %v3658
        %v3735 = vmul.f32 %v3364, %v3662
        %v3736 = vmul.f32 %v3366, %v3662
        %v3737 = vmul.f32 %v3368, %v3666
        %v3738 = vmul.f32 %v3370, %v3666
        %v3739 = vmul.f32 %v3372, %v3670
        %v3740 = vmul.f32 %v3374, %v3670
        %v3741 = vmul.f32 %v3376, %v3674
        %v3742 = vmul.f32 %v3378, %v3674
        %v3743 = vmul.f32 %v3380, %v3678
        %v3744 = vmul.f32 %v3382, %v3678
        %v3745 = vmul.f32 %v3384, %v3682
        %v3746 = vmul.f32 %v3386, %v3682
        %v3747 = vmul.f32 %v3388, %v3686
        %v3748 = vmul.f32 %v3390, %v3686
        %v3749 = vmul.f32 %v3392, %v3690
        %v3750 = vmul.f32 %v3394, %v3690
        %v3751 = vmul.f32 %v3396, %v3694
        %v3752 = vmul.f32 %v3398, %v3694
        %v3753 = vmul.f32 %v3400, %v3698
        %v3754 = vmul.f32 %v3402, %v3698
        %v3755 = vmul.f32 %v3404, %v3702
        %v3756 = vmul.f32 %v3406, %v3702
        %v3757 = vmul.f32 %v3408, %v3706
        %v3758 = vmul.f32 %v3410, %v3706
        %v3759 = vmul.f32 %v3412, %v3710
        %v3760 = vmul.f32 %v3414, %v3710
        %v3761 = vmul.f32 %v3416, %v3714
        %v3762 = vmul.f32 %v3418, %v3714
        %v3763 = vadd.f32 %v3645, 1.0
        %v3764 = vadd.f32 %v3648, 1.0
        %v3765 = vrsqrt.pop %v3645
        %v3766 = vmul.f32 %v3645, %v3765
        %vm3767 = vcmp.eq.f32.partialorder %v3645, inf
        %v3768 = vsel %vm3767, %v3645, %v3766
        %vm3769 = vcmp.eq.f32.partialorder %v3645, 0.0
        %v3770 = vand.u32 %v3645, 2147483648
        %v3771 = vsel %vm3769, %v3770, %v3768
        %v3772 = vrsqrt.pop %v3648
        %v3773 = vmul.f32 %v3648, %v3772
        %vm3774 = vcmp.eq.f32.partialorder %v3648, inf
        %v3775 = vsel %vm3774, %v3648, %v3773
        %vm3776 = vcmp.eq.f32.partialorder %v3648, 0.0
        %v3777 = vand.u32 %v3648, 2147483648
        %v3778 = vsel %vm3776, %v3777, %v3775
        %v3779 = vmul.f32 %v3763, %v3771
        %v3780 = vmul.f32 %v3764, %v3778
        %v3783 = vlaneseq
        %v3784 = vshrl.u32 %v3783, 7
        %v3785 = vsub.s32 0, %v3784
        %v3786 = vrot.slane %v3779, %v3785
        %v3787 = vlaneseq
        %v3788 = vshrl.u32 %v3787, 7
        %v3789 = vsub.s32 1, %v3788
        %v3790 = vrot.slane %v3779, %v3789
        %v3791 = vlaneseq
        %v3792 = vshrl.u32 %v3791, 7
        %v3793 = vsub.s32 2, %v3792
        %v3794 = vrot.slane %v3779, %v3793
        %v3795 = vlaneseq
        %v3796 = vshrl.u32 %v3795, 7
        %v3797 = vsub.s32 3, %v3796
        %v3798 = vrot.slane %v3779, %v3797
        %v3799 = vlaneseq
        %v3800 = vshrl.u32 %v3799, 7
        %v3801 = vsub.s32 4, %v3800
        %v3802 = vrot.slane %v3779, %v3801
        %v3803 = vlaneseq
        %v3804 = vshrl.u32 %v3803, 7
        %v3805 = vsub.s32 5, %v3804
        %v3806 = vrot.slane %v3779, %v3805
        %v3807 = vlaneseq
        %v3808 = vshrl.u32 %v3807, 7
        %v3809 = vsub.s32 6, %v3808
        %v3810 = vrot.slane %v3779, %v3809
        %v3811 = vlaneseq
        %v3812 = vshrl.u32 %v3811, 7
        %v3813 = vsub.s32 7, %v3812
        %v3814 = vrot.slane %v3779, %v3813
        %v3815 = vlaneseq
        %v3816 = vshrl.u32 %v3815, 7
        %v3817 = vsub.s32 0, %v3816
        %v3818 = vrot.slane %v3780, %v3817
        %v3819 = vlaneseq
        %v3820 = vshrl.u32 %v3819, 7
        %v3821 = vsub.s32 1, %v3820
        %v3822 = vrot.slane %v3780, %v3821
        %v3823 = vlaneseq
        %v3824 = vshrl.u32 %v3823, 7
        %v3825 = vsub.s32 2, %v3824
        %v3826 = vrot.slane %v3780, %v3825
        %v3827 = vlaneseq
        %v3828 = vshrl.u32 %v3827, 7
        %v3829 = vsub.s32 3, %v3828
        %v3830 = vrot.slane %v3780, %v3829
        %v3831 = vlaneseq
        %v3832 = vshrl.u32 %v3831, 7
        %v3833 = vsub.s32 4, %v3832
        %v3834 = vrot.slane %v3780, %v3833
        %v3835 = vlaneseq
        %v3836 = vshrl.u32 %v3835, 7
        %v3837 = vsub.s32 5, %v3836
        %v3838 = vrot.slane %v3780, %v3837
        %v3839 = vlaneseq
        %v3840 = vshrl.u32 %v3839, 7
        %v3841 = vsub.s32 6, %v3840
        %v3842 = vrot.slane %v3780, %v3841
        %v3843 = vlaneseq
        %v3844 = vshrl.u32 %v3843, 7
        %v3845 = vsub.s32 7, %v3844
        %v3846 = vrot.slane %v3780, %v3845
        %v3863 = vrcp.pop %v3786
        %v3864 = vmul.f32 %v3731, %v3863
        %v3865 = vmul.f32 %v3732, %v3863
        %v3866 = vrcp.pop %v3790
        %v3867 = vmul.f32 %v3733, %v3866
        %v3868 = vmul.f32 %v3734, %v3866
        %v3869 = vrcp.pop %v3794
        %v3870 = vmul.f32 %v3735, %v3869
        %v3871 = vmul.f32 %v3736, %v3869
        %v3872 = vrcp.pop %v3798
        %v3873 = vmul.f32 %v3737, %v3872
        %v3874 = vmul.f32 %v3738, %v3872
        %v3875 = vrcp.pop %v3802
        %v3876 = vmul.f32 %v3739, %v3875
        %v3877 = vmul.f32 %v3740, %v3875
        %v3878 = vrcp.pop %v3806
        %v3879 = vmul.f32 %v3741, %v3878
        %v3880 = vmul.f32 %v3742, %v3878
        %v3881 = vrcp.pop %v3810
        %v3882 = vmul.f32 %v3743, %v3881
        %v3883 = vmul.f32 %v3744, %v3881
        %v3884 = vrcp.pop %v3814
        %v3885 = vmul.f32 %v3745, %v3884
        %v3886 = vmul.f32 %v3746, %v3884
        %v3887 = vrcp.pop %v3818
        %v3888 = vmul.f32 %v3747, %v3887
        %v3889 = vmul.f32 %v3748, %v3887
        %v3890 = vrcp.pop %v3822
        %v3891 = vmul.f32 %v3749, %v3890
        %v3892 = vmul.f32 %v3750, %v3890
        %v3893 = vrcp.pop %v3826
        %v3894 = vmul.f32 %v3751, %v3893
        %v3895 = vmul.f32 %v3752, %v3893
        %v3896 = vrcp.pop %v3830
        %v3897 = vmul.f32 %v3753, %v3896
        %v3898 = vmul.f32 %v3754, %v3896
        %v3899 = vrcp.pop %v3834
        %v3900 = vmul.f32 %v3755, %v3899
        %v3901 = vmul.f32 %v3756, %v3899
        %v3902 = vrcp.pop %v3838
        %v3903 = vmul.f32 %v3757, %v3902
        %v3904 = vmul.f32 %v3758, %v3902
        %v3905 = vrcp.pop %v3842
        %v3906 = vmul.f32 %v3759, %v3905
        %v3907 = vmul.f32 %v3760, %v3905
        %v3908 = vrcp.pop %v3846
        %v3909 = vmul.f32 %v3761, %v3908
        %v3910 = vmul.f32 %v3762, %v3908
        %3943 = vset.pattern.permute.xlu0 0
        %3944 = vperm.xlu0 %3943, %v3864
        %v3945 = vpop.permute.xlu0 %3944
        %3946 = vset.pattern.permute.xlu0 0
        %3947 = vperm.xlu0 %3946, %v3865
        %v3948 = vpop.permute.xlu0 %3947
        %3949 = vset.pattern.permute.xlu0 0
        %3950 = vperm.xlu0 %3949, %v3867
        %v3951 = vpop.permute.xlu0 %3950
        %3952 = vset.pattern.permute.xlu0 0
        %3953 = vperm.xlu0 %3952, %v3868
        %v3954 = vpop.permute.xlu0 %3953
        %3955 = vset.pattern.permute.xlu0 0
        %3956 = vperm.xlu0 %3955, %v3870
        %v3957 = vpop.permute.xlu0 %3956
        %3958 = vset.pattern.permute.xlu0 0
        %3959 = vperm.xlu0 %3958, %v3871
        %v3960 = vpop.permute.xlu0 %3959
        %3961 = vset.pattern.permute.xlu0 0
        %3962 = vperm.xlu0 %3961, %v3873
        %v3963 = vpop.permute.xlu0 %3962
        %3964 = vset.pattern.permute.xlu0 0
        %3965 = vperm.xlu0 %3964, %v3874
        %v3966 = vpop.permute.xlu0 %3965
        %3967 = vset.pattern.permute.xlu0 0
        %3968 = vperm.xlu0 %3967, %v3876
        %v3969 = vpop.permute.xlu0 %3968
        %3970 = vset.pattern.permute.xlu0 0
        %3971 = vperm.xlu0 %3970, %v3877
        %v3972 = vpop.permute.xlu0 %3971
        %3973 = vset.pattern.permute.xlu0 0
        %3974 = vperm.xlu0 %3973, %v3879
        %v3975 = vpop.permute.xlu0 %3974
        %3976 = vset.pattern.permute.xlu0 0
        %3977 = vperm.xlu0 %3976, %v3880
        %v3978 = vpop.permute.xlu0 %3977
        %3979 = vset.pattern.permute.xlu0 0
        %3980 = vperm.xlu0 %3979, %v3882
        %v3981 = vpop.permute.xlu0 %3980
        %3982 = vset.pattern.permute.xlu0 0
        %3983 = vperm.xlu0 %3982, %v3883
        %v3984 = vpop.permute.xlu0 %3983
        %3985 = vset.pattern.permute.xlu0 0
        %3986 = vperm.xlu0 %3985, %v3885
        %v3987 = vpop.permute.xlu0 %3986
        %3988 = vset.pattern.permute.xlu0 0
        %3989 = vperm.xlu0 %3988, %v3886
        %v3990 = vpop.permute.xlu0 %3989
        %3991 = vset.pattern.permute.xlu0 0
        %3992 = vperm.xlu0 %3991, %v3888
        %v3993 = vpop.permute.xlu0 %3992
        %3994 = vset.pattern.permute.xlu0 0
        %3995 = vperm.xlu0 %3994, %v3889
        %v3996 = vpop.permute.xlu0 %3995
        %3997 = vset.pattern.permute.xlu0 0
        %3998 = vperm.xlu0 %3997, %v3891
        %v3999 = vpop.permute.xlu0 %3998
        %4000 = vset.pattern.permute.xlu0 0
        %4001 = vperm.xlu0 %4000, %v3892
        %v4002 = vpop.permute.xlu0 %4001
        %4003 = vset.pattern.permute.xlu0 0
        %4004 = vperm.xlu0 %4003, %v3894
        %v4005 = vpop.permute.xlu0 %4004
        %4006 = vset.pattern.permute.xlu0 0
        %4007 = vperm.xlu0 %4006, %v3895
        %v4008 = vpop.permute.xlu0 %4007
        %4009 = vset.pattern.permute.xlu0 0
        %4010 = vperm.xlu0 %4009, %v3897
        %v4011 = vpop.permute.xlu0 %4010
        %4012 = vset.pattern.permute.xlu0 0
        %4013 = vperm.xlu0 %4012, %v3898
        %v4014 = vpop.permute.xlu0 %4013
        %4015 = vset.pattern.permute.xlu0 0
        %4016 = vperm.xlu0 %4015, %v3900
        %v4017 = vpop.permute.xlu0 %4016
        %4018 = vset.pattern.permute.xlu0 0
        %4019 = vperm.xlu0 %4018, %v3901
        %v4020 = vpop.permute.xlu0 %4019
        %4021 = vset.pattern.permute.xlu0 0
        %4022 = vperm.xlu0 %4021, %v3903
        %v4023 = vpop.permute.xlu0 %4022
        %4024 = vset.pattern.permute.xlu0 0
        %4025 = vperm.xlu0 %4024, %v3904
        %v4026 = vpop.permute.xlu0 %4025
        %4027 = vset.pattern.permute.xlu0 0
        %4028 = vperm.xlu0 %4027, %v3906
        %v4029 = vpop.permute.xlu0 %4028
        %4030 = vset.pattern.permute.xlu0 0
        %4031 = vperm.xlu0 %4030, %v3907
        %v4032 = vpop.permute.xlu0 %4031
        %4033 = vset.pattern.permute.xlu0 0
        %4034 = vperm.xlu0 %4033, %v3909
        %v4035 = vpop.permute.xlu0 %4034
        %4036 = vset.pattern.permute.xlu0 0
        %4037 = vperm.xlu0 %4036, %v3910
        %v4038 = vpop.permute.xlu0 %4037
        %v4039 = vlaneseq
        %v4040 = vshrl.u32 %v4039, 7
        %v4041 = vsub.s32 %v1254, %v4040
        %v4042 = vrot.slane %v3945, %v4041
        %v4043 = vlaneseq
        %v4044 = vshrl.u32 %v4043, 7
        %v4045 = vsub.s32 %v1259, %v4044
        %v4046 = vrot.slane %v3948, %v4045
        %v4047 = vsel %vm1264, %v4046, %v4042
        %v4048 = vlaneseq
        %v4049 = vshrl.u32 %v4048, 7
        %v4050 = vsub.s32 %v1254, %v4049
        %v4051 = vrot.slane %v3951, %v4050
        %v4052 = vlaneseq
        %v4053 = vshrl.u32 %v4052, 7
        %v4054 = vsub.s32 %v1259, %v4053
        %v4055 = vrot.slane %v3954, %v4054
        %v4056 = vsel %vm1264, %v4055, %v4051
        %v4057 = vlaneseq
        %v4058 = vshrl.u32 %v4057, 7
        %v4059 = vsub.s32 %v1254, %v4058
        %v4060 = vrot.slane %v3957, %v4059
        %v4061 = vlaneseq
        %v4062 = vshrl.u32 %v4061, 7
        %v4063 = vsub.s32 %v1259, %v4062
        %v4064 = vrot.slane %v3960, %v4063
        %v4065 = vsel %vm1264, %v4064, %v4060
        %v4066 = vlaneseq
        %v4067 = vshrl.u32 %v4066, 7
        %v4068 = vsub.s32 %v1254, %v4067
        %v4069 = vrot.slane %v3963, %v4068
        %v4070 = vlaneseq
        %v4071 = vshrl.u32 %v4070, 7
        %v4072 = vsub.s32 %v1259, %v4071
        %v4073 = vrot.slane %v3966, %v4072
        %v4074 = vsel %vm1264, %v4073, %v4069
        %v4075 = vlaneseq
        %v4076 = vshrl.u32 %v4075, 7
        %v4077 = vsub.s32 %v1254, %v4076
        %v4078 = vrot.slane %v3969, %v4077
        %v4079 = vlaneseq
        %v4080 = vshrl.u32 %v4079, 7
        %v4081 = vsub.s32 %v1259, %v4080
        %v4082 = vrot.slane %v3972, %v4081
        %v4083 = vsel %vm1264, %v4082, %v4078
        %v4084 = vlaneseq
        %v4085 = vshrl.u32 %v4084, 7
        %v4086 = vsub.s32 %v1254, %v4085
        %v4087 = vrot.slane %v3975, %v4086
        %v4088 = vlaneseq
        %v4089 = vshrl.u32 %v4088, 7
        %v4090 = vsub.s32 %v1259, %v4089
        %v4091 = vrot.slane %v3978, %v4090
        %v4092 = vsel %vm1264, %v4091, %v4087
        %v4093 = vlaneseq
        %v4094 = vshrl.u32 %v4093, 7
        %v4095 = vsub.s32 %v1254, %v4094
        %v4096 = vrot.slane %v3981, %v4095
        %v4097 = vlaneseq
        %v4098 = vshrl.u32 %v4097, 7
        %v4099 = vsub.s32 %v1259, %v4098
        %v4100 = vrot.slane %v3984, %v4099
        %v4101 = vsel %vm1264, %v4100, %v4096
        %v4102 = vlaneseq
        %v4103 = vshrl.u32 %v4102, 7
        %v4104 = vsub.s32 %v1254, %v4103
        %v4105 = vrot.slane %v3987, %v4104
        %v4106 = vlaneseq
        %v4107 = vshrl.u32 %v4106, 7
        %v4108 = vsub.s32 %v1259, %v4107
        %v4109 = vrot.slane %v3990, %v4108
        %v4110 = vsel %vm1264, %v4109, %v4105
        %v4111 = vlaneseq
        %v4112 = vshrl.u32 %v4111, 7
        %v4113 = vsub.s32 %v1254, %v4112
        %v4114 = vrot.slane %v3993, %v4113
        %v4115 = vlaneseq
        %v4116 = vshrl.u32 %v4115, 7
        %v4117 = vsub.s32 %v1259, %v4116
        %v4118 = vrot.slane %v3996, %v4117
        %v4119 = vsel %vm1264, %v4118, %v4114
        %v4120 = vlaneseq
        %v4121 = vshrl.u32 %v4120, 7
        %v4122 = vsub.s32 %v1254, %v4121
        %v4123 = vrot.slane %v3999, %v4122
        %v4124 = vlaneseq
        %v4125 = vshrl.u32 %v4124, 7
        %v4126 = vsub.s32 %v1259, %v4125
        %v4127 = vrot.slane %v4002, %v4126
        %v4128 = vsel %vm1264, %v4127, %v4123
        %v4129 = vlaneseq
        %v4130 = vshrl.u32 %v4129, 7
        %v4131 = vsub.s32 %v1254, %v4130
        %v4132 = vrot.slane %v4005, %v4131
        %v4133 = vlaneseq
        %v4134 = vshrl.u32 %v4133, 7
        %v4135 = vsub.s32 %v1259, %v4134
        %v4136 = vrot.slane %v4008, %v4135
        %v4137 = vsel %vm1264, %v4136, %v4132
        %v4138 = vlaneseq
        %v4139 = vshrl.u32 %v4138, 7
        %v4140 = vsub.s32 %v1254, %v4139
        %v4141 = vrot.slane %v4011, %v4140
        %v4142 = vlaneseq
        %v4143 = vshrl.u32 %v4142, 7
        %v4144 = vsub.s32 %v1259, %v4143
        %v4145 = vrot.slane %v4014, %v4144
        %v4146 = vsel %vm1264, %v4145, %v4141
        %v4147 = vlaneseq
        %v4148 = vshrl.u32 %v4147, 7
        %v4149 = vsub.s32 %v1254, %v4148
        %v4150 = vrot.slane %v4017, %v4149
        %v4151 = vlaneseq
        %v4152 = vshrl.u32 %v4151, 7
        %v4153 = vsub.s32 %v1259, %v4152
        %v4154 = vrot.slane %v4020, %v4153
        %v4155 = vsel %vm1264, %v4154, %v4150
        %v4156 = vlaneseq
        %v4157 = vshrl.u32 %v4156, 7
        %v4158 = vsub.s32 %v1254, %v4157
        %v4159 = vrot.slane %v4023, %v4158
        %v4160 = vlaneseq
        %v4161 = vshrl.u32 %v4160, 7
        %v4162 = vsub.s32 %v1259, %v4161
        %v4163 = vrot.slane %v4026, %v4162
        %v4164 = vsel %vm1264, %v4163, %v4159
        %v4165 = vlaneseq
        %v4166 = vshrl.u32 %v4165, 7
        %v4167 = vsub.s32 %v1254, %v4166
        %v4168 = vrot.slane %v4029, %v4167
        %v4169 = vlaneseq
        %v4170 = vshrl.u32 %v4169, 7
        %v4171 = vsub.s32 %v1259, %v4170
        %v4172 = vrot.slane %v4032, %v4171
        %v4173 = vsel %vm1264, %v4172, %v4168
        %v4174 = vlaneseq
        %v4175 = vshrl.u32 %v4174, 7
        %v4176 = vsub.s32 %v1254, %v4175
        %v4177 = vrot.slane %v4035, %v4176
        %v4178 = vlaneseq
        %v4179 = vshrl.u32 %v4178, 7
        %v4180 = vsub.s32 %v1259, %v4179
        %v4181 = vrot.slane %v4038, %v4180
        %v4182 = vsel %vm1264, %v4181, %v4177
        %v4183 = vsel %vm1401, %v4056, %v4047
        %v4184 = vsel %vm1403, %v4065, %v4183
        %v4185 = vsel %vm1405, %v4074, %v4184
        %v4186 = vsel %vm1407, %v4083, %v4185
        %v4187 = vsel %vm1409, %v4092, %v4186
        %v4188 = vsel %vm1411, %v4101, %v4187
        %v4189 = vsel %vm1413, %v4110, %v4188
        %v4190 = vsel %vm1401, %v4128, %v4119
        %v4191 = vsel %vm1403, %v4137, %v4190
        %v4192 = vsel %vm1405, %v4146, %v4191
        %v4193 = vsel %vm1407, %v4155, %v4192
        %v4194 = vsel %vm1409, %v4164, %v4193
        %v4195 = vsel %vm1411, %v4173, %v4194
        %v4196 = vsel %vm1413, %v4182, %v4195
        %4199 = vst.msk [vmem:[%s204] sm:$0xff] %vm1424, %v4189
        %4200 = vst.msk [vmem:[%s204 + $0x8] sm:$0xff] %vm1424, %v4196
        %v4217 = vrot.slane %v3244, 7
        %v4218 = vsel %vm1401, %v4217, %v3243
        %v4219 = vrot.slane %v3245, 6
        %v4220 = vsel %vm1403, %v4219, %v4218
        %v4221 = vrot.slane %v3246, 5
        %v4222 = vsel %vm1405, %v4221, %v4220
        %v4223 = vrot.slane %v3247, 4
        %v4224 = vsel %vm1407, %v4223, %v4222
        %v4225 = vrot.slane %v3248, 3
        %v4226 = vsel %vm1409, %v4225, %v4224
        %v4227 = vrot.slane %v3249, 2
        %v4228 = vsel %vm1411, %v4227, %v4226
        %v4229 = vrot.slane %v3250, 1
        %v4230 = vsel %vm1413, %v4229, %v4228
        %v4231 = vrot.slane %v3252, 7
        %v4232 = vsel %vm1401, %v4231, %v3251
        %v4233 = vrot.slane %v3253, 6
        %v4234 = vsel %vm1403, %v4233, %v4232
        %v4235 = vrot.slane %v3254, 5
        %v4236 = vsel %vm1405, %v4235, %v4234
        %v4237 = vrot.slane %v3255, 4
        %v4238 = vsel %vm1407, %v4237, %v4236
        %v4239 = vrot.slane %v3256, 3
        %v4240 = vsel %vm1409, %v4239, %v4238
        %v4241 = vrot.slane %v3257, 2
        %v4242 = vsel %vm1411, %v4241, %v4240
        %v4243 = vrot.slane %v3258, 1
        %v4244 = vsel %vm1413, %v4243, %v4242
        %4247 = vst [vmem:[%s211] sm:$0xff] %v4230
        %4248 = vst [vmem:[%s211 + $0x8] sm:$0xff] %v4244
        %s4249 = sand.u32 %s80, 1
        %s4250 = scalar_lea.sflag [#allocation5], %s4249
        %s4251 = sand.u32 %s80, 1
        %s4252 = smul.addr %s4251, 16
        %s4253 = scalar_lea.vmem [#allocation8], %s4252
        %s4254 = sand.u32 %s106, 1
        %s4255 = scalar_lea.sflag [#allocation10], %s4254
        %s4256 = sand.u32 %s106, 1
        %s4257 = smul.addr %s4256, 16
        %s4258 = scalar_lea.vmem [#allocation9], %s4257
        // Predicated region
        $region37: #{tpu_custom_call.1} parent=27 // pred_check
          %p4259 = pneg %p90
        $region38: #{tpu_custom_call.1} parent=27 // pred_check_branch
          %4261 = sbr.rel (%p4259) target = $region40
        $region39: #{tpu_custom_call.1} parent=27 // pred_region
          %s4263 = ssub.s32 256, 256
          %4264 = vsyncadd %s4250, %s4263
          %s4265 = smul.addr %s25, 2
          %s4266 = smul.addr %s4265, 128
          %s4267 = scalar_lea.hbm %s2, %s4266
          %s4268 = sshll.u32 %s4253, 4
          %s4269 = int_to_ptr.vmem [resolvable:$true] %s4268
          %4274 = dma.vmem_to_hbm [thread:$0]  %s4269, 256, %s4267, %s4250, 128, 128, 8
        $region40: #{tpu_custom_call.1} parent=27 // pred_fallthru
          _
        // Predicated region
        $region41: #{tpu_custom_call.1} parent=27 // pred_check
          %p4275 = pneg %p116
        $region42: #{tpu_custom_call.1} parent=27 // pred_check_branch
          %4277 = sbr.rel (%p4275) target = $region44
        $region43: #{tpu_custom_call.1} parent=27 // pred_region
          %s4279 = ssub.s32 256, 256
          %4280 = vsyncadd %s4255, %s4279
          %s4281 = smul.addr %s25, 2
          %s4282 = smul.addr %s4281, 128
          %s4283 = scalar_lea.hbm %s3, %s4282
          %s4284 = sshll.u32 %s4258, 4
          %s4285 = int_to_ptr.vmem [resolvable:$true] %s4284
          %4290 = dma.vmem_to_hbm [thread:$0]  %s4285, 256, %s4283, %s4255, 128, 128, 8
        $region44: #{tpu_custom_call.1} parent=27 // pred_fallthru
          _
      $region28: #{tpu_custom_call.1} parent=5 // pred_fallthru
        _
      %p4291 = scmp.le.s32.totalorder 2, %s20
      // Predicated region
      $region45: #{tpu_custom_call.1} parent=5 // pred_check
        %p4292 = pneg %p4291
      $region46: #{tpu_custom_call.1} parent=5 // pred_check_branch
        %4294 = sbr.rel (%p4292) target = $region48
      $region47: #{tpu_custom_call.1} parent=5 // pred_region
        %s4295 = ssub.s32 %s20, 2
        // Predicated region
        $region49: #{tpu_custom_call.1} parent=47 // pred_check
          %p4296 = pneg %p96
        $region50: #{tpu_custom_call.1} parent=47 // pred_check_branch
          %4298 = sbr.rel (%p4296) target = $region52
        $region51: #{tpu_custom_call.1} parent=47 // pred_region
          %s4299 = sand.u32 %s81, 1
          %s4300 = scalar_lea.sflag [#allocation5], %s4299
          %s4301 = sand.u32 %s81, 1
          %s4302 = smul.addr %s4301, 16
          %s4303 = scalar_lea.vmem [#allocation8], %s4302
          %4304 = dma.done %s4300, 256
        $region52: #{tpu_custom_call.1} parent=47 // pred_fallthru
          _
        // Predicated region
        $region53: #{tpu_custom_call.1} parent=47 // pred_check
          %p4305 = pneg %p122
        $region54: #{tpu_custom_call.1} parent=47 // pred_check_branch
          %4307 = sbr.rel (%p4305) target = $region56
        $region55: #{tpu_custom_call.1} parent=47 // pred_region
          %s4308 = sand.u32 %s107, 1
          %s4309 = scalar_lea.sflag [#allocation10], %s4308
          %s4310 = sand.u32 %s107, 1
          %s4311 = smul.addr %s4310, 16
          %s4312 = scalar_lea.vmem [#allocation9], %s4311
          %4313 = dma.done %s4309, 256
        $region56: #{tpu_custom_call.1} parent=47 // pred_fallthru
          _
      $region48: #{tpu_custom_call.1} parent=5 // pred_fallthru
        _
    $region6: #{tpu_custom_call.1} parent=1 // loop_footer
      %s24 = sadd.s32 1, %s20
    $region7: #{tpu_custom_call.1} parent=1 // loop_footer_branch
      %19 = sbr.rel target = $region3
    $region8: #{tpu_custom_call.1} parent=1 // loop_exit
      _
    %4314 = vsyncpa [#allocation4], 1
    %s4315 = scalar_lea.sflag [#allocation4], 1
    %4316 = vsyncpa %s4315, 1
    %4317 = vsyncpa [#allocation7], 1
    %4318 = vsyncpa [#allocation5], 1
    %s4319 = scalar_lea.sflag [#allocation5], 1
    %4320 = vsyncpa %s4319, 1
    %4321 = vsyncpa [#allocation10], 1
    %s4322 = scalar_lea.sflag [#allocation10], 1
    %4323 = vsyncpa %s4322, 1

</llo_original>
